<compile_context>
chip_gen: v6e
topology: v6e:2x2x1
jax: 0.10.0
libtpu: 0.0.40
codegen_flags: <defaults>
</compile_context>

<pallas_src>
import numpy as np

import jax
import jax.numpy as jnp
from jax.experimental import pallas as pl
from jax.experimental.pallas import tpu as pltpu


# -----------------------------------------------------------------------------
# pltpu.roll direction. Static default: np.roll semantics
# (out[i] = in[(i - shift) % n]). Confirmed once at import time by a tiny
# probe (never inside jit, so no ConcretizationTypeError trap); if the probe
# cannot run we keep the static default.
# -----------------------------------------------------------------------------
def _roll_probe_kernel(x_ref, o_ref):
    o_ref[...] = pltpu.roll(x_ref[...], shift=1, axis=1)


def _probe_roll_is_numpy():
    x = jnp.tile(jnp.arange(128, dtype=jnp.float32)[None, :], (8, 1))
    y = pl.pallas_call(
        _roll_probe_kernel,
        out_shape=jax.ShapeDtypeStruct((8, 128), jnp.float32),
    )(x)
    return bool(np.asarray(y)[0, 0] == 127.0)


_ROLL_IS_NUMPY = True
try:  # one tiny compile at import; keeps the forward path free of probes
    _ROLL_IS_NUMPY = _probe_roll_is_numpy()
except Exception:
    pass


# -----------------------------------------------------------------------------
# Fused whole-network kernel. Activations live as (C, L) with L = Bt*H*W on
# the lane axis (lane-dense, batch folded into lanes).
# -----------------------------------------------------------------------------
def _make_fused_kernel(n_nl, n_mid, cin, f_nl, f_dnn, c_out, tap_shifts):
    c_mask = max(f_nl, f_dnn)

    def kernel(x_ref, masks_ref, nlw_ref, nlb_ref, w3_ref, scale_ref,
               shift_ref, o_ref):
        L = x_ref.shape[1]

        # Hoisted once per step: broadcast the 9 (1, L) boundary masks to full
        # channel width; reused by every 3x3 conv below.
        masks_b = [jnp.broadcast_to(masks_ref[t], (c_mask, L)) for t in range(9)]

        def conv3x3(act, w, ci, scale=None, shift=None, relu=True):
            # act: (ci, L) f32; w: (co, 9*ci) bf16. im2col taps via XLU rolls,
            # built directly in bf16 so the patch matrix is half-size.
            taps = []
            for t, s in enumerate(tap_shifts):
                if s == 0:                               # centre tap, no mask
                    taps.append(act.astype(jnp.bfloat16))
                else:
                    shifted = pltpu.roll(act, shift=s, axis=1)   # XLU, cheap
                    m = masks_b[t]
                    if ci != c_mask:
                        m = m[:ci]
                    taps.append((shifted * m).astype(jnp.bfloat16))
            patches = jnp.concatenate(taps, axis=0)      # (9*ci, L) bf16
            y = jnp.dot(w, patches, preferred_element_type=jnp.float32)
            if scale is not None:
                y = y * scale + shift
            if relu:
                y = jnp.maximum(y, 0.0)
            return y

        # ---- 1x1 conv + bias + ReLU stack (pointwise matmuls) ----
        act_b = x_ref[...]                               # (cin, L) bf16
        act = None
        c_prev = cin
        for l in range(n_nl):
            w = nlw_ref[l, :, :c_prev]                   # (f_nl, c_prev) bf16
            y = jnp.dot(w, act_b, preferred_element_type=jnp.float32) + nlb_ref[l]
            act = jnp.maximum(y, 0.0)                    # (f_nl, L) f32
            act_b = act.astype(jnp.bfloat16)
            c_prev = f_nl

        # ---- first 3x3 conv + ReLU ----
        act = conv3x3(act, w3_ref[0, :f_dnn, :9 * f_nl], f_nl, relu=True)

        # ---- middle 3x3 conv + folded BatchNorm + ReLU blocks ----
        for m in range(n_mid):
            act = conv3x3(act, w3_ref[1 + m, :f_dnn, :9 * f_dnn], f_dnn,
                          scale=scale_ref[m], shift=shift_ref[m], relu=True)

        # ---- final 3x3 conv (linear) ----
        act = conv3x3(act, w3_ref[1 + n_mid, :c_out, :9 * f_dnn], f_dnn,
                      relu=False)

        o_ref[...] = act.astype(o_ref.dtype)             # lane-dense store

    return kernel


# -----------------------------------------------------------------------------
# Forward wrapper (NCHW in, NCHW out). Params stay in PyTorch layout; all
# layout transforms / packing happen here, once.
# -----------------------------------------------------------------------------
def modified_dncnn_forward(x_nchw, params, *, out_dtype=jnp.bfloat16,
                           target_lanes=2048):
    N, C, H, W = x_nchw.shape
    HW = H * W

    n_nl = len(params["nl"])
    n_mid = len(params["dnn_mid"])
    f_nl = params["dnn_first"].shape[1]
    f_dnn = params["dnn_first"].shape[0]
    c_out = params["dnn_last"].shape[0]

    # ---- batch chunking: fold Bt images into the lane axis per grid step ----
    if HW % 128 == 0:
        bt = max(1, min(N, max(1, target_lanes // HW)))
    else:
        bt = N                    # single fat step: block == full array (legal)
    G = -(-N // bt)
    n_pad = G * bt
    L = bt * HW

    # channel-major layout: one transpose in the wrapper, none per layer
    x_flat = x_nchw.reshape(N, C, HW)
    if n_pad != N:
        x_flat = jnp.pad(x_flat, ((0, n_pad - N), (0, 0), (0, 0)))
    x_cm = jnp.transpose(x_flat, (1, 0, 2)).reshape(C, n_pad * HW)
    x_cm = x_cm.astype(jnp.bfloat16)

    # ---- static tap shifts on the flattened, batch-folded spatial axis ----
    tap_shifts = []
    for i in range(3):
        for j in range(3):
            d = (i - 1) * W + (j - 1)          # want shifted[p] = act[p + d]
            tap_shifts.append(((-d) % L) if _ROLL_IS_NUMPY else (d % L))
    tap_shifts = tuple(tap_shifts)

    # ---- 9 boundary-validity masks (also mask cross-image wrap), host-built ----
    p = np.arange(HW)
    row, col = p // W, p % W
    masks_np = np.zeros((9, 1, HW), np.float32)
    for i in range(3):
        for j in range(3):
            ok = ((row + i - 1 >= 0) & (row + i - 1 < H)
                  & (col + j - 1 >= 0) & (col + j - 1 < W))
            masks_np[i * 3 + j, 0, :] = ok
    masks = jnp.asarray(np.tile(masks_np, (1, 1, bt)))       # (9, 1, L) f32

    # ---- pack all layer parameters into a handful of refs ----
    def im2col_w(w_pt):                        # (Co, Ci, 3, 3) -> (Co, 9*Ci)
        co, ci = w_pt.shape[0], w_pt.shape[1]
        return jnp.transpose(w_pt, (0, 2, 3, 1)).reshape(co, 9 * ci)

    cin_nl_max = max(C, f_nl)
    nlw = jnp.zeros((n_nl, f_nl, cin_nl_max), jnp.float32)
    nlb = jnp.zeros((n_nl, f_nl, 1), jnp.float32)
    for l, (w, b) in enumerate(params["nl"]):
        nlw = nlw.at[l, :, :w.shape[1]].set(w[:, :, 0, 0])
        nlb = nlb.at[l, :, 0].set(b)
    nlw = nlw.astype(jnp.bfloat16)

    n_c3 = n_mid + 2
    co3_max = max(f_dnn, c_out)
    ci3_max = max(f_nl, f_dnn)
    w3 = jnp.zeros((n_c3, co3_max, 9 * ci3_max), jnp.float32)
    w3 = w3.at[0, :f_dnn, :9 * f_nl].set(im2col_w(params["dnn_first"]))
    scale = jnp.ones((max(n_mid, 1), f_dnn, 1), jnp.float32)
    shift = jnp.zeros((max(n_mid, 1), f_dnn, 1), jnp.float32)
    for m, (w, sc, sh) in enumerate(params["dnn_mid"]):
        w3 = w3.at[1 + m, :f_dnn, :9 * f_dnn].set(im2col_w(w))
        scale = scale.at[m, :, 0].set(sc)
        shift = shift.at[m, :, 0].set(sh)
    w3 = w3.at[n_c3 - 1, :c_out, :9 * f_dnn].set(im2col_w(params["dnn_last"]))
    w3 = w3.astype(jnp.bfloat16)

    consts = [masks, nlw, nlb, w3, scale, shift]

    def _const_spec(arr):
        nd = arr.ndim
        # TODO(synk): pipeline_mode=pl.Buffered(1) would drop the (unneeded)
        # second buffer of these never-revisited constants.
        return pl.BlockSpec(arr.shape, lambda g, nd=nd: (0,) * nd)

    in_specs = ([pl.BlockSpec((C, L), lambda g: (0, g))]
                + [_const_spec(a) for a in consts])
    out_spec = pl.BlockSpec((c_out, L), lambda g: (0, g))

    # per-step VMEM working-set estimate -> scoped limit with headroom
    c_mask = max(f_nl, f_dnn)
    const_bytes = sum(int(np.prod(a.shape)) * a.dtype.itemsize for a in consts)
    est = (f_dnn * L * 4                        # f32 activation
           + 9 * ci3_max * L * 2                # bf16 im2col patches
           + 9 * c_mask * L * 4                 # pre-broadcast masks
           + 2 * (C + c_out) * L * 2            # double-buffered in/out blocks
           + 2 * const_bytes)                   # double-buffered constants
    vmem_limit = int(min(max(2 * est, 32 * 1024 * 1024), 64 * 1024 * 1024))

    kernel = _make_fused_kernel(n_nl, n_mid, C, f_nl, f_dnn, c_out, tap_shifts)
    out_cm = pl.pallas_call(
        kernel,
        out_shape=jax.ShapeDtypeStruct((c_out, n_pad * HW), out_dtype),
        grid=(G,),
        in_specs=in_specs,
        out_specs=out_spec,
        compiler_params=pltpu.CompilerParams(
            dimension_semantics=("parallel",),
            vmem_limit_bytes=vmem_limit),
    )(x_cm, *consts)

    out = jnp.transpose(out_cm.reshape(c_out, n_pad, HW), (1, 0, 2))
    return out[:N].reshape(N, c_out, H, W)


# -----------------------------------------------------------------------------
# Deterministic parameter init (PyTorch layouts; BN folded to scale/shift)
# -----------------------------------------------------------------------------
def init_params(key, input_channels, output_channels, nlconv_features,
                nlconv_layers, dnnconv_features, dnnconv_layers):
    params = {"nl": [], "dnn_first": None, "dnn_mid": [], "dnn_last": None}

    def nrm(k, shape, s=0.1):
        return jax.random.normal(k, shape, dtype=jnp.float32) * s

    cin = input_channels
    for _ in range(nlconv_layers):
        key, kw, kb = jax.random.split(key, 3)
        params["nl"].append((nrm(kw, (nlconv_features, cin, 1, 1)),
                             nrm(kb, (nlconv_features,))))
        cin = nlconv_features

    key, kw = jax.random.split(key)
    params["dnn_first"] = nrm(kw, (dnnconv_features, nlconv_features, 3, 3))

    eps = 1e-5
    for _ in range(dnnconv_layers - 2):
        key, kw, kg, kb, km, kv = jax.random.split(key, 6)
        w = nrm(kw, (dnnconv_features, dnnconv_features, 3, 3))
        gamma = 1.0 + nrm(kg, (dnnconv_features,), 0.05)
        beta = nrm(kb, (dnnconv_features,), 0.05)
        running_mean = nrm(km, (dnnconv_features,), 0.05)
        running_var = 1.0 + jnp.abs(nrm(kv, (dnnconv_features,), 0.05))
        scale = gamma / jnp.sqrt(running_var + eps)
        shift = beta - running_mean * scale
        params["dnn_mid"].append((w, scale, shift))

    key, kw = jax.random.split(key)
    params["dnn_last"] = nrm(kw, (output_channels, dnnconv_features, 3, 3))
    return params


# -----------------------------------------------------------------------------
# Pure-JAX reference (f32) for a correctness check of the fused kernel.
# -----------------------------------------------------------------------------
def _reference_forward(x_nchw, params):
    dn = ("NCHW", "OIHW", "NCHW")
    prec = jax.lax.Precision.HIGHEST
    x = x_nchw.astype(jnp.float32)
    for (w, b) in params["nl"]:
        x = jax.lax.conv_general_dilated(x, w, (1, 1), "VALID",
                                         dimension_numbers=dn, precision=prec)
        x = jax.nn.relu(x + b[None, :, None, None])
    x = jax.lax.conv_general_dilated(x, params["dnn_first"], (1, 1),
                                     [(1, 1), (1, 1)],
                                     dimension_numbers=dn, precision=prec)
    x = jax.nn.relu(x)
    for (w, scale, shift) in params["dnn_mid"]:
        x = jax.lax.conv_general_dilated(x, w, (1, 1), [(1, 1), (1, 1)],
                                         dimension_numbers=dn, precision=prec)
        x = jax.nn.relu(x * scale[None, :, None, None]
                        + shift[None, :, None, None])
    x = jax.lax.conv_general_dilated(x, params["dnn_last"], (1, 1),
                                     [(1, 1), (1, 1)],
                                     dimension_numbers=dn, precision=prec)
    return x


if __name__ == "__main__":
    # small, forward-consistent configuration
    input_channels = 4
    output_channels = 4
    nlconv_features = 16
    nlconv_layers = 2
    dnnconv_features = 32
    dnnconv_layers = 4   # -> 2 middle (conv + BN + ReLU) blocks

    key = jax.random.PRNGKey(0)
    key, kx, kp = jax.random.split(key, 3)
    x = jax.random.normal(kx, (2, input_channels, 16, 16), dtype=jnp.float32)

    params = init_params(kp, input_channels, output_channels, nlconv_features,
                         nlconv_layers, dnnconv_features, dnnconv_layers)

    out = modified_dncnn_forward(x, params)
    out = jax.block_until_ready(out)
    assert out.shape == (2, output_channels, 16, 16), out.shape

    # correctness check against a pure-JAX f32 reference (bf16 matmul operands
    # with f32 accumulation + bf16 output, hence the loose tolerance)
    ref = _reference_forward(x, params)
    err = float(jnp.max(jnp.abs(out.astype(jnp.float32) - ref)))
    assert err < 5e-2, f"max abs error vs reference: {err}"

    print("KERNEL_OK")
</pallas_src>

<mosaic_0001>
module attributes {stable_mosaic.version = 11 : i64} {
  func.func @_roll_probe_kernel(%arg0: memref<8x128xf32, #tpu.memory_space<vmem>>, %arg1: memref<8x128xf32, #tpu.memory_space<vmem>>) attributes {dimension_semantics = [], scalar_prefetch = 0 : i64, scratch_operands = 0 : i64, tpu.core_type = #tpu.core_type<tc>} {
    %c0 = arith.constant 0 : index
    %c0_0 = arith.constant 0 : index
    %0 = vector.load %arg0[%c0, %c0_0] : memref<8x128xf32, #tpu.memory_space<vmem>>, vector<8x128xf32>
    %c1_i32 = arith.constant 1 : i32
    %1 = tpu.dynamic_rotate %0 by %c1_i32 dim 1 : vector<8x128xf32>, i32 -> vector<8x128xf32>
    %c0_1 = arith.constant 0 : index
    %c0_2 = arith.constant 0 : index
    %2 = vector.load %arg1[%c0_1, %c0_2] : memref<8x128xf32, #tpu.memory_space<vmem>>, vector<8x128xf32>
    tpu.vector_store %arg1[%c0_1, %c0_2], %1 {strides = array<i32>} : memref<8x128xf32, #tpu.memory_space<vmem>>, vector<8x128xf32>,
    return
  }
}

module attributes {stable_mosaic.version = 11 : i64} {
  func.func @kernel(%arg0: i32, %arg1: memref<4x512xbf16, #tpu.memory_space<vmem>>, %arg2: memref<9x1x512xf32, #tpu.memory_space<vmem>>, %arg3: memref<2x16x16xbf16, #tpu.memory_space<vmem>>, %arg4: memref<2x16x1xf32, #tpu.memory_space<vmem>>, %arg5: memref<4x32x288xbf16, #tpu.memory_space<vmem>>, %arg6: memref<2x32x1xf32, #tpu.memory_space<vmem>>, %arg7: memref<2x32x1xf32, #tpu.memory_space<vmem>>, %arg8: memref<4x512xbf16, #tpu.memory_space<vmem>>) attributes {dimension_semantics = [#tpu.dimension_semantics<parallel>], iteration_bounds = array<i64: 1>, scalar_prefetch = 0 : i64, scratch_operands = 0 : i64, tpu.core_type = #tpu.core_type<tc>, window_params = [{transform_indices = @transform_0, window_bounds = array<i64: 4, 512>}, {pipeline_mode = #tpu.pipeline_mode<synchronous>, transform_indices = @transform_1, window_bounds = array<i64: 9, 1, 512>}, {pipeline_mode = #tpu.pipeline_mode<synchronous>, transform_indices = @transform_2, window_bounds = array<i64: 2, 16, 16>}, {pipeline_mode = #tpu.pipeline_mode<synchronous>, transform_indices = @transform_3, window_bounds = array<i64: 2, 16, 1>}, {pipeline_mode = #tpu.pipeline_mode<synchronous>, transform_indices = @transform_4, window_bounds = array<i64: 4, 32, 288>}, {pipeline_mode = #tpu.pipeline_mode<synchronous>, transform_indices = @transform_5, window_bounds = array<i64: 2, 32, 1>}, {pipeline_mode = #tpu.pipeline_mode<synchronous>, transform_indices = @transform_6, window_bounds = array<i64: 2, 32, 1>}, {transform_indices = @transform_7, window_bounds = array<i64: 4, 512>}]} {
    %c0 = arith.constant 0 : index
    %c0_0 = arith.constant 0 : index
    %c0_1 = arith.constant 0 : index
    %0 = vector.load %arg2[%c0, %c0_0, %c0_1] : memref<9x1x512xf32, #tpu.memory_space<vmem>>, vector<1x1x512xf32>
    %1 = vector.shape_cast %0 : vector<1x1x512xf32> to vector<1x512xf32>
    %2 = vector.shape_cast %1 : vector<1x512xf32> to vector<1x512xf32>
    %3 = vector.broadcast %2 : vector<1x512xf32> to vector<32x512xf32>
    %c1 = arith.constant 1 : index
    %c0_2 = arith.constant 0 : index
    %c0_3 = arith.constant 0 : index
    %4 = vector.load %arg2[%c1, %c0_2, %c0_3] : memref<9x1x512xf32, #tpu.memory_space<vmem>>, vector<1x1x512xf32>
    %5 = vector.shape_cast %4 : vector<1x1x512xf32> to vector<1x512xf32>
    %6 = vector.shape_cast %5 : vector<1x512xf32> to vector<1x512xf32>
    %7 = vector.broadcast %6 : vector<1x512xf32> to vector<32x512xf32>
    %c2 = arith.constant 2 : index
    %c0_4 = arith.constant 0 : index
    %c0_5 = arith.constant 0 : index
    %8 = vector.load %arg2[%c2, %c0_4, %c0_5] : memref<9x1x512xf32, #tpu.memory_space<vmem>>, vector<1x1x512xf32>
    %9 = vector.shape_cast %8 : vector<1x1x512xf32> to vector<1x512xf32>
    %10 = vector.shape_cast %9 : vector<1x512xf32> to vector<1x512xf32>
    %11 = vector.broadcast %10 : vector<1x512xf32> to vector<32x512xf32>
    %c3 = arith.constant 3 : index
    %c0_6 = arith.constant 0 : index
    %c0_7 = arith.constant 0 : index
    %12 = vector.load %arg2[%c3, %c0_6, %c0_7] : memref<9x1x512xf32, #tpu.memory_space<vmem>>, vector<1x1x512xf32>
    %13 = vector.shape_cast %12 : vector<1x1x512xf32> to vector<1x512xf32>
    %14 = vector.shape_cast %13 : vector<1x512xf32> to vector<1x512xf32>
    %15 = vector.broadcast %14 : vector<1x512xf32> to vector<32x512xf32>
    %c5 = arith.constant 5 : index
    %c0_8 = arith.constant 0 : index
    %c0_9 = arith.constant 0 : index
    %16 = vector.load %arg2[%c5, %c0_8, %c0_9] : memref<9x1x512xf32, #tpu.memory_space<vmem>>, vector<1x1x512xf32>
    %17 = vector.shape_cast %16 : vector<1x1x512xf32> to vector<1x512xf32>
    %18 = vector.shape_cast %17 : vector<1x512xf32> to vector<1x512xf32>
    %19 = vector.broadcast %18 : vector<1x512xf32> to vector<32x512xf32>
    %c6 = arith.constant 6 : index
    %c0_10 = arith.constant 0 : index
    %c0_11 = arith.constant 0 : index
    %20 = vector.load %arg2[%c6, %c0_10, %c0_11] : memref<9x1x512xf32, #tpu.memory_space<vmem>>, vector<1x1x512xf32>
    %21 = vector.shape_cast %20 : vector<1x1x512xf32> to vector<1x512xf32>
    %22 = vector.shape_cast %21 : vector<1x512xf32> to vector<1x512xf32>
    %23 = vector.broadcast %22 : vector<1x512xf32> to vector<32x512xf32>
    %c7 = arith.constant 7 : index
    %c0_12 = arith.constant 0 : index
    %c0_13 = arith.constant 0 : index
    %24 = vector.load %arg2[%c7, %c0_12, %c0_13] : memref<9x1x512xf32, #tpu.memory_space<vmem>>, vector<1x1x512xf32>
    %25 = vector.shape_cast %24 : vector<1x1x512xf32> to vector<1x512xf32>
    %26 = vector.shape_cast %25 : vector<1x512xf32> to vector<1x512xf32>
    %27 = vector.broadcast %26 : vector<1x512xf32> to vector<32x512xf32>
    %c8 = arith.constant 8 : index
    %c0_14 = arith.constant 0 : index
    %c0_15 = arith.constant 0 : index
    %28 = vector.load %arg2[%c8, %c0_14, %c0_15] : memref<9x1x512xf32, #tpu.memory_space<vmem>>, vector<1x1x512xf32>
    %29 = vector.shape_cast %28 : vector<1x1x512xf32> to vector<1x512xf32>
    %30 = vector.shape_cast %29 : vector<1x512xf32> to vector<1x512xf32>
    %31 = vector.broadcast %30 : vector<1x512xf32> to vector<32x512xf32>
    %c0_16 = arith.constant 0 : index
    %c0_17 = arith.constant 0 : index
    %32 = vector.load %arg1[%c0_16, %c0_17] : memref<4x512xbf16, #tpu.memory_space<vmem>>, vector<4x512xbf16>
    %c0_18 = arith.constant 0 : index
    %c0_19 = arith.constant 0 : index
    %c0_20 = arith.constant 0 : index
    %33 = vector.load %arg3[%c0_18, %c0_19, %c0_20] : memref<2x16x16xbf16, #tpu.memory_space<vmem>>, vector<1x16x4xbf16>
    %34 = vector.shape_cast %33 : vector<1x16x4xbf16> to vector<16x4xbf16>
    %cst = arith.constant dense<0.000000e+00> : vector<16x512xf32>
    %35 = tpu.matmul %34, %32, %cst {dimension_numbers = #tpu.dot_dimension_numbers<[1], [0], [0], [1], [0, 0, 1, 1], [], []>} : vector<16x4xbf16>, vector<4x512xbf16>, vector<16x512xf32> -> vector<16x512xf32>
    %c0_21 = arith.constant 0 : index
    %c0_22 = arith.constant 0 : index
    %c0_23 = arith.constant 0 : index
    %36 = vector.load %arg4[%c0_21, %c0_22, %c0_23] : memref<2x16x1xf32, #tpu.memory_space<vmem>>, vector<1x16x1xf32>
    %37 = vector.shape_cast %36 : vector<1x16x1xf32> to vector<16x1xf32>
    %38 = vector.broadcast %37 : vector<16x1xf32> to vector<16x512xf32>
    %39 = arith.addf %35, %38 : vector<16x512xf32>
    %cst_24 = arith.constant 0.000000e+00 : f32
    %40 = vector.broadcast %cst_24 : f32 to vector<16x512xf32>
    %41 = arith.maximumf %39, %40 : vector<16x512xf32>
    %42 = arith.truncf %41 : vector<16x512xf32> to vector<16x512xbf16>
    %c1_25 = arith.constant 1 : index
    %c0_26 = arith.constant 0 : index
    %c0_27 = arith.constant 0 : index
    %43 = vector.load %arg3[%c1_25, %c0_26, %c0_27] : memref<2x16x16xbf16, #tpu.memory_space<vmem>>, vector<1x16x16xbf16>
    %44 = vector.shape_cast %43 : vector<1x16x16xbf16> to vector<16x16xbf16>
    %cst_28 = arith.constant dense<0.000000e+00> : vector<16x512xf32>
    %45 = tpu.matmul %44, %42, %cst_28 {dimension_numbers = #tpu.dot_dimension_numbers<[1], [0], [0], [1], [0, 0, 1, 1], [], []>} : vector<16x16xbf16>, vector<16x512xbf16>, vector<16x512xf32> -> vector<16x512xf32>
    %c1_29 = arith.constant 1 : index
    %c0_30 = arith.constant 0 : index
    %c0_31 = arith.constant 0 : index
    %46 = vector.load %arg4[%c1_29, %c0_30, %c0_31] : memref<2x16x1xf32, #tpu.memory_space<vmem>>, vector<1x16x1xf32>
    %47 = vector.shape_cast %46 : vector<1x16x1xf32> to vector<16x1xf32>
    %48 = vector.broadcast %47 : vector<16x1xf32> to vector<16x512xf32>
    %49 = arith.addf %45, %48 : vector<16x512xf32>
    %cst_32 = arith.constant 0.000000e+00 : f32
    %50 = vector.broadcast %cst_32 : f32 to vector<16x512xf32>
    %51 = arith.maximumf %49, %50 : vector<16x512xf32>
    %c0_33 = arith.constant 0 : index
    %c0_34 = arith.constant 0 : index
    %c0_35 = arith.constant 0 : index
    %52 = vector.load %arg5[%c0_33, %c0_34, %c0_35] : memref<4x32x288xbf16, #tpu.memory_space<vmem>>, vector<1x32x144xbf16>
    %53 = vector.shape_cast %52 : vector<1x32x144xbf16> to vector<32x144xbf16>
    %c17_i32 = arith.constant 17 : i32
    %54 = tpu.dynamic_rotate %51 by %c17_i32 dim 1 : vector<16x512xf32>, i32 -> vector<16x512xf32>
    %55 = vector.extract_strided_slice %3 {offsets = [0, 0], sizes = [16, 512], strides = [1, 1]} : vector<32x512xf32> to vector<16x512xf32>
    %56 = arith.mulf %54, %55 : vector<16x512xf32>
    %57 = arith.truncf %56 : vector<16x512xf32> to vector<16x512xbf16>
    %c16_i32 = arith.constant 16 : i32
    %58 = tpu.dynamic_rotate %51 by %c16_i32 dim 1 : vector<16x512xf32>, i32 -> vector<16x512xf32>
    %59 = vector.extract_strided_slice %7 {offsets = [0, 0], sizes = [16, 512], strides = [1, 1]} : vector<32x512xf32> to vector<16x512xf32>
    %60 = arith.mulf %58, %59 : vector<16x512xf32>
    %61 = arith.truncf %60 : vector<16x512xf32> to vector<16x512xbf16>
    %c15_i32 = arith.constant 15 : i32
    %62 = tpu.dynamic_rotate %51 by %c15_i32 dim 1 : vector<16x512xf32>, i32 -> vector<16x512xf32>
    %63 = vector.extract_strided_slice %11 {offsets = [0, 0], sizes = [16, 512], strides = [1, 1]} : vector<32x512xf32> to vector<16x512xf32>
    %64 = arith.mulf %62, %63 : vector<16x512xf32>
    %65 = arith.truncf %64 : vector<16x512xf32> to vector<16x512xbf16>
    %c1_i32 = arith.constant 1 : i32
    %66 = tpu.dynamic_rotate %51 by %c1_i32 dim 1 : vector<16x512xf32>, i32 -> vector<16x512xf32>
    %67 = vector.extract_strided_slice %15 {offsets = [0, 0], sizes = [16, 512], strides = [1, 1]} : vector<32x512xf32> to vector<16x512xf32>
    %68 = arith.mulf %66, %67 : vector<16x512xf32>
    %69 = arith.truncf %68 : vector<16x512xf32> to vector<16x512xbf16>
    %70 = arith.truncf %51 : vector<16x512xf32> to vector<16x512xbf16>
    %c511_i32 = arith.constant 511 : i32
    %71 = tpu.dynamic_rotate %51 by %c511_i32 dim 1 : vector<16x512xf32>, i32 -> vector<16x512xf32>
    %72 = vector.extract_strided_slice %19 {offsets = [0, 0], sizes = [16, 512], strides = [1, 1]} : vector<32x512xf32> to vector<16x512xf32>
    %73 = arith.mulf %71, %72 : vector<16x512xf32>
    %74 = arith.truncf %73 : vector<16x512xf32> to vector<16x512xbf16>
    %c497_i32 = arith.constant 497 : i32
    %75 = tpu.dynamic_rotate %51 by %c497_i32 dim 1 : vector<16x512xf32>, i32 -> vector<16x512xf32>
    %76 = vector.extract_strided_slice %23 {offsets = [0, 0], sizes = [16, 512], strides = [1, 1]} : vector<32x512xf32> to vector<16x512xf32>
    %77 = arith.mulf %75, %76 : vector<16x512xf32>
    %78 = arith.truncf %77 : vector<16x512xf32> to vector<16x512xbf16>
    %c496_i32 = arith.constant 496 : i32
    %79 = tpu.dynamic_rotate %51 by %c496_i32 dim 1 : vector<16x512xf32>, i32 -> vector<16x512xf32>
    %80 = vector.extract_strided_slice %27 {offsets = [0, 0], sizes = [16, 512], strides = [1, 1]} : vector<32x512xf32> to vector<16x512xf32>
    %81 = arith.mulf %79, %80 : vector<16x512xf32>
    %82 = arith.truncf %81 : vector<16x512xf32> to vector<16x512xbf16>
    %c495_i32 = arith.constant 495 : i32
    %83 = tpu.dynamic_rotate %51 by %c495_i32 dim 1 : vector<16x512xf32>, i32 -> vector<16x512xf32>
    %84 = vector.extract_strided_slice %31 {offsets = [0, 0], sizes = [16, 512], strides = [1, 1]} : vector<32x512xf32> to vector<16x512xf32>
    %85 = arith.mulf %83, %84 : vector<16x512xf32>
    %86 = arith.truncf %85 : vector<16x512xf32> to vector<16x512xbf16>
    %87 = tpu.concatenate %57, %61, %65, %69, %70, %74, %78, %82, %86 in 0 : vector<16x512xbf16>, vector<16x512xbf16>, vector<16x512xbf16>, vector<16x512xbf16>, vector<16x512xbf16>, vector<16x512xbf16>, vector<16x512xbf16>, vector<16x512xbf16>, vector<16x512xbf16> -> vector<144x512xbf16>
    %cst_36 = arith.constant dense<0.000000e+00> : vector<32x512xf32>
    %88 = tpu.matmul %53, %87, %cst_36 {dimension_numbers = #tpu.dot_dimension_numbers<[1], [0], [0], [1], [0, 0, 1, 1], [], []>} : vector<32x144xbf16>, vector<144x512xbf16>, vector<32x512xf32> -> vector<32x512xf32>
    %cst_37 = arith.constant 0.000000e+00 : f32
    %89 = vector.broadcast %cst_37 : f32 to vector<32x512xf32>
    %90 = arith.maximumf %88, %89 : vector<32x512xf32>
    %c1_38 = arith.constant 1 : index
    %c0_39 = arith.constant 0 : index
    %c0_40 = arith.constant 0 : index
    %91 = vector.load %arg5[%c1_38, %c0_39, %c0_40] : memref<4x32x288xbf16, #tpu.memory_space<vmem>>, vector<1x32x288xbf16>
    %92 = vector.shape_cast %91 : vector<1x32x288xbf16> to vector<32x288xbf16>
    %c0_41 = arith.constant 0 : index
    %c0_42 = arith.constant 0 : index
    %c0_43 = arith.constant 0 : index
    %93 = vector.load %arg6[%c0_41, %c0_42, %c0_43] : memref<2x32x1xf32, #tpu.memory_space<vmem>>, vector<1x32x1xf32>
    %94 = vector.shape_cast %93 : vector<1x32x1xf32> to vector<32x1xf32>
    %c0_44 = arith.constant 0 : index
    %c0_45 = arith.constant 0 : index
    %c0_46 = arith.constant 0 : index
    %95 = vector.load %arg7[%c0_44, %c0_45, %c0_46] : memref<2x32x1xf32, #tpu.memory_space<vmem>>, vector<1x32x1xf32>
    %96 = vector.shape_cast %95 : vector<1x32x1xf32> to vector<32x1xf32>
    %c17_i32_47 = arith.constant 17 : i32
    %97 = tpu.dynamic_rotate %90 by %c17_i32_47 dim 1 : vector<32x512xf32>, i32 -> vector<32x512xf32>
    %98 = arith.mulf %97, %3 : vector<32x512xf32>
    %99 = arith.truncf %98 : vector<32x512xf32> to vector<32x512xbf16>
    %c16_i32_48 = arith.constant 16 : i32
    %100 = tpu.dynamic_rotate %90 by %c16_i32_48 dim 1 : vector<32x512xf32>, i32 -> vector<32x512xf32>
    %101 = arith.mulf %100, %7 : vector<32x512xf32>
    %102 = arith.truncf %101 : vector<32x512xf32> to vector<32x512xbf16>
    %c15_i32_49 = arith.constant 15 : i32
    %103 = tpu.dynamic_rotate %90 by %c15_i32_49 dim 1 : vector<32x512xf32>, i32 -> vector<32x512xf32>
    %104 = arith.mulf %103, %11 : vector<32x512xf32>
    %105 = arith.truncf %104 : vector<32x512xf32> to vector<32x512xbf16>
    %c1_i32_50 = arith.constant 1 : i32
    %106 = tpu.dynamic_rotate %90 by %c1_i32_50 dim 1 : vector<32x512xf32>, i32 -> vector<32x512xf32>
    %107 = arith.mulf %106, %15 : vector<32x512xf32>
    %108 = arith.truncf %107 : vector<32x512xf32> to vector<32x512xbf16>
    %109 = arith.truncf %90 : vector<32x512xf32> to vector<32x512xbf16>
    %c511_i32_51 = arith.constant 511 : i32
    %110 = tpu.dynamic_rotate %90 by %c511_i32_51 dim 1 : vector<32x512xf32>, i32 -> vector<32x512xf32>
    %111 = arith.mulf %110, %19 : vector<32x512xf32>
    %112 = arith.truncf %111 : vector<32x512xf32> to vector<32x512xbf16>
    %c497_i32_52 = arith.constant 497 : i32
    %113 = tpu.dynamic_rotate %90 by %c497_i32_52 dim 1 : vector<32x512xf32>, i32 -> vector<32x512xf32>
    %114 = arith.mulf %113, %23 : vector<32x512xf32>
    %115 = arith.truncf %114 : vector<32x512xf32> to vector<32x512xbf16>
    %c496_i32_53 = arith.constant 496 : i32
    %116 = tpu.dynamic_rotate %90 by %c496_i32_53 dim 1 : vector<32x512xf32>, i32 -> vector<32x512xf32>
    %117 = arith.mulf %116, %27 : vector<32x512xf32>
    %118 = arith.truncf %117 : vector<32x512xf32> to vector<32x512xbf16>
    %c495_i32_54 = arith.constant 495 : i32
    %119 = tpu.dynamic_rotate %90 by %c495_i32_54 dim 1 : vector<32x512xf32>, i32 -> vector<32x512xf32>
    %120 = arith.mulf %119, %31 : vector<32x512xf32>
    %121 = arith.truncf %120 : vector<32x512xf32> to vector<32x512xbf16>
    %122 = tpu.concatenate %99, %102, %105, %108, %109, %112, %115, %118, %121 in 0 : vector<32x512xbf16>, vector<32x512xbf16>, vector<32x512xbf16>, vector<32x512xbf16>, vector<32x512xbf16>, vector<32x512xbf16>, vector<32x512xbf16>, vector<32x512xbf16>, vector<32x512xbf16> -> vector<288x512xbf16>
    %cst_55 = arith.constant dense<0.000000e+00> : vector<32x512xf32>
    %123 = tpu.matmul %92, %122, %cst_55 {dimension_numbers = #tpu.dot_dimension_numbers<[1], [0], [0], [1], [0, 0, 1, 1], [], []>} : vector<32x288xbf16>, vector<288x512xbf16>, vector<32x512xf32> -> vector<32x512xf32>
    %124 = vector.broadcast %94 : vector<32x1xf32> to vector<32x512xf32>
    %125 = arith.mulf %123, %124 : vector<32x512xf32>
    %126 = vector.broadcast %96 : vector<32x1xf32> to vector<32x512xf32>
    %127 = arith.addf %125, %126 : vector<32x512xf32>
    %cst_56 = arith.constant 0.000000e+00 : f32
    %128 = vector.broadcast %cst_56 : f32 to vector<32x512xf32>
    %129 = arith.maximumf %127, %128 : vector<32x512xf32>
    %c2_57 = arith.constant 2 : index
    %c0_58 = arith.constant 0 : index
    %c0_59 = arith.constant 0 : index
    %130 = vector.load %arg5[%c2_57, %c0_58, %c0_59] : memref<4x32x288xbf16, #tpu.memory_space<vmem>>, vector<1x32x288xbf16>
    %131 = vector.shape_cast %130 : vector<1x32x288xbf16> to vector<32x288xbf16>
    %c1_60 = arith.constant 1 : index
    %c0_61 = arith.constant 0 : index
    %c0_62 = arith.constant 0 : index
    %132 = vector.load %arg6[%c1_60, %c0_61, %c0_62] : memref<2x32x1xf32, #tpu.memory_space<vmem>>, vector<1x32x1xf32>
    %133 = vector.shape_cast %132 : vector<1x32x1xf32> to vector<32x1xf32>
    %c1_63 = arith.constant 1 : index
    %c0_64 = arith.constant 0 : index
    %c0_65 = arith.constant 0 : index
    %134 = vector.load %arg7[%c1_63, %c0_64, %c0_65] : memref<2x32x1xf32, #tpu.memory_space<vmem>>, vector<1x32x1xf32>
    %135 = vector.shape_cast %134 : vector<1x32x1xf32> to vector<32x1xf32>
    %c17_i32_66 = arith.constant 17 : i32
    %136 = tpu.dynamic_rotate %129 by %c17_i32_66 dim 1 : vector<32x512xf32>, i32 -> vector<32x512xf32>
    %137 = arith.mulf %136, %3 : vector<32x512xf32>
    %138 = arith.truncf %137 : vector<32x512xf32> to vector<32x512xbf16>
    %c16_i32_67 = arith.constant 16 : i32
    %139 = tpu.dynamic_rotate %129 by %c16_i32_67 dim 1 : vector<32x512xf32>, i32 -> vector<32x512xf32>
    %140 = arith.mulf %139, %7 : vector<32x512xf32>
    %141 = arith.truncf %140 : vector<32x512xf32> to vector<32x512xbf16>
    %c15_i32_68 = arith.constant 15 : i32
    %142 = tpu.dynamic_rotate %129 by %c15_i32_68 dim 1 : vector<32x512xf32>, i32 -> vector<32x512xf32>
    %143 = arith.mulf %142, %11 : vector<32x512xf32>
    %144 = arith.truncf %143 : vector<32x512xf32> to vector<32x512xbf16>
    %c1_i32_69 = arith.constant 1 : i32
    %145 = tpu.dynamic_rotate %129 by %c1_i32_69 dim 1 : vector<32x512xf32>, i32 -> vector<32x512xf32>
    %146 = arith.mulf %145, %15 : vector<32x512xf32>
    %147 = arith.truncf %146 : vector<32x512xf32> to vector<32x512xbf16>
    %148 = arith.truncf %129 : vector<32x512xf32> to vector<32x512xbf16>
    %c511_i32_70 = arith.constant 511 : i32
    %149 = tpu.dynamic_rotate %129 by %c511_i32_70 dim 1 : vector<32x512xf32>, i32 -> vector<32x512xf32>
    %150 = arith.mulf %149, %19 : vector<32x512xf32>
    %151 = arith.truncf %150 : vector<32x512xf32> to vector<32x512xbf16>
    %c497_i32_71 = arith.constant 497 : i32
    %152 = tpu.dynamic_rotate %129 by %c497_i32_71 dim 1 : vector<32x512xf32>, i32 -> vector<32x512xf32>
    %153 = arith.mulf %152, %23 : vector<32x512xf32>
    %154 = arith.truncf %153 : vector<32x512xf32> to vector<32x512xbf16>
    %c496_i32_72 = arith.constant 496 : i32
    %155 = tpu.dynamic_rotate %129 by %c496_i32_72 dim 1 : vector<32x512xf32>, i32 -> vector<32x512xf32>
    %156 = arith.mulf %155, %27 : vector<32x512xf32>
    %157 = arith.truncf %156 : vector<32x512xf32> to vector<32x512xbf16>
    %c495_i32_73 = arith.constant 495 : i32
    %158 = tpu.dynamic_rotate %129 by %c495_i32_73 dim 1 : vector<32x512xf32>, i32 -> vector<32x512xf32>
    %159 = arith.mulf %158, %31 : vector<32x512xf32>
    %160 = arith.truncf %159 : vector<32x512xf32> to vector<32x512xbf16>
    %161 = tpu.concatenate %138, %141, %144, %147, %148, %151, %154, %157, %160 in 0 : vector<32x512xbf16>, vector<32x512xbf16>, vector<32x512xbf16>, vector<32x512xbf16>, vector<32x512xbf16>, vector<32x512xbf16>, vector<32x512xbf16>, vector<32x512xbf16>, vector<32x512xbf16> -> vector<288x512xbf16>
    %cst_74 = arith.constant dense<0.000000e+00> : vector<32x512xf32>
    %162 = tpu.matmul %131, %161, %cst_74 {dimension_numbers = #tpu.dot_dimension_numbers<[1], [0], [0], [1], [0, 0, 1, 1], [], []>} : vector<32x288xbf16>, vector<288x512xbf16>, vector<32x512xf32> -> vector<32x512xf32>
    %163 = vector.broadcast %133 : vector<32x1xf32> to vector<32x512xf32>
    %164 = arith.mulf %162, %163 : vector<32x512xf32>
    %165 = vector.broadcast %135 : vector<32x1xf32> to vector<32x512xf32>
    %166 = arith.addf %164, %165 : vector<32x512xf32>
    %cst_75 = arith.constant 0.000000e+00 : f32
    %167 = vector.broadcast %cst_75 : f32 to vector<32x512xf32>
    %168 = arith.maximumf %166, %167 : vector<32x512xf32>
    %c3_76 = arith.constant 3 : index
    %c0_77 = arith.constant 0 : index
    %c0_78 = arith.constant 0 : index
    %169 = vector.load %arg5[%c3_76, %c0_77, %c0_78] : memref<4x32x288xbf16, #tpu.memory_space<vmem>>, vector<1x4x288xbf16>
    %170 = vector.shape_cast %169 : vector<1x4x288xbf16> to vector<4x288xbf16>
    %c17_i32_79 = arith.constant 17 : i32
    %171 = tpu.dynamic_rotate %168 by %c17_i32_79 dim 1 : vector<32x512xf32>, i32 -> vector<32x512xf32>
    %172 = arith.mulf %171, %3 : vector<32x512xf32>
    %173 = arith.truncf %172 : vector<32x512xf32> to vector<32x512xbf16>
    %c16_i32_80 = arith.constant 16 : i32
    %174 = tpu.dynamic_rotate %168 by %c16_i32_80 dim 1 : vector<32x512xf32>, i32 -> vector<32x512xf32>
    %175 = arith.mulf %174, %7 : vector<32x512xf32>
    %176 = arith.truncf %175 : vector<32x512xf32> to vector<32x512xbf16>
    %c15_i32_81 = arith.constant 15 : i32
    %177 = tpu.dynamic_rotate %168 by %c15_i32_81 dim 1 : vector<32x512xf32>, i32 -> vector<32x512xf32>
    %178 = arith.mulf %177, %11 : vector<32x512xf32>
    %179 = arith.truncf %178 : vector<32x512xf32> to vector<32x512xbf16>
    %c1_i32_82 = arith.constant 1 : i32
    %180 = tpu.dynamic_rotate %168 by %c1_i32_82 dim 1 : vector<32x512xf32>, i32 -> vector<32x512xf32>
    %181 = arith.mulf %180, %15 : vector<32x512xf32>
    %182 = arith.truncf %181 : vector<32x512xf32> to vector<32x512xbf16>
    %183 = arith.truncf %168 : vector<32x512xf32> to vector<32x512xbf16>
    %c511_i32_83 = arith.constant 511 : i32
    %184 = tpu.dynamic_rotate %168 by %c511_i32_83 dim 1 : vector<32x512xf32>, i32 -> vector<32x512xf32>
    %185 = arith.mulf %184, %19 : vector<32x512xf32>
    %186 = arith.truncf %185 : vector<32x512xf32> to vector<32x512xbf16>
    %c497_i32_84 = arith.constant 497 : i32
    %187 = tpu.dynamic_rotate %168 by %c497_i32_84 dim 1 : vector<32x512xf32>, i32 -> vector<32x512xf32>
    %188 = arith.mulf %187, %23 : vector<32x512xf32>
    %189 = arith.truncf %188 : vector<32x512xf32> to vector<32x512xbf16>
    %c496_i32_85 = arith.constant 496 : i32
    %190 = tpu.dynamic_rotate %168 by %c496_i32_85 dim 1 : vector<32x512xf32>, i32 -> vector<32x512xf32>
    %191 = arith.mulf %190, %27 : vector<32x512xf32>
    %192 = arith.truncf %191 : vector<32x512xf32> to vector<32x512xbf16>
    %c495_i32_86 = arith.constant 495 : i32
    %193 = tpu.dynamic_rotate %168 by %c495_i32_86 dim 1 : vector<32x512xf32>, i32 -> vector<32x512xf32>
    %194 = arith.mulf %193, %31 : vector<32x512xf32>
    %195 = arith.truncf %194 : vector<32x512xf32> to vector<32x512xbf16>
    %196 = tpu.concatenate %173, %176, %179, %182, %183, %186, %189, %192, %195 in 0 : vector<32x512xbf16>, vector<32x512xbf16>, vector<32x512xbf16>, vector<32x512xbf16>, vector<32x512xbf16>, vector<32x512xbf16>, vector<32x512xbf16>, vector<32x512xbf16>, vector<32x512xbf16> -> vector<288x512xbf16>
    %cst_87 = arith.constant dense<0.000000e+00> : vector<4x512xf32>
    %197 = tpu.matmul %170, %196, %cst_87 {dimension_numbers = #tpu.dot_dimension_numbers<[1], [0], [0], [1], [0, 0, 1, 1], [], []>} : vector<4x288xbf16>, vector<288x512xbf16>, vector<4x512xf32> -> vector<4x512xf32>
    %198 = arith.truncf %197 : vector<4x512xf32> to vector<4x512xbf16>
    %c0_88 = arith.constant 0 : index
    %c0_89 = arith.constant 0 : index
    %199 = vector.load %arg8[%c0_88, %c0_89] : memref<4x512xbf16, #tpu.memory_space<vmem>>, vector<4x512xbf16>
    tpu.vector_store %arg8[%c0_88, %c0_89], %198 {strides = array<i32>} : memref<4x512xbf16, #tpu.memory_space<vmem>>, vector<4x512xbf16>,
    return
  }
  func.func @transform_0(%arg0: i32) -> (i32, i32) {
    %c0_i32 = arith.constant 0 : i32
    %c0_i32_0 = arith.constant 0 : i32
    return %c0_i32, %arg0 : i32, i32
  }
  func.func @transform_1(%arg0: i32) -> (i32, i32, i32) {
    %c0_i32 = arith.constant 0 : i32
    %c0_i32_0 = arith.constant 0 : i32
    %c0_i32_1 = arith.constant 0 : i32
    %c0_i32_2 = arith.constant 0 : i32
    return %c0_i32, %c0_i32_0, %c0_i32_1 : i32, i32, i32
  }
  func.func @transform_2(%arg0: i32) -> (i32, i32, i32) {
    %c0_i32 = arith.constant 0 : i32
    %c0_i32_0 = arith.constant 0 : i32
    %c0_i32_1 = arith.constant 0 : i32
    %c0_i32_2 = arith.constant 0 : i32
    return %c0_i32, %c0_i32_0, %c0_i32_1 : i32, i32, i32
  }
  func.func @transform_3(%arg0: i32) -> (i32, i32, i32) {
    %c0_i32 = arith.constant 0 : i32
    %c0_i32_0 = arith.constant 0 : i32
    %c0_i32_1 = arith.constant 0 : i32
    %c0_i32_2 = arith.constant 0 : i32
    return %c0_i32, %c0_i32_0, %c0_i32_1 : i32, i32, i32
  }
  func.func @transform_4(%arg0: i32) -> (i32, i32, i32) {
    %c0_i32 = arith.constant 0 : i32
    %c0_i32_0 = arith.constant 0 : i32
    %c0_i32_1 = arith.constant 0 : i32
    %c0_i32_2 = arith.constant 0 : i32
    return %c0_i32, %c0_i32_0, %c0_i32_1 : i32, i32, i32
  }
  func.func @transform_5(%arg0: i32) -> (i32, i32, i32) {
    %c0_i32 = arith.constant 0 : i32
    %c0_i32_0 = arith.constant 0 : i32
    %c0_i32_1 = arith.constant 0 : i32
    %c0_i32_2 = arith.constant 0 : i32
    return %c0_i32, %c0_i32_0, %c0_i32_1 : i32, i32, i32
  }
  func.func @transform_6(%arg0: i32) -> (i32, i32, i32) {
    %c0_i32 = arith.constant 0 : i32
    %c0_i32_0 = arith.constant 0 : i32
    %c0_i32_1 = arith.constant 0 : i32
    %c0_i32_2 = arith.constant 0 : i32
    return %c0_i32, %c0_i32_0, %c0_i32_1 : i32, i32, i32
  }
  func.func @transform_7(%arg0: i32) -> (i32, i32) {
    %c0_i32 = arith.constant 0 : i32
    %c0_i32_0 = arith.constant 0 : i32
    return %c0_i32, %arg0 : i32, i32
  }
}

</mosaic_0001>

<llo_original>
// kernel: tpu_custom_call.1
$region0: #{tpu_custom_call.1}
  #allocation0 [shape = 'u32[]', space=smem, size = 0x4, offset = 0x4, fixed_abs, tag = 'smem constant byte address 0x4 - core index']
  #allocation1 [shape = 'u32[144,128]{1,0:T(1,128)}', space=vmem, size = 0x12000, scoped, tag = 'internal scratch']
  %s0 = inlined_call_operand.hbm [shape: f32[8,128], index: 0, kind: input, shape index: {}]
  %s1 = inlined_call_operand.hbm [shape: f32[8,128], index: 1, kind: output, shape index: {}]
  %s2 = sld [smem:[#allocation0]]
  $region18: #{tpu_custom_call.1} parent=0
    _
  %s4 = ssub.s32 1, %s2
  %s5 = scalar_select 0, %s4, %s2
  $region1: #{tpu_custom_call.1} parent=0
    #allocation2 [shape = 'u8[4096]{0}', space=vmem, size = 0x1000, scoped, tag = 'input window, operand 0, single buffered']
    #allocation3 [shape = 's32[1]{0}', space=sflag, size = 0x4, scoped, tag = 'scoped memory for tpu_custom_call.1']
    #allocation4 [shape = 's32[1]{0}', space=sflag, size = 0x4, scoped, tag = 'scoped memory for tpu_custom_call.1']
    #allocation5 [shape = 'u8[4096]{0}', space=vmem, size = 0x1000, scoped, tag = 'output window, operand 0, single buffered']
    %6 = vsyncpa [#allocation3], 0
    %7 = vsyncpa [#allocation4], 0
    // Predicated region
    $region2: #{tpu_custom_call.1} parent=1 // pred_check
      _
    $region3: #{tpu_custom_call.1} parent=1 // pred_check_branch
      %9 = sbr.rel (0) target = $region5
    $region4: #{tpu_custom_call.1} parent=1 // pred_region
      %s11 = ssub.s32 128, 128
      %12 = vsyncadd [#allocation3], %s11
      %s14 = sshll.u32 [#allocation2], 4
      %s15 = int_to_ptr.vmem [resolvable:$true] %s14
      %17 = dma.hbm_to_vmem [thread:$0]  %s0, 128, %s15, [#allocation3]
    $region5: #{tpu_custom_call.1} parent=1 // pred_fallthru
      _
    // Predicated region
    $region6: #{tpu_custom_call.1} parent=1 // pred_check
      _
    $region7: #{tpu_custom_call.1} parent=1 // pred_check_branch
      %19 = sbr.rel (0) target = $region9
    $region8: #{tpu_custom_call.1} parent=1 // pred_region
      %20 = dma.done [#allocation3], 128
    $region9: #{tpu_custom_call.1} parent=1 // pred_fallthru
      _
    %v21 = vld [vmem:[#allocation2] sm:$0xff]
    %22 = vrot.lane.b32.xlu0 %v21, 1
    %v23 = vpop.permute.xlu0 %22
    %24 = vst [vmem:[#allocation5] sm:$0xff] %v23
    // Predicated region
    $region10: #{tpu_custom_call.1} parent=1 // pred_check
      _
    $region11: #{tpu_custom_call.1} parent=1 // pred_check_branch
      %26 = sbr.rel (0) target = $region13
    $region12: #{tpu_custom_call.1} parent=1 // pred_region
      %s28 = ssub.s32 128, 128
      %29 = vsyncadd [#allocation4], %s28
      %s31 = sshll.u32 [#allocation5], 4
      %s32 = int_to_ptr.vmem [resolvable:$true] %s31
      %34 = dma.vmem_to_hbm [thread:$0]  %s32, 128, %s1, [#allocation4]
    $region13: #{tpu_custom_call.1} parent=1 // pred_fallthru
      _
    // Predicated region
    $region14: #{tpu_custom_call.1} parent=1 // pred_check
      _
    $region15: #{tpu_custom_call.1} parent=1 // pred_check_branch
      %36 = sbr.rel (0) target = $region17
    $region16: #{tpu_custom_call.1} parent=1 // pred_region
      %37 = dma.done [#allocation4], 128
    $region17: #{tpu_custom_call.1} parent=1 // pred_fallthru
      _
    %38 = vsyncpa [#allocation3], 1
    %39 = vsyncpa [#allocation4], 1

// kernel: tpu_custom_call.1
$region0: #{tpu_custom_call.1}
  #allocation0 [shape = 'u32[]', space=smem, size = 0x4, offset = 0x4, fixed_abs, tag = 'smem constant byte address 0x4 - core index']
  #allocation1 [shape = 'u32[144,128]{1,0:T(1,128)}', space=vmem, size = 0x12000, scoped, tag = 'internal scratch']
  %s0 = inlined_call_operand.vmem [shape: bf16[4,512], index: 0, kind: input, shape index: {}]
  %s1 = inlined_call_operand.vmem [shape: f32[9,1,512], index: 1, kind: input, shape index: {}]
  %s2 = inlined_call_operand.vmem [shape: bf16[2,16,16], index: 2, kind: input, shape index: {}]
  %s3 = inlined_call_operand.vmem [shape: f32[2,16,1], index: 3, kind: input, shape index: {}]
  %s4 = inlined_call_operand.hbm [shape: bf16[4,32,288], index: 4, kind: input, shape index: {}]
  %s5 = inlined_call_operand.vmem [shape: f32[2,32,1], index: 5, kind: input, shape index: {}]
  %s6 = inlined_call_operand.vmem [shape: f32[2,32,1], index: 6, kind: input, shape index: {}]
  %s7 = inlined_call_operand.hbm [shape: bf16[4,512], index: 7, kind: output, shape index: {}]
  %s8 = sld [smem:[#allocation0]]
  $region42: #{tpu_custom_call.1} parent=0
    _
  %s10 = ssub.s32 1, %s8
  %s11 = scalar_select 0, %s10, %s8
  $region1: #{tpu_custom_call.1} parent=0
    #allocation2 [shape = 'u8[98304]{0}', space=vmem, size = 0x18000, scoped, tag = 'input window, operand 4, single buffered']
    #allocation3 [shape = 's32[1]{0}', space=sflag, size = 0x4, scoped, tag = 'scoped memory for tpu_custom_call.1']
    #allocation4 [shape = 's32[1]{0}', space=sflag, size = 0x4, scoped, tag = 'scoped memory for tpu_custom_call.1']
    #allocation5 [shape = 'u8[4096]{0}', space=vmem, size = 0x1000, scoped, tag = 'output window, operand 0, single buffered']
    %12 = vsyncpa [#allocation3], 0
    %13 = vsyncpa [#allocation4], 0
    // Predicated region
    $region2: #{tpu_custom_call.1} parent=1 // pred_check
      _
    $region3: #{tpu_custom_call.1} parent=1 // pred_check_branch
      %15 = sbr.rel (0) target = $region5
    $region4: #{tpu_custom_call.1} parent=1 // pred_region
      _
    $region5: #{tpu_custom_call.1} parent=1 // pred_fallthru
      _
    // Predicated region
    $region6: #{tpu_custom_call.1} parent=1 // pred_check
      _
    $region7: #{tpu_custom_call.1} parent=1 // pred_check_branch
      %17 = sbr.rel (0) target = $region9
    $region8: #{tpu_custom_call.1} parent=1 // pred_region
      _
    $region9: #{tpu_custom_call.1} parent=1 // pred_fallthru
      _
    // Predicated region
    $region10: #{tpu_custom_call.1} parent=1 // pred_check
      _
    $region11: #{tpu_custom_call.1} parent=1 // pred_check_branch
      %19 = sbr.rel (0) target = $region13
    $region12: #{tpu_custom_call.1} parent=1 // pred_region
      _
    $region13: #{tpu_custom_call.1} parent=1 // pred_fallthru
      _
    // Predicated region
    $region14: #{tpu_custom_call.1} parent=1 // pred_check
      _
    $region15: #{tpu_custom_call.1} parent=1 // pred_check_branch
      %21 = sbr.rel (0) target = $region17
    $region16: #{tpu_custom_call.1} parent=1 // pred_region
      _
    $region17: #{tpu_custom_call.1} parent=1 // pred_fallthru
      _
    // Predicated region
    $region18: #{tpu_custom_call.1} parent=1 // pred_check
      _
    $region19: #{tpu_custom_call.1} parent=1 // pred_check_branch
      %23 = sbr.rel (0) target = $region21
    $region20: #{tpu_custom_call.1} parent=1 // pred_region
      %s25 = ssub.s32 3072, 3072
      %26 = vsyncadd [#allocation3], %s25
      %s27 = sshll.u32 [#allocation2], 4
      %s28 = int_to_ptr.vmem [resolvable:$true] %s27
      %33 = dma.hbm_to_vmem [thread:$0]  %s4, 3072, %s28, [#allocation3], 192, 192, 12
    $region21: #{tpu_custom_call.1} parent=1 // pred_fallthru
      _
    // Predicated region
    $region22: #{tpu_custom_call.1} parent=1 // pred_check
      _
    $region23: #{tpu_custom_call.1} parent=1 // pred_check_branch
      %35 = sbr.rel (0) target = $region25
    $region24: #{tpu_custom_call.1} parent=1 // pred_region
      _
    $region25: #{tpu_custom_call.1} parent=1 // pred_fallthru
      _
    // Predicated region
    $region26: #{tpu_custom_call.1} parent=1 // pred_check
      _
    $region27: #{tpu_custom_call.1} parent=1 // pred_check_branch
      %37 = sbr.rel (0) target = $region29
    $region28: #{tpu_custom_call.1} parent=1 // pred_region
      _
    $region29: #{tpu_custom_call.1} parent=1 // pred_fallthru
      _
    // Predicated region
    $region30: #{tpu_custom_call.1} parent=1 // pred_check
      _
    $region31: #{tpu_custom_call.1} parent=1 // pred_check_branch
      %39 = sbr.rel (0) target = $region33
    $region32: #{tpu_custom_call.1} parent=1 // pred_region
      %40 = dma.done [#allocation3], 3072
    $region33: #{tpu_custom_call.1} parent=1 // pred_fallthru
      _
    %v42 = vld [vmem:[%s1] sm:$0xf]
    %v44 = vlaneseq
    %v45 = vshrl.u32 %v44, 7
    %v46 = vsub.s32 0, %v45
    %v47 = vrot.slane %v42, %v46
    %v48 = vlaneseq
    %v49 = vshrl.u32 %v48, 7
    %v50 = vsub.s32 1, %v49
    %v51 = vrot.slane %v42, %v50
    %v52 = vlaneseq
    %v53 = vshrl.u32 %v52, 7
    %v54 = vsub.s32 2, %v53
    %v55 = vrot.slane %v42, %v54
    %v56 = vlaneseq
    %v57 = vshrl.u32 %v56, 7
    %v58 = vsub.s32 3, %v57
    %v59 = vrot.slane %v42, %v58
    %s64 = scalar_lea.vmem %s1, 4
    %v65 = vld [vmem:[%s64] sm:$0xf]
    %v67 = vlaneseq
    %v68 = vshrl.u32 %v67, 7
    %v69 = vsub.s32 0, %v68
    %v70 = vrot.slane %v65, %v69
    %v71 = vlaneseq
    %v72 = vshrl.u32 %v71, 7
    %v73 = vsub.s32 1, %v72
    %v74 = vrot.slane %v65, %v73
    %v75 = vlaneseq
    %v76 = vshrl.u32 %v75, 7
    %v77 = vsub.s32 2, %v76
    %v78 = vrot.slane %v65, %v77
    %v79 = vlaneseq
    %v80 = vshrl.u32 %v79, 7
    %v81 = vsub.s32 3, %v80
    %v82 = vrot.slane %v65, %v81
    %s87 = scalar_lea.vmem %s1, 8
    %v88 = vld [vmem:[%s87] sm:$0xf]
    %v90 = vlaneseq
    %v91 = vshrl.u32 %v90, 7
    %v92 = vsub.s32 0, %v91
    %v93 = vrot.slane %v88, %v92
    %v94 = vlaneseq
    %v95 = vshrl.u32 %v94, 7
    %v96 = vsub.s32 1, %v95
    %v97 = vrot.slane %v88, %v96
    %v98 = vlaneseq
    %v99 = vshrl.u32 %v98, 7
    %v100 = vsub.s32 2, %v99
    %v101 = vrot.slane %v88, %v100
    %v102 = vlaneseq
    %v103 = vshrl.u32 %v102, 7
    %v104 = vsub.s32 3, %v103
    %v105 = vrot.slane %v88, %v104
    %s110 = scalar_lea.vmem %s1, 12
    %v111 = vld [vmem:[%s110] sm:$0xf]
    %v113 = vlaneseq
    %v114 = vshrl.u32 %v113, 7
    %v115 = vsub.s32 0, %v114
    %v116 = vrot.slane %v111, %v115
    %v117 = vlaneseq
    %v118 = vshrl.u32 %v117, 7
    %v119 = vsub.s32 1, %v118
    %v120 = vrot.slane %v111, %v119
    %v121 = vlaneseq
    %v122 = vshrl.u32 %v121, 7
    %v123 = vsub.s32 2, %v122
    %v124 = vrot.slane %v111, %v123
    %v125 = vlaneseq
    %v126 = vshrl.u32 %v125, 7
    %v127 = vsub.s32 3, %v126
    %v128 = vrot.slane %v111, %v127
    %s133 = scalar_lea.vmem %s1, 20
    %v134 = vld [vmem:[%s133] sm:$0xf]
    %v136 = vlaneseq
    %v137 = vshrl.u32 %v136, 7
    %v138 = vsub.s32 0, %v137
    %v139 = vrot.slane %v134, %v138
    %v140 = vlaneseq
    %v141 = vshrl.u32 %v140, 7
    %v142 = vsub.s32 1, %v141
    %v143 = vrot.slane %v134, %v142
    %v144 = vlaneseq
    %v145 = vshrl.u32 %v144, 7
    %v146 = vsub.s32 2, %v145
    %v147 = vrot.slane %v134, %v146
    %v148 = vlaneseq
    %v149 = vshrl.u32 %v148, 7
    %v150 = vsub.s32 3, %v149
    %v151 = vrot.slane %v134, %v150
    %s156 = scalar_lea.vmem %s1, 24
    %v157 = vld [vmem:[%s156] sm:$0xf]
    %v159 = vlaneseq
    %v160 = vshrl.u32 %v159, 7
    %v161 = vsub.s32 0, %v160
    %v162 = vrot.slane %v157, %v161
    %v163 = vlaneseq
    %v164 = vshrl.u32 %v163, 7
    %v165 = vsub.s32 1, %v164
    %v166 = vrot.slane %v157, %v165
    %v167 = vlaneseq
    %v168 = vshrl.u32 %v167, 7
    %v169 = vsub.s32 2, %v168
    %v170 = vrot.slane %v157, %v169
    %v171 = vlaneseq
    %v172 = vshrl.u32 %v171, 7
    %v173 = vsub.s32 3, %v172
    %v174 = vrot.slane %v157, %v173
    %s179 = scalar_lea.vmem %s1, 28
    %v180 = vld [vmem:[%s179] sm:$0xf]
    %v182 = vlaneseq
    %v183 = vshrl.u32 %v182, 7
    %v184 = vsub.s32 0, %v183
    %v185 = vrot.slane %v180, %v184
    %v186 = vlaneseq
    %v187 = vshrl.u32 %v186, 7
    %v188 = vsub.s32 1, %v187
    %v189 = vrot.slane %v180, %v188
    %v190 = vlaneseq
    %v191 = vshrl.u32 %v190, 7
    %v192 = vsub.s32 2, %v191
    %v193 = vrot.slane %v180, %v192
    %v194 = vlaneseq
    %v195 = vshrl.u32 %v194, 7
    %v196 = vsub.s32 3, %v195
    %v197 = vrot.slane %v180, %v196
    %s202 = scalar_lea.vmem %s1, 32
    %v203 = vld [vmem:[%s202] sm:$0xf]
    %v205 = vlaneseq
    %v206 = vshrl.u32 %v205, 7
    %v207 = vsub.s32 0, %v206
    %v208 = vrot.slane %v203, %v207
    %v209 = vlaneseq
    %v210 = vshrl.u32 %v209, 7
    %v211 = vsub.s32 1, %v210
    %v212 = vrot.slane %v203, %v211
    %v213 = vlaneseq
    %v214 = vshrl.u32 %v213, 7
    %v215 = vsub.s32 2, %v214
    %v216 = vrot.slane %v203, %v215
    %v217 = vlaneseq
    %v218 = vshrl.u32 %v217, 7
    %v219 = vsub.s32 3, %v218
    %v220 = vrot.slane %v203, %v219
    %v225 = vld [vmem:[%s0] sm:$0xff]
    %v226 = vld [vmem:[%s2] sm:$0xf]
    %v227 = vld [vmem:[%s2 + $0x4] sm:$0xf]
    %v228 = vld [vmem:[%s3] sm:$0xff]
    %v229 = vld [vmem:[%s3 + $0x8] sm:$0xff]
    %231 = vset.pattern.permute.xlu0 0
    %232 = vperm.xlu0 %231, %v228
    %v233 = vpop.permute.xlu0 %232
    %236 = vset.pattern.permute.xlu0 0
    %237 = vperm.xlu0 %236, %v229
    %v238 = vpop.permute.xlu0 %237
    %v242 = vunpack.c.l.b16 %v226
    %v243 = vunpack.c.l.b16 %v227
    %v244 = vpack.c.b16 %v243, %v242
    %v246 = vcombine.high %v225, %v225
    %v248 = vunpack.c.l.s4 1983009808
    %v249 = vunpack.c.0.s8 %v248
    %v250 = vlaneseq
    %v251 = vshrl.u32 %v250, 7
    %v252 = vsub.s32 %v249, %v251
    %v253 = vrot.slane %v225, %v252
    %v255 = vunpack.c.l.s4 1983009808
    %v256 = vunpack.c.0.s8 %v255
    %v257 = vlaneseq
    %v258 = vshrl.u32 %v257, 7
    %v259 = vsub.s32 %v256, %v258
    %v260 = vrot.slane %v246, %v259
    %v261 = vcombine.high %v253, %v253
    %v262 = vcombine.high %v260, %v260
    %vm263 = vcmask 31744
    %v265 = vsel %vm263, %v244, 0
    %vm267 = vcmask 1041408
    %v269 = vsel %vm267, %v253, 0
    %v272 = vsel %vm267, %v261, 0
    %v275 = vsel %vm267, %v260, 0
    %v278 = vsel %vm267, %v262, 0
    %280 = vmatprep.subr.bf16.mxu0 0
    %281 = vmatpush1.bf16.msra.mxu0 0
    %282 = vmatprep.subr.bf16.mxu0 0
    %283 = vmatpush1.bf16.msra.mxu0 0
    %284 = vmatprep.subr.bf16.mxu0 0
    %285 = vmatpush1.bf16.msra.mxu0 0
    %286 = vmatprep.subr.bf16.mxu0 0
    %287 = vmatpush1.bf16.msra.mxu0 0
    %288 = vmatprep.subr.bf16.mxu0 0
    %289 = vmatpush1.bf16.msra.mxu0 0
    %290 = vmatprep.subr.bf16.mxu0 0
    %291 = vmatpush1.bf16.msra.mxu0 0
    %292 = vmatprep.subr.bf16.mxu0 0
    %293 = vmatpush1.bf16.msra.mxu0 0
    %294 = vmatprep.subr.bf16.mxu0 %v272
    %295 = vmatpush1.bf16.msra.mxu0 %v269
    %296 = vmatprep.subr.bf16.mxu0 0
    %297 = vmatpush2.bf16.msra.mxu0 0
    %298 = vmatprep.subr.bf16.mxu0 0
    %299 = vmatpush2.bf16.msra.mxu0 0
    %300 = vmatprep.subr.bf16.mxu0 0
    %301 = vmatpush2.bf16.msra.mxu0 0
    %302 = vmatprep.subr.bf16.mxu0 0
    %303 = vmatpush2.bf16.msra.mxu0 0
    %304 = vmatprep.subr.bf16.mxu0 0
    %305 = vmatpush2.bf16.msra.mxu0 0
    %306 = vmatprep.subr.bf16.mxu0 0
    %307 = vmatpush2.bf16.msra.mxu0 0
    %308 = vmatprep.subr.bf16.mxu0 0
    %309 = vmatpush2.bf16.msra.mxu0 0
    %310 = vmatprep.subr.bf16.mxu0 0
    %311 = vmatpush2.bf16.msra.mxu0 0
    %312 = vmatprep.mubr.bf16.mxu0 0
    %313 = vmatmul.mubr.bf16.gmra.mxu0 %v265
    %v314 = vpop.f32.mrf.mxu0
    %v315 = vadd.f32 %v233, %v314
    %v316 = vpop.f32.mrf.mxu0
    %v317 = vadd.f32 %v233, %v316
    %v318 = vpop.f32.mrf.mxu0
    %v319 = vadd.f32 %v238, %v318
    %v320 = vpop.f32.mrf.mxu0
    %v321 = vadd.f32 %v238, %v320
    %322 = vdwg.mxu0
    %323 = vmatprep.subr.bf16.mxu0 0
    %324 = vmatpush1.bf16.msra.mxu0 0
    %325 = vmatprep.subr.bf16.mxu0 0
    %326 = vmatpush1.bf16.msra.mxu0 0
    %327 = vmatprep.subr.bf16.mxu0 0
    %328 = vmatpush1.bf16.msra.mxu0 0
    %329 = vmatprep.subr.bf16.mxu0 0
    %330 = vmatpush1.bf16.msra.mxu0 0
    %331 = vmatprep.subr.bf16.mxu0 0
    %332 = vmatpush1.bf16.msra.mxu0 0
    %333 = vmatprep.subr.bf16.mxu0 0
    %334 = vmatpush1.bf16.msra.mxu0 0
    %335 = vmatprep.subr.bf16.mxu0 0
    %336 = vmatpush1.bf16.msra.mxu0 0
    %337 = vmatprep.subr.bf16.mxu0 %v278
    %338 = vmatpush1.bf16.msra.mxu0 %v275
    %339 = vmatprep.subr.bf16.mxu0 0
    %340 = vmatpush2.bf16.msra.mxu0 0
    %341 = vmatprep.subr.bf16.mxu0 0
    %342 = vmatpush2.bf16.msra.mxu0 0
    %343 = vmatprep.subr.bf16.mxu0 0
    %344 = vmatpush2.bf16.msra.mxu0 0
    %345 = vmatprep.subr.bf16.mxu0 0
    %346 = vmatpush2.bf16.msra.mxu0 0
    %347 = vmatprep.subr.bf16.mxu0 0
    %348 = vmatpush2.bf16.msra.mxu0 0
    %349 = vmatprep.subr.bf16.mxu0 0
    %350 = vmatpush2.bf16.msra.mxu0 0
    %351 = vmatprep.subr.bf16.mxu0 0
    %352 = vmatpush2.bf16.msra.mxu0 0
    %353 = vmatprep.subr.bf16.mxu0 0
    %354 = vmatpush2.bf16.msra.mxu0 0
    %355 = vmatprep.mubr.bf16.mxu0 0
    %356 = vmatmul.mubr.bf16.gmra.mxu0 %v265
    %v357 = vpop.f32.mrf.mxu0
    %v358 = vadd.f32 %v233, %v357
    %v359 = vpop.f32.mrf.mxu0
    %v360 = vadd.f32 %v233, %v359
    %v361 = vpop.f32.mrf.mxu0
    %v362 = vadd.f32 %v238, %v361
    %v363 = vpop.f32.mrf.mxu0
    %v364 = vadd.f32 %v238, %v363
    %365 = vdwg.mxu0
    %v366 = vmax.f32 %v315, 0.0
    %v367 = vmax.f32 %v317, 0.0
    %v368 = vmax.f32 %v358, 0.0
    %v369 = vmax.f32 %v360, 0.0
    %v370 = vmax.f32 %v319, 0.0
    %v371 = vmax.f32 %v321, 0.0
    %v372 = vmax.f32 %v362, 0.0
    %v373 = vmax.f32 %v364, 0.0
    %v374 = vpack.c.bf16 %v370, %v366
    %v375 = vpack.c.bf16 %v371, %v367
    %v376 = vpack.c.bf16 %v372, %v368
    %v377 = vpack.c.bf16 %v373, %v369
    %s378 = scalar_lea.vmem %s2, 8
    %v379 = vld [vmem:[%s378] sm:$0xf]
    %v380 = vld [vmem:[%s378 + $0x4] sm:$0xf]
    %s381 = scalar_lea.vmem %s3, 16
    %v382 = vld [vmem:[%s381] sm:$0xff]
    %v383 = vld [vmem:[%s381 + $0x8] sm:$0xff]
    %385 = vset.pattern.permute.xlu0 0
    %386 = vperm.xlu0 %385, %v382
    %v387 = vpop.permute.xlu0 %386
    %390 = vset.pattern.permute.xlu0 0
    %391 = vperm.xlu0 %390, %v383
    %v392 = vpop.permute.xlu0 %391
    %v396 = vunpack.c.l.b16 %v379
    %v397 = vunpack.c.l.b16 %v380
    %v398 = vpack.c.b16 %v397, %v396
    %vm399 = vcmask 130048
    %v401 = vsel %vm399, %v398, 0
    %403 = vmatprep.subr.bf16.mxu0 0
    %404 = vmatpush1.bf16.msra.mxu0 0
    %405 = vmatprep.subr.bf16.mxu0 0
    %406 = vmatpush1.bf16.msra.mxu0 0
    %407 = vmatprep.subr.bf16.mxu0 0
    %408 = vmatpush1.bf16.msra.mxu0 0
    %409 = vmatprep.subr.bf16.mxu0 0
    %410 = vmatpush1.bf16.msra.mxu0 0
    %411 = vmatprep.subr.bf16.mxu0 0
    %412 = vmatpush1.bf16.msra.mxu0 0
    %413 = vmatprep.subr.bf16.mxu0 0
    %414 = vmatpush1.bf16.msra.mxu0 0
    %415 = vmatprep.subr.bf16.mxu0 0
    %416 = vmatpush1.bf16.msra.mxu0 0
    %417 = vmatprep.subr.bf16.mxu0 %v375
    %418 = vmatpush1.bf16.msra.mxu0 %v374
    %419 = vmatprep.subr.bf16.mxu0 0
    %420 = vmatpush2.bf16.msra.mxu0 0
    %421 = vmatprep.subr.bf16.mxu0 0
    %422 = vmatpush2.bf16.msra.mxu0 0
    %423 = vmatprep.subr.bf16.mxu0 0
    %424 = vmatpush2.bf16.msra.mxu0 0
    %425 = vmatprep.subr.bf16.mxu0 0
    %426 = vmatpush2.bf16.msra.mxu0 0
    %427 = vmatprep.subr.bf16.mxu0 0
    %428 = vmatpush2.bf16.msra.mxu0 0
    %429 = vmatprep.subr.bf16.mxu0 0
    %430 = vmatpush2.bf16.msra.mxu0 0
    %431 = vmatprep.subr.bf16.mxu0 0
    %432 = vmatpush2.bf16.msra.mxu0 0
    %433 = vmatprep.subr.bf16.mxu0 0
    %434 = vmatpush2.bf16.msra.mxu0 0
    %435 = vmatprep.mubr.bf16.mxu0 0
    %436 = vmatmul.mubr.bf16.gmra.mxu0 %v401
    %v437 = vpop.f32.mrf.mxu0
    %v438 = vadd.f32 %v387, %v437
    %v439 = vpop.f32.mrf.mxu0
    %v440 = vadd.f32 %v387, %v439
    %v441 = vpop.f32.mrf.mxu0
    %v442 = vadd.f32 %v392, %v441
    %v443 = vpop.f32.mrf.mxu0
    %v444 = vadd.f32 %v392, %v443
    %445 = vdwg.mxu0
    %446 = vmatprep.subr.bf16.mxu0 0
    %447 = vmatpush1.bf16.msra.mxu0 0
    %448 = vmatprep.subr.bf16.mxu0 0
    %449 = vmatpush1.bf16.msra.mxu0 0
    %450 = vmatprep.subr.bf16.mxu0 0
    %451 = vmatpush1.bf16.msra.mxu0 0
    %452 = vmatprep.subr.bf16.mxu0 0
    %453 = vmatpush1.bf16.msra.mxu0 0
    %454 = vmatprep.subr.bf16.mxu0 0
    %455 = vmatpush1.bf16.msra.mxu0 0
    %456 = vmatprep.subr.bf16.mxu0 0
    %457 = vmatpush1.bf16.msra.mxu0 0
    %458 = vmatprep.subr.bf16.mxu0 0
    %459 = vmatpush1.bf16.msra.mxu0 0
    %460 = vmatprep.subr.bf16.mxu0 %v377
    %461 = vmatpush1.bf16.msra.mxu0 %v376
    %462 = vmatprep.subr.bf16.mxu0 0
    %463 = vmatpush2.bf16.msra.mxu0 0
    %464 = vmatprep.subr.bf16.mxu0 0
    %465 = vmatpush2.bf16.msra.mxu0 0
    %466 = vmatprep.subr.bf16.mxu0 0
    %467 = vmatpush2.bf16.msra.mxu0 0
    %468 = vmatprep.subr.bf16.mxu0 0
    %469 = vmatpush2.bf16.msra.mxu0 0
    %470 = vmatprep.subr.bf16.mxu0 0
    %471 = vmatpush2.bf16.msra.mxu0 0
    %472 = vmatprep.subr.bf16.mxu0 0
    %473 = vmatpush2.bf16.msra.mxu0 0
    %474 = vmatprep.subr.bf16.mxu0 0
    %475 = vmatpush2.bf16.msra.mxu0 0
    %476 = vmatprep.subr.bf16.mxu0 0
    %477 = vmatpush2.bf16.msra.mxu0 0
    %478 = vmatprep.mubr.bf16.mxu0 0
    %479 = vmatmul.mubr.bf16.gmra.mxu0 %v401
    %v480 = vpop.f32.mrf.mxu0
    %v481 = vadd.f32 %v387, %v480
    %v482 = vpop.f32.mrf.mxu0
    %v483 = vadd.f32 %v387, %v482
    %v484 = vpop.f32.mrf.mxu0
    %v485 = vadd.f32 %v392, %v484
    %v486 = vpop.f32.mrf.mxu0
    %v487 = vadd.f32 %v392, %v486
    %488 = vdwg.mxu0
    %v489 = vmax.f32 %v438, 0.0
    %v490 = vmax.f32 %v440, 0.0
    %v491 = vmax.f32 %v481, 0.0
    %v492 = vmax.f32 %v483, 0.0
    %v493 = vmax.f32 %v442, 0.0
    %v494 = vmax.f32 %v444, 0.0
    %v495 = vmax.f32 %v485, 0.0
    %v496 = vmax.f32 %v487, 0.0
    %v497 = vld [vmem:[#allocation2] sm:$0xff]
    %v498 = vld [vmem:[#allocation2 + $0xc] sm:$0xff]
    %v499 = vld [vmem:[#allocation2 + $0x18] sm:$0xff]
    %v500 = vld [vmem:[#allocation2 + $0x24] sm:$0xff]
    %501 = vrot.lane.b32.xlu0 %v489, 17
    %v502 = vpop.permute.xlu0 %501
    %503 = vrot.lane.b32.xlu0 %v493, 17
    %v504 = vpop.permute.xlu0 %503
    %505 = vrot.lane.b32.xlu0 %v490, 17
    %v506 = vpop.permute.xlu0 %505
    %507 = vrot.lane.b32.xlu0 %v494, 17
    %v508 = vpop.permute.xlu0 %507
    %509 = vrot.lane.b32.xlu0 %v491, 17
    %v510 = vpop.permute.xlu0 %509
    %511 = vrot.lane.b32.xlu0 %v495, 17
    %v512 = vpop.permute.xlu0 %511
    %513 = vrot.lane.b32.xlu0 %v492, 17
    %v514 = vpop.permute.xlu0 %513
    %515 = vrot.lane.b32.xlu0 %v496, 17
    %v516 = vpop.permute.xlu0 %515
    %v517 = vlaneseq
    %v518 = vand.u32 %v517, 127
    %vm519 = vcmp.lt.s32.totalorder %v518, 17
    %v520 = vsel %vm519, %v510, %v514
    %v521 = vsel %vm519, %v512, %v516
    %v522 = vsel %vm519, %v506, %v510
    %v523 = vsel %vm519, %v508, %v512
    %v524 = vsel %vm519, %v502, %v506
    %v525 = vsel %vm519, %v504, %v508
    %v526 = vsel %vm519, %v514, %v502
    %v527 = vsel %vm519, %v516, %v504
    %v528 = vmul.f32 %v526, %v47
    %v529 = vmul.f32 %v524, %v51
    %v530 = vmul.f32 %v522, %v55
    %v531 = vmul.f32 %v520, %v59
    %v532 = vmul.f32 %v527, %v47
    %v533 = vmul.f32 %v525, %v51
    %v534 = vmul.f32 %v523, %v55
    %v535 = vmul.f32 %v521, %v59
    %v536 = vpack.c.bf16 %v532, %v528
    %v537 = vpack.c.bf16 %v533, %v529
    %v538 = vpack.c.bf16 %v534, %v530
    %v539 = vpack.c.bf16 %v535, %v531
    %540 = vrot.lane.b32.xlu0 %v489, 16
    %v541 = vpop.permute.xlu0 %540
    %542 = vrot.lane.b32.xlu0 %v493, 16
    %v543 = vpop.permute.xlu0 %542
    %544 = vrot.lane.b32.xlu0 %v490, 16
    %v545 = vpop.permute.xlu0 %544
    %546 = vrot.lane.b32.xlu0 %v494, 16
    %v547 = vpop.permute.xlu0 %546
    %548 = vrot.lane.b32.xlu0 %v491, 16
    %v549 = vpop.permute.xlu0 %548
    %550 = vrot.lane.b32.xlu0 %v495, 16
    %v551 = vpop.permute.xlu0 %550
    %552 = vrot.lane.b32.xlu0 %v492, 16
    %v553 = vpop.permute.xlu0 %552
    %554 = vrot.lane.b32.xlu0 %v496, 16
    %v555 = vpop.permute.xlu0 %554
    %vm556 = vcmp.lt.s32.totalorder %v518, 16
    %v557 = vsel %vm556, %v549, %v553
    %v558 = vsel %vm556, %v551, %v555
    %v559 = vsel %vm556, %v545, %v549
    %v560 = vsel %vm556, %v547, %v551
    %v561 = vsel %vm556, %v541, %v545
    %v562 = vsel %vm556, %v543, %v547
    %v563 = vsel %vm556, %v553, %v541
    %v564 = vsel %vm556, %v555, %v543
    %v565 = vmul.f32 %v563, %v70
    %v566 = vmul.f32 %v561, %v74
    %v567 = vmul.f32 %v559, %v78
    %v568 = vmul.f32 %v557, %v82
    %v569 = vmul.f32 %v564, %v70
    %v570 = vmul.f32 %v562, %v74
    %v571 = vmul.f32 %v560, %v78
    %v572 = vmul.f32 %v558, %v82
    %v573 = vpack.c.bf16 %v569, %v565
    %v574 = vpack.c.bf16 %v570, %v566
    %v575 = vpack.c.bf16 %v571, %v567
    %v576 = vpack.c.bf16 %v572, %v568
    %577 = vrot.lane.b32.xlu0 %v489, 15
    %v578 = vpop.permute.xlu0 %577
    %579 = vrot.lane.b32.xlu0 %v493, 15
    %v580 = vpop.permute.xlu0 %579
    %581 = vrot.lane.b32.xlu0 %v490, 15
    %v582 = vpop.permute.xlu0 %581
    %583 = vrot.lane.b32.xlu0 %v494, 15
    %v584 = vpop.permute.xlu0 %583
    %585 = vrot.lane.b32.xlu0 %v491, 15
    %v586 = vpop.permute.xlu0 %585
    %587 = vrot.lane.b32.xlu0 %v495, 15
    %v588 = vpop.permute.xlu0 %587
    %589 = vrot.lane.b32.xlu0 %v492, 15
    %v590 = vpop.permute.xlu0 %589
    %591 = vrot.lane.b32.xlu0 %v496, 15
    %v592 = vpop.permute.xlu0 %591
    %vm593 = vcmp.lt.s32.totalorder %v518, 15
    %v594 = vsel %vm593, %v586, %v590
    %v595 = vsel %vm593, %v588, %v592
    %v596 = vsel %vm593, %v582, %v586
    %v597 = vsel %vm593, %v584, %v588
    %v598 = vsel %vm593, %v578, %v582
    %v599 = vsel %vm593, %v580, %v584
    %v600 = vsel %vm593, %v590, %v578
    %v601 = vsel %vm593, %v592, %v580
    %v602 = vmul.f32 %v600, %v93
    %v603 = vmul.f32 %v598, %v97
    %v604 = vmul.f32 %v596, %v101
    %v605 = vmul.f32 %v594, %v105
    %v606 = vmul.f32 %v601, %v93
    %v607 = vmul.f32 %v599, %v97
    %v608 = vmul.f32 %v597, %v101
    %v609 = vmul.f32 %v595, %v105
    %v610 = vpack.c.bf16 %v606, %v602
    %v611 = vpack.c.bf16 %v607, %v603
    %v612 = vpack.c.bf16 %v608, %v604
    %v613 = vpack.c.bf16 %v609, %v605
    %614 = vrot.lane.b32.xlu0 %v489, 1
    %v615 = vpop.permute.xlu0 %614
    %616 = vrot.lane.b32.xlu0 %v493, 1
    %v617 = vpop.permute.xlu0 %616
    %618 = vrot.lane.b32.xlu0 %v490, 1
    %v619 = vpop.permute.xlu0 %618
    %620 = vrot.lane.b32.xlu0 %v494, 1
    %v621 = vpop.permute.xlu0 %620
    %622 = vrot.lane.b32.xlu0 %v491, 1
    %v623 = vpop.permute.xlu0 %622
    %624 = vrot.lane.b32.xlu0 %v495, 1
    %v625 = vpop.permute.xlu0 %624
    %626 = vrot.lane.b32.xlu0 %v492, 1
    %v627 = vpop.permute.xlu0 %626
    %628 = vrot.lane.b32.xlu0 %v496, 1
    %v629 = vpop.permute.xlu0 %628
    %vm630 = vcmp.lt.s32.totalorder %v518, 1
    %v631 = vsel %vm630, %v623, %v627
    %v632 = vsel %vm630, %v625, %v629
    %v633 = vsel %vm630, %v619, %v623
    %v634 = vsel %vm630, %v621, %v625
    %v635 = vsel %vm630, %v615, %v619
    %v636 = vsel %vm630, %v617, %v621
    %v637 = vsel %vm630, %v627, %v615
    %v638 = vsel %vm630, %v629, %v617
    %v639 = vmul.f32 %v637, %v116
    %v640 = vmul.f32 %v635, %v120
    %v641 = vmul.f32 %v633, %v124
    %v642 = vmul.f32 %v631, %v128
    %v643 = vmul.f32 %v638, %v116
    %v644 = vmul.f32 %v636, %v120
    %v645 = vmul.f32 %v634, %v124
    %v646 = vmul.f32 %v632, %v128
    %v647 = vpack.c.bf16 %v643, %v639
    %v648 = vpack.c.bf16 %v644, %v640
    %v649 = vpack.c.bf16 %v645, %v641
    %v650 = vpack.c.bf16 %v646, %v642
    %v651 = vpack.c.bf16 %v493, %v489
    %v652 = vpack.c.bf16 %v494, %v490
    %v653 = vpack.c.bf16 %v495, %v491
    %v654 = vpack.c.bf16 %v496, %v492
    %655 = vrot.lane.b32.xlu0 %v489, 127
    %v656 = vpop.permute.xlu0 %655
    %657 = vrot.lane.b32.xlu0 %v493, 127
    %v658 = vpop.permute.xlu0 %657
    %659 = vrot.lane.b32.xlu0 %v490, 127
    %v660 = vpop.permute.xlu0 %659
    %661 = vrot.lane.b32.xlu0 %v494, 127
    %v662 = vpop.permute.xlu0 %661
    %663 = vrot.lane.b32.xlu0 %v491, 127
    %v664 = vpop.permute.xlu0 %663
    %665 = vrot.lane.b32.xlu0 %v495, 127
    %v666 = vpop.permute.xlu0 %665
    %667 = vrot.lane.b32.xlu0 %v492, 127
    %v668 = vpop.permute.xlu0 %667
    %669 = vrot.lane.b32.xlu0 %v496, 127
    %v670 = vpop.permute.xlu0 %669
    %vm671 = vcmp.lt.s32.totalorder %v518, 127
    %v672 = vsel %vm671, %v664, %v668
    %v673 = vsel %vm671, %v666, %v670
    %v674 = vsel %vm671, %v660, %v664
    %v675 = vsel %vm671, %v662, %v666
    %v676 = vsel %vm671, %v656, %v660
    %v677 = vsel %vm671, %v658, %v662
    %v678 = vsel %vm671, %v668, %v656
    %v679 = vsel %vm671, %v670, %v658
    %v680 = vmul.f32 %v676, %v139
    %v681 = vmul.f32 %v674, %v143
    %v682 = vmul.f32 %v672, %v147
    %v683 = vmul.f32 %v678, %v151
    %v684 = vmul.f32 %v677, %v139
    %v685 = vmul.f32 %v675, %v143
    %v686 = vmul.f32 %v673, %v147
    %v687 = vmul.f32 %v679, %v151
    %v688 = vpack.c.bf16 %v684, %v680
    %v689 = vpack.c.bf16 %v685, %v681
    %v690 = vpack.c.bf16 %v686, %v682
    %v691 = vpack.c.bf16 %v687, %v683
    %692 = vrot.lane.b32.xlu0 %v489, 113
    %v693 = vpop.permute.xlu0 %692
    %694 = vrot.lane.b32.xlu0 %v493, 113
    %v695 = vpop.permute.xlu0 %694
    %696 = vrot.lane.b32.xlu0 %v490, 113
    %v697 = vpop.permute.xlu0 %696
    %698 = vrot.lane.b32.xlu0 %v494, 113
    %v699 = vpop.permute.xlu0 %698
    %700 = vrot.lane.b32.xlu0 %v491, 113
    %v701 = vpop.permute.xlu0 %700
    %702 = vrot.lane.b32.xlu0 %v495, 113
    %v703 = vpop.permute.xlu0 %702
    %704 = vrot.lane.b32.xlu0 %v492, 113
    %v705 = vpop.permute.xlu0 %704
    %706 = vrot.lane.b32.xlu0 %v496, 113
    %v707 = vpop.permute.xlu0 %706
    %vm708 = vcmp.lt.s32.totalorder %v518, 113
    %v709 = vsel %vm708, %v701, %v705
    %v710 = vsel %vm708, %v703, %v707
    %v711 = vsel %vm708, %v697, %v701
    %v712 = vsel %vm708, %v699, %v703
    %v713 = vsel %vm708, %v693, %v697
    %v714 = vsel %vm708, %v695, %v699
    %v715 = vsel %vm708, %v705, %v693
    %v716 = vsel %vm708, %v707, %v695
    %v717 = vmul.f32 %v713, %v162
    %v718 = vmul.f32 %v711, %v166
    %v719 = vmul.f32 %v709, %v170
    %v720 = vmul.f32 %v715, %v174
    %v721 = vmul.f32 %v714, %v162
    %v722 = vmul.f32 %v712, %v166
    %v723 = vmul.f32 %v710, %v170
    %v724 = vmul.f32 %v716, %v174
    %v725 = vpack.c.bf16 %v721, %v717
    %v726 = vpack.c.bf16 %v722, %v718
    %v727 = vpack.c.bf16 %v723, %v719
    %v728 = vpack.c.bf16 %v724, %v720
    %729 = vrot.lane.b32.xlu0 %v489, 112
    %v730 = vpop.permute.xlu0 %729
    %731 = vrot.lane.b32.xlu0 %v493, 112
    %v732 = vpop.permute.xlu0 %731
    %733 = vrot.lane.b32.xlu0 %v490, 112
    %v734 = vpop.permute.xlu0 %733
    %735 = vrot.lane.b32.xlu0 %v494, 112
    %v736 = vpop.permute.xlu0 %735
    %737 = vrot.lane.b32.xlu0 %v491, 112
    %v738 = vpop.permute.xlu0 %737
    %739 = vrot.lane.b32.xlu0 %v495, 112
    %v740 = vpop.permute.xlu0 %739
    %741 = vrot.lane.b32.xlu0 %v492, 112
    %v742 = vpop.permute.xlu0 %741
    %743 = vrot.lane.b32.xlu0 %v496, 112
    %v744 = vpop.permute.xlu0 %743
    %vm745 = vcmp.lt.s32.totalorder %v518, 112
    %v746 = vsel %vm745, %v738, %v742
    %v747 = vsel %vm745, %v740, %v744
    %v748 = vsel %vm745, %v734, %v738
    %v749 = vsel %vm745, %v736, %v740
    %v750 = vsel %vm745, %v730, %v734
    %v751 = vsel %vm745, %v732, %v736
    %v752 = vsel %vm745, %v742, %v730
    %v753 = vsel %vm745, %v744, %v732
    %v754 = vmul.f32 %v750, %v185
    %v755 = vmul.f32 %v748, %v189
    %v756 = vmul.f32 %v746, %v193
    %v757 = vmul.f32 %v752, %v197
    %v758 = vmul.f32 %v751, %v185
    %v759 = vmul.f32 %v749, %v189
    %v760 = vmul.f32 %v747, %v193
    %v761 = vmul.f32 %v753, %v197
    %v762 = vpack.c.bf16 %v758, %v754
    %v763 = vpack.c.bf16 %v759, %v755
    %v764 = vpack.c.bf16 %v760, %v756
    %v765 = vpack.c.bf16 %v761, %v757
    %766 = vrot.lane.b32.xlu0 %v489, 111
    %v767 = vpop.permute.xlu0 %766
    %768 = vrot.lane.b32.xlu0 %v493, 111
    %v769 = vpop.permute.xlu0 %768
    %770 = vrot.lane.b32.xlu0 %v490, 111
    %v771 = vpop.permute.xlu0 %770
    %772 = vrot.lane.b32.xlu0 %v494, 111
    %v773 = vpop.permute.xlu0 %772
    %774 = vrot.lane.b32.xlu0 %v491, 111
    %v775 = vpop.permute.xlu0 %774
    %776 = vrot.lane.b32.xlu0 %v495, 111
    %v777 = vpop.permute.xlu0 %776
    %778 = vrot.lane.b32.xlu0 %v492, 111
    %v779 = vpop.permute.xlu0 %778
    %780 = vrot.lane.b32.xlu0 %v496, 111
    %v781 = vpop.permute.xlu0 %780
    %vm782 = vcmp.lt.s32.totalorder %v518, 111
    %v783 = vsel %vm782, %v775, %v779
    %v784 = vsel %vm782, %v777, %v781
    %v785 = vsel %vm782, %v771, %v775
    %v786 = vsel %vm782, %v773, %v777
    %v787 = vsel %vm782, %v767, %v771
    %v788 = vsel %vm782, %v769, %v773
    %v789 = vsel %vm782, %v779, %v767
    %v790 = vsel %vm782, %v781, %v769
    %v791 = vmul.f32 %v787, %v208
    %v792 = vmul.f32 %v785, %v212
    %v793 = vmul.f32 %v783, %v216
    %v794 = vmul.f32 %v789, %v220
    %v795 = vmul.f32 %v788, %v208
    %v796 = vmul.f32 %v786, %v212
    %v797 = vmul.f32 %v784, %v216
    %v798 = vmul.f32 %v790, %v220
    %v799 = vpack.c.bf16 %v795, %v791
    %v800 = vpack.c.bf16 %v796, %v792
    %v801 = vpack.c.bf16 %v797, %v793
    %v802 = vpack.c.bf16 %v798, %v794
    %v807 = vunpack.c.l.b16 %v497
    %v808 = vunpack.c.h.b16 %v497
    %v809 = vunpack.c.l.b16 %v498
    %v810 = vunpack.c.h.b16 %v498
    %v811 = vunpack.c.l.b16 %v499
    %v812 = vunpack.c.h.b16 %v499
    %v813 = vunpack.c.l.b16 %v500
    %v814 = vunpack.c.h.b16 %v500
    %v815 = vpack.c.b16 %v809, %v807
    %v816 = vpack.c.b16 %v810, %v808
    %v817 = vpack.c.b16 %v813, %v811
    %v818 = vpack.c.b16 %v814, %v812
    %v822 = vsel %vm399, %v816, 0
    %v825 = vsel %vm399, %v818, 0
    %827 = vmatprep.subr.bf16.mxu0 %v763
    %828 = vmatpush1.bf16.msra.mxu0 %v762
    %829 = vmatprep.subr.bf16.mxu0 %v726
    %830 = vmatpush1.bf16.msra.mxu0 %v725
    %831 = vmatprep.subr.bf16.mxu0 %v689
    %832 = vmatpush1.bf16.msra.mxu0 %v688
    %833 = vmatprep.subr.bf16.mxu0 %v652
    %834 = vmatpush1.bf16.msra.mxu0 %v651
    %835 = vmatprep.subr.bf16.mxu0 %v648
    %836 = vmatpush1.bf16.msra.mxu0 %v647
    %837 = vmatprep.subr.bf16.mxu0 %v611
    %838 = vmatpush1.bf16.msra.mxu0 %v610
    %839 = vmatprep.subr.bf16.mxu0 %v574
    %840 = vmatpush1.bf16.msra.mxu0 %v573
    %841 = vmatprep.subr.bf16.mxu0 %v537
    %842 = vmatpush1.bf16.msra.mxu0 %v536
    %843 = vmatprep.subr.bf16.mxu0 0
    %844 = vmatpush2.bf16.msra.mxu0 0
    %845 = vmatprep.subr.bf16.mxu0 0
    %846 = vmatpush2.bf16.msra.mxu0 0
    %847 = vmatprep.subr.bf16.mxu0 0
    %848 = vmatpush2.bf16.msra.mxu0 0
    %849 = vmatprep.subr.bf16.mxu0 0
    %850 = vmatpush2.bf16.msra.mxu0 0
    %851 = vmatprep.subr.bf16.mxu0 0
    %852 = vmatpush2.bf16.msra.mxu0 0
    %853 = vmatprep.subr.bf16.mxu0 0
    %854 = vmatpush2.bf16.msra.mxu0 0
    %855 = vmatprep.subr.bf16.mxu0 0
    %856 = vmatpush2.bf16.msra.mxu0 0
    %857 = vmatprep.subr.bf16.mxu0 %v800
    %858 = vmatpush2.bf16.msra.mxu0 %v799
    %859 = vmatprep.mubr.bf16.mxu0 %v822
    %860 = vmatmul.mubr.bf16.gmra.mxu0 %v815
    %v861 = vpop.f32.mrf.mxu0
    %v862 = vadd.f32 0.0, %v861
    %v863 = vpop.f32.mrf.mxu0
    %v864 = vadd.f32 0.0, %v863
    %v865 = vpop.f32.mrf.mxu0
    %v866 = vadd.f32 0.0, %v865
    %v867 = vpop.f32.mrf.mxu0
    %v868 = vadd.f32 0.0, %v867
    %869 = vmatprep.mubr.bf16.mxu0 %v825
    %870 = vmatmul.mubr.bf16.gmra.mxu0 %v817
    %v871 = vpop.f32.mrf.mxu0
    %v872 = vadd.f32 0.0, %v871
    %v873 = vpop.f32.mrf.mxu0
    %v874 = vadd.f32 0.0, %v873
    %v875 = vpop.f32.mrf.mxu0
    %v876 = vadd.f32 0.0, %v875
    %v877 = vpop.f32.mrf.mxu0
    %v878 = vadd.f32 0.0, %v877
    %879 = vdwg.mxu0
    %880 = vmatprep.subr.bf16.mxu0 %v765
    %881 = vmatpush1.bf16.msra.mxu0 %v764
    %882 = vmatprep.subr.bf16.mxu0 %v728
    %883 = vmatpush1.bf16.msra.mxu0 %v727
    %884 = vmatprep.subr.bf16.mxu0 %v691
    %885 = vmatpush1.bf16.msra.mxu0 %v690
    %886 = vmatprep.subr.bf16.mxu0 %v654
    %887 = vmatpush1.bf16.msra.mxu0 %v653
    %888 = vmatprep.subr.bf16.mxu0 %v650
    %889 = vmatpush1.bf16.msra.mxu0 %v649
    %890 = vmatprep.subr.bf16.mxu0 %v613
    %891 = vmatpush1.bf16.msra.mxu0 %v612
    %892 = vmatprep.subr.bf16.mxu0 %v576
    %893 = vmatpush1.bf16.msra.mxu0 %v575
    %894 = vmatprep.subr.bf16.mxu0 %v539
    %895 = vmatpush1.bf16.msra.mxu0 %v538
    %896 = vmatprep.subr.bf16.mxu0 0
    %897 = vmatpush2.bf16.msra.mxu0 0
    %898 = vmatprep.subr.bf16.mxu0 0
    %899 = vmatpush2.bf16.msra.mxu0 0
    %900 = vmatprep.subr.bf16.mxu0 0
    %901 = vmatpush2.bf16.msra.mxu0 0
    %902 = vmatprep.subr.bf16.mxu0 0
    %903 = vmatpush2.bf16.msra.mxu0 0
    %904 = vmatprep.subr.bf16.mxu0 0
    %905 = vmatpush2.bf16.msra.mxu0 0
    %906 = vmatprep.subr.bf16.mxu0 0
    %907 = vmatpush2.bf16.msra.mxu0 0
    %908 = vmatprep.subr.bf16.mxu0 0
    %909 = vmatpush2.bf16.msra.mxu0 0
    %910 = vmatprep.subr.bf16.mxu0 %v802
    %911 = vmatpush2.bf16.msra.mxu0 %v801
    %912 = vmatprep.mubr.bf16.mxu0 %v822
    %913 = vmatmul.mubr.bf16.gmra.mxu0 %v815
    %v914 = vpop.f32.mrf.mxu0
    %v915 = vadd.f32 0.0, %v914
    %v916 = vpop.f32.mrf.mxu0
    %v917 = vadd.f32 0.0, %v916
    %v918 = vpop.f32.mrf.mxu0
    %v919 = vadd.f32 0.0, %v918
    %v920 = vpop.f32.mrf.mxu0
    %v921 = vadd.f32 0.0, %v920
    %922 = vmatprep.mubr.bf16.mxu0 %v825
    %923 = vmatmul.mubr.bf16.gmra.mxu0 %v817
    %v924 = vpop.f32.mrf.mxu0
    %v925 = vadd.f32 0.0, %v924
    %v926 = vpop.f32.mrf.mxu0
    %v927 = vadd.f32 0.0, %v926
    %v928 = vpop.f32.mrf.mxu0
    %v929 = vadd.f32 0.0, %v928
    %v930 = vpop.f32.mrf.mxu0
    %v931 = vadd.f32 0.0, %v930
    %932 = vdwg.mxu0
    %v933 = vmax.f32 %v862, 0.0
    %v934 = vmax.f32 %v864, 0.0
    %v935 = vmax.f32 %v915, 0.0
    %v936 = vmax.f32 %v917, 0.0
    %v937 = vmax.f32 %v866, 0.0
    %v938 = vmax.f32 %v868, 0.0
    %v939 = vmax.f32 %v919, 0.0
    %v940 = vmax.f32 %v921, 0.0
    %v941 = vmax.f32 %v872, 0.0
    %v942 = vmax.f32 %v874, 0.0
    %v943 = vmax.f32 %v925, 0.0
    %v944 = vmax.f32 %v927, 0.0
    %v945 = vmax.f32 %v876, 0.0
    %v946 = vmax.f32 %v878, 0.0
    %v947 = vmax.f32 %v929, 0.0
    %v948 = vmax.f32 %v931, 0.0
    %s949 = scalar_lea.vmem [#allocation2], 48
    %v950 = vld [vmem:[%s949] sm:$0xff]
    %v951 = vld [vmem:[%s949 + $0x8] sm:$0xf]
    %v952 = vld [vmem:[%s949 + $0xc] sm:$0xff]
    %v953 = vld [vmem:[%s949 + $0x14] sm:$0xf]
    %v954 = vld [vmem:[%s949 + $0x18] sm:$0xff]
    %v955 = vld [vmem:[%s949 + $0x20] sm:$0xf]
    %v956 = vld [vmem:[%s949 + $0x24] sm:$0xff]
    %v957 = vld [vmem:[%s949 + $0x2c] sm:$0xf]
    %v958 = vld [vmem:[%s5] sm:$0xff]
    %v959 = vld [vmem:[%s5 + $0x8] sm:$0xff]
    %v960 = vld [vmem:[%s5 + $0x10] sm:$0xff]
    %v961 = vld [vmem:[%s5 + $0x18] sm:$0xff]
    %v962 = vld [vmem:[%s6] sm:$0xff]
    %v963 = vld [vmem:[%s6 + $0x8] sm:$0xff]
    %v964 = vld [vmem:[%s6 + $0x10] sm:$0xff]
    %v965 = vld [vmem:[%s6 + $0x18] sm:$0xff]
    %966 = vrot.lane.b32.xlu0 %v933, 17
    %v967 = vpop.permute.xlu0 %966
    %968 = vrot.lane.b32.xlu0 %v937, 17
    %v969 = vpop.permute.xlu0 %968
    %970 = vrot.lane.b32.xlu0 %v941, 17
    %v971 = vpop.permute.xlu0 %970
    %972 = vrot.lane.b32.xlu0 %v945, 17
    %v973 = vpop.permute.xlu0 %972
    %974 = vrot.lane.b32.xlu0 %v934, 17
    %v975 = vpop.permute.xlu0 %974
    %976 = vrot.lane.b32.xlu0 %v938, 17
    %v977 = vpop.permute.xlu0 %976
    %978 = vrot.lane.b32.xlu0 %v942, 17
    %v979 = vpop.permute.xlu0 %978
    %980 = vrot.lane.b32.xlu0 %v946, 17
    %v981 = vpop.permute.xlu0 %980
    %982 = vrot.lane.b32.xlu0 %v935, 17
    %v983 = vpop.permute.xlu0 %982
    %984 = vrot.lane.b32.xlu0 %v939, 17
    %v985 = vpop.permute.xlu0 %984
    %986 = vrot.lane.b32.xlu0 %v943, 17
    %v987 = vpop.permute.xlu0 %986
    %988 = vrot.lane.b32.xlu0 %v947, 17
    %v989 = vpop.permute.xlu0 %988
    %990 = vrot.lane.b32.xlu0 %v936, 17
    %v991 = vpop.permute.xlu0 %990
    %992 = vrot.lane.b32.xlu0 %v940, 17
    %v993 = vpop.permute.xlu0 %992
    %994 = vrot.lane.b32.xlu0 %v944, 17
    %v995 = vpop.permute.xlu0 %994
    %996 = vrot.lane.b32.xlu0 %v948, 17
    %v997 = vpop.permute.xlu0 %996
    %v998 = vsel %vm519, %v983, %v991
    %v999 = vsel %vm519, %v985, %v993
    %v1000 = vsel %vm519, %v987, %v995
    %v1001 = vsel %vm519, %v989, %v997
    %v1002 = vsel %vm519, %v975, %v983
    %v1003 = vsel %vm519, %v977, %v985
    %v1004 = vsel %vm519, %v979, %v987
    %v1005 = vsel %vm519, %v981, %v989
    %v1006 = vsel %vm519, %v967, %v975
    %v1007 = vsel %vm519, %v969, %v977
    %v1008 = vsel %vm519, %v971, %v979
    %v1009 = vsel %vm519, %v973, %v981
    %v1010 = vsel %vm519, %v991, %v967
    %v1011 = vsel %vm519, %v993, %v969
    %v1012 = vsel %vm519, %v995, %v971
    %v1013 = vsel %vm519, %v997, %v973
    %v1014 = vmul.f32 %v1010, %v47
    %v1015 = vmul.f32 %v1006, %v51
    %v1016 = vmul.f32 %v1002, %v55
    %v1017 = vmul.f32 %v998, %v59
    %v1018 = vmul.f32 %v1011, %v47
    %v1019 = vmul.f32 %v1007, %v51
    %v1020 = vmul.f32 %v1003, %v55
    %v1021 = vmul.f32 %v999, %v59
    %v1022 = vmul.f32 %v1012, %v47
    %v1023 = vmul.f32 %v1008, %v51
    %v1024 = vmul.f32 %v1004, %v55
    %v1025 = vmul.f32 %v1000, %v59
    %v1026 = vmul.f32 %v1013, %v47
    %v1027 = vmul.f32 %v1009, %v51
    %v1028 = vmul.f32 %v1005, %v55
    %v1029 = vmul.f32 %v1001, %v59
    %v1030 = vpack.c.bf16 %v1018, %v1014
    %v1031 = vpack.c.bf16 %v1019, %v1015
    %v1032 = vpack.c.bf16 %v1020, %v1016
    %v1033 = vpack.c.bf16 %v1021, %v1017
    %v1034 = vpack.c.bf16 %v1026, %v1022
    %v1035 = vpack.c.bf16 %v1027, %v1023
    %v1036 = vpack.c.bf16 %v1028, %v1024
    %v1037 = vpack.c.bf16 %v1029, %v1025
    %1038 = vrot.lane.b32.xlu0 %v933, 16
    %v1039 = vpop.permute.xlu0 %1038
    %1040 = vrot.lane.b32.xlu0 %v937, 16
    %v1041 = vpop.permute.xlu0 %1040
    %1042 = vrot.lane.b32.xlu0 %v941, 16
    %v1043 = vpop.permute.xlu0 %1042
    %1044 = vrot.lane.b32.xlu0 %v945, 16
    %v1045 = vpop.permute.xlu0 %1044
    %1046 = vrot.lane.b32.xlu0 %v934, 16
    %v1047 = vpop.permute.xlu0 %1046
    %1048 = vrot.lane.b32.xlu0 %v938, 16
    %v1049 = vpop.permute.xlu0 %1048
    %1050 = vrot.lane.b32.xlu0 %v942, 16
    %v1051 = vpop.permute.xlu0 %1050
    %1052 = vrot.lane.b32.xlu0 %v946, 16
    %v1053 = vpop.permute.xlu0 %1052
    %1054 = vrot.lane.b32.xlu0 %v935, 16
    %v1055 = vpop.permute.xlu0 %1054
    %1056 = vrot.lane.b32.xlu0 %v939, 16
    %v1057 = vpop.permute.xlu0 %1056
    %1058 = vrot.lane.b32.xlu0 %v943, 16
    %v1059 = vpop.permute.xlu0 %1058
    %1060 = vrot.lane.b32.xlu0 %v947, 16
    %v1061 = vpop.permute.xlu0 %1060
    %1062 = vrot.lane.b32.xlu0 %v936, 16
    %v1063 = vpop.permute.xlu0 %1062
    %1064 = vrot.lane.b32.xlu0 %v940, 16
    %v1065 = vpop.permute.xlu0 %1064
    %1066 = vrot.lane.b32.xlu0 %v944, 16
    %v1067 = vpop.permute.xlu0 %1066
    %1068 = vrot.lane.b32.xlu0 %v948, 16
    %v1069 = vpop.permute.xlu0 %1068
    %v1070 = vsel %vm556, %v1055, %v1063
    %v1071 = vsel %vm556, %v1057, %v1065
    %v1072 = vsel %vm556, %v1059, %v1067
    %v1073 = vsel %vm556, %v1061, %v1069
    %v1074 = vsel %vm556, %v1047, %v1055
    %v1075 = vsel %vm556, %v1049, %v1057
    %v1076 = vsel %vm556, %v1051, %v1059
    %v1077 = vsel %vm556, %v1053, %v1061
    %v1078 = vsel %vm556, %v1039, %v1047
    %v1079 = vsel %vm556, %v1041, %v1049
    %v1080 = vsel %vm556, %v1043, %v1051
    %v1081 = vsel %vm556, %v1045, %v1053
    %v1082 = vsel %vm556, %v1063, %v1039
    %v1083 = vsel %vm556, %v1065, %v1041
    %v1084 = vsel %vm556, %v1067, %v1043
    %v1085 = vsel %vm556, %v1069, %v1045
    %v1086 = vmul.f32 %v1082, %v70
    %v1087 = vmul.f32 %v1078, %v74
    %v1088 = vmul.f32 %v1074, %v78
    %v1089 = vmul.f32 %v1070, %v82
    %v1090 = vmul.f32 %v1083, %v70
    %v1091 = vmul.f32 %v1079, %v74
    %v1092 = vmul.f32 %v1075, %v78
    %v1093 = vmul.f32 %v1071, %v82
    %v1094 = vmul.f32 %v1084, %v70
    %v1095 = vmul.f32 %v1080, %v74
    %v1096 = vmul.f32 %v1076, %v78
    %v1097 = vmul.f32 %v1072, %v82
    %v1098 = vmul.f32 %v1085, %v70
    %v1099 = vmul.f32 %v1081, %v74
    %v1100 = vmul.f32 %v1077, %v78
    %v1101 = vmul.f32 %v1073, %v82
    %v1102 = vpack.c.bf16 %v1090, %v1086
    %v1103 = vpack.c.bf16 %v1091, %v1087
    %v1104 = vpack.c.bf16 %v1092, %v1088
    %v1105 = vpack.c.bf16 %v1093, %v1089
    %v1106 = vpack.c.bf16 %v1098, %v1094
    %v1107 = vpack.c.bf16 %v1099, %v1095
    %v1108 = vpack.c.bf16 %v1100, %v1096
    %v1109 = vpack.c.bf16 %v1101, %v1097
    %1110 = vrot.lane.b32.xlu0 %v933, 15
    %v1111 = vpop.permute.xlu0 %1110
    %1112 = vrot.lane.b32.xlu0 %v937, 15
    %v1113 = vpop.permute.xlu0 %1112
    %1114 = vrot.lane.b32.xlu0 %v941, 15
    %v1115 = vpop.permute.xlu0 %1114
    %1116 = vrot.lane.b32.xlu0 %v945, 15
    %v1117 = vpop.permute.xlu0 %1116
    %1118 = vrot.lane.b32.xlu0 %v934, 15
    %v1119 = vpop.permute.xlu0 %1118
    %1120 = vrot.lane.b32.xlu0 %v938, 15
    %v1121 = vpop.permute.xlu0 %1120
    %1122 = vrot.lane.b32.xlu0 %v942, 15
    %v1123 = vpop.permute.xlu0 %1122
    %1124 = vrot.lane.b32.xlu0 %v946, 15
    %v1125 = vpop.permute.xlu0 %1124
    %1126 = vrot.lane.b32.xlu0 %v935, 15
    %v1127 = vpop.permute.xlu0 %1126
    %1128 = vrot.lane.b32.xlu0 %v939, 15
    %v1129 = vpop.permute.xlu0 %1128
    %1130 = vrot.lane.b32.xlu0 %v943, 15
    %v1131 = vpop.permute.xlu0 %1130
    %1132 = vrot.lane.b32.xlu0 %v947, 15
    %v1133 = vpop.permute.xlu0 %1132
    %1134 = vrot.lane.b32.xlu0 %v936, 15
    %v1135 = vpop.permute.xlu0 %1134
    %1136 = vrot.lane.b32.xlu0 %v940, 15
    %v1137 = vpop.permute.xlu0 %1136
    %1138 = vrot.lane.b32.xlu0 %v944, 15
    %v1139 = vpop.permute.xlu0 %1138
    %1140 = vrot.lane.b32.xlu0 %v948, 15
    %v1141 = vpop.permute.xlu0 %1140
    %v1142 = vsel %vm593, %v1127, %v1135
    %v1143 = vsel %vm593, %v1129, %v1137
    %v1144 = vsel %vm593, %v1131, %v1139
    %v1145 = vsel %vm593, %v1133, %v1141
    %v1146 = vsel %vm593, %v1119, %v1127
    %v1147 = vsel %vm593, %v1121, %v1129
    %v1148 = vsel %vm593, %v1123, %v1131
    %v1149 = vsel %vm593, %v1125, %v1133
    %v1150 = vsel %vm593, %v1111, %v1119
    %v1151 = vsel %vm593, %v1113, %v1121
    %v1152 = vsel %vm593, %v1115, %v1123
    %v1153 = vsel %vm593, %v1117, %v1125
    %v1154 = vsel %vm593, %v1135, %v1111
    %v1155 = vsel %vm593, %v1137, %v1113
    %v1156 = vsel %vm593, %v1139, %v1115
    %v1157 = vsel %vm593, %v1141, %v1117
    %v1158 = vmul.f32 %v1154, %v93
    %v1159 = vmul.f32 %v1150, %v97
    %v1160 = vmul.f32 %v1146, %v101
    %v1161 = vmul.f32 %v1142, %v105
    %v1162 = vmul.f32 %v1155, %v93
    %v1163 = vmul.f32 %v1151, %v97
    %v1164 = vmul.f32 %v1147, %v101
    %v1165 = vmul.f32 %v1143, %v105
    %v1166 = vmul.f32 %v1156, %v93
    %v1167 = vmul.f32 %v1152, %v97
    %v1168 = vmul.f32 %v1148, %v101
    %v1169 = vmul.f32 %v1144, %v105
    %v1170 = vmul.f32 %v1157, %v93
    %v1171 = vmul.f32 %v1153, %v97
    %v1172 = vmul.f32 %v1149, %v101
    %v1173 = vmul.f32 %v1145, %v105
    %v1174 = vpack.c.bf16 %v1162, %v1158
    %v1175 = vpack.c.bf16 %v1163, %v1159
    %v1176 = vpack.c.bf16 %v1164, %v1160
    %v1177 = vpack.c.bf16 %v1165, %v1161
    %v1178 = vpack.c.bf16 %v1170, %v1166
    %v1179 = vpack.c.bf16 %v1171, %v1167
    %v1180 = vpack.c.bf16 %v1172, %v1168
    %v1181 = vpack.c.bf16 %v1173, %v1169
    %1182 = vrot.lane.b32.xlu0 %v933, 1
    %v1183 = vpop.permute.xlu0 %1182
    %1184 = vrot.lane.b32.xlu0 %v937, 1
    %v1185 = vpop.permute.xlu0 %1184
    %1186 = vrot.lane.b32.xlu0 %v941, 1
    %v1187 = vpop.permute.xlu0 %1186
    %1188 = vrot.lane.b32.xlu0 %v945, 1
    %v1189 = vpop.permute.xlu0 %1188
    %1190 = vrot.lane.b32.xlu0 %v934, 1
    %v1191 = vpop.permute.xlu0 %1190
    %1192 = vrot.lane.b32.xlu0 %v938, 1
    %v1193 = vpop.permute.xlu0 %1192
    %1194 = vrot.lane.b32.xlu0 %v942, 1
    %v1195 = vpop.permute.xlu0 %1194
    %1196 = vrot.lane.b32.xlu0 %v946, 1
    %v1197 = vpop.permute.xlu0 %1196
    %1198 = vrot.lane.b32.xlu0 %v935, 1
    %v1199 = vpop.permute.xlu0 %1198
    %1200 = vrot.lane.b32.xlu0 %v939, 1
    %v1201 = vpop.permute.xlu0 %1200
    %1202 = vrot.lane.b32.xlu0 %v943, 1
    %v1203 = vpop.permute.xlu0 %1202
    %1204 = vrot.lane.b32.xlu0 %v947, 1
    %v1205 = vpop.permute.xlu0 %1204
    %1206 = vrot.lane.b32.xlu0 %v936, 1
    %v1207 = vpop.permute.xlu0 %1206
    %1208 = vrot.lane.b32.xlu0 %v940, 1
    %v1209 = vpop.permute.xlu0 %1208
    %1210 = vrot.lane.b32.xlu0 %v944, 1
    %v1211 = vpop.permute.xlu0 %1210
    %1212 = vrot.lane.b32.xlu0 %v948, 1
    %v1213 = vpop.permute.xlu0 %1212
    %v1214 = vsel %vm630, %v1199, %v1207
    %v1215 = vsel %vm630, %v1201, %v1209
    %v1216 = vsel %vm630, %v1203, %v1211
    %v1217 = vsel %vm630, %v1205, %v1213
    %v1218 = vsel %vm630, %v1191, %v1199
    %v1219 = vsel %vm630, %v1193, %v1201
    %v1220 = vsel %vm630, %v1195, %v1203
    %v1221 = vsel %vm630, %v1197, %v1205
    %v1222 = vsel %vm630, %v1183, %v1191
    %v1223 = vsel %vm630, %v1185, %v1193
    %v1224 = vsel %vm630, %v1187, %v1195
    %v1225 = vsel %vm630, %v1189, %v1197
    %v1226 = vsel %vm630, %v1207, %v1183
    %v1227 = vsel %vm630, %v1209, %v1185
    %v1228 = vsel %vm630, %v1211, %v1187
    %v1229 = vsel %vm630, %v1213, %v1189
    %v1230 = vmul.f32 %v1226, %v116
    %v1231 = vmul.f32 %v1222, %v120
    %v1232 = vmul.f32 %v1218, %v124
    %v1233 = vmul.f32 %v1214, %v128
    %v1234 = vmul.f32 %v1227, %v116
    %v1235 = vmul.f32 %v1223, %v120
    %v1236 = vmul.f32 %v1219, %v124
    %v1237 = vmul.f32 %v1215, %v128
    %v1238 = vmul.f32 %v1228, %v116
    %v1239 = vmul.f32 %v1224, %v120
    %v1240 = vmul.f32 %v1220, %v124
    %v1241 = vmul.f32 %v1216, %v128
    %v1242 = vmul.f32 %v1229, %v116
    %v1243 = vmul.f32 %v1225, %v120
    %v1244 = vmul.f32 %v1221, %v124
    %v1245 = vmul.f32 %v1217, %v128
    %v1246 = vpack.c.bf16 %v1234, %v1230
    %v1247 = vpack.c.bf16 %v1235, %v1231
    %v1248 = vpack.c.bf16 %v1236, %v1232
    %v1249 = vpack.c.bf16 %v1237, %v1233
    %v1250 = vpack.c.bf16 %v1242, %v1238
    %v1251 = vpack.c.bf16 %v1243, %v1239
    %v1252 = vpack.c.bf16 %v1244, %v1240
    %v1253 = vpack.c.bf16 %v1245, %v1241
    %v1254 = vpack.c.bf16 %v937, %v933
    %v1255 = vpack.c.bf16 %v938, %v934
    %v1256 = vpack.c.bf16 %v939, %v935
    %v1257 = vpack.c.bf16 %v940, %v936
    %v1258 = vpack.c.bf16 %v945, %v941
    %v1259 = vpack.c.bf16 %v946, %v942
    %v1260 = vpack.c.bf16 %v947, %v943
    %v1261 = vpack.c.bf16 %v948, %v944
    %1262 = vrot.lane.b32.xlu0 %v933, 127
    %v1263 = vpop.permute.xlu0 %1262
    %1264 = vrot.lane.b32.xlu0 %v937, 127
    %v1265 = vpop.permute.xlu0 %1264
    %1266 = vrot.lane.b32.xlu0 %v941, 127
    %v1267 = vpop.permute.xlu0 %1266
    %1268 = vrot.lane.b32.xlu0 %v945, 127
    %v1269 = vpop.permute.xlu0 %1268
    %1270 = vrot.lane.b32.xlu0 %v934, 127
    %v1271 = vpop.permute.xlu0 %1270
    %1272 = vrot.lane.b32.xlu0 %v938, 127
    %v1273 = vpop.permute.xlu0 %1272
    %1274 = vrot.lane.b32.xlu0 %v942, 127
    %v1275 = vpop.permute.xlu0 %1274
    %1276 = vrot.lane.b32.xlu0 %v946, 127
    %v1277 = vpop.permute.xlu0 %1276
    %1278 = vrot.lane.b32.xlu0 %v935, 127
    %v1279 = vpop.permute.xlu0 %1278
    %1280 = vrot.lane.b32.xlu0 %v939, 127
    %v1281 = vpop.permute.xlu0 %1280
    %1282 = vrot.lane.b32.xlu0 %v943, 127
    %v1283 = vpop.permute.xlu0 %1282
    %1284 = vrot.lane.b32.xlu0 %v947, 127
    %v1285 = vpop.permute.xlu0 %1284
    %1286 = vrot.lane.b32.xlu0 %v936, 127
    %v1287 = vpop.permute.xlu0 %1286
    %1288 = vrot.lane.b32.xlu0 %v940, 127
    %v1289 = vpop.permute.xlu0 %1288
    %1290 = vrot.lane.b32.xlu0 %v944, 127
    %v1291 = vpop.permute.xlu0 %1290
    %1292 = vrot.lane.b32.xlu0 %v948, 127
    %v1293 = vpop.permute.xlu0 %1292
    %v1294 = vsel %vm671, %v1279, %v1287
    %v1295 = vsel %vm671, %v1281, %v1289
    %v1296 = vsel %vm671, %v1283, %v1291
    %v1297 = vsel %vm671, %v1285, %v1293
    %v1298 = vsel %vm671, %v1271, %v1279
    %v1299 = vsel %vm671, %v1273, %v1281
    %v1300 = vsel %vm671, %v1275, %v1283
    %v1301 = vsel %vm671, %v1277, %v1285
    %v1302 = vsel %vm671, %v1263, %v1271
    %v1303 = vsel %vm671, %v1265, %v1273
    %v1304 = vsel %vm671, %v1267, %v1275
    %v1305 = vsel %vm671, %v1269, %v1277
    %v1306 = vsel %vm671, %v1287, %v1263
    %v1307 = vsel %vm671, %v1289, %v1265
    %v1308 = vsel %vm671, %v1291, %v1267
    %v1309 = vsel %vm671, %v1293, %v1269
    %v1310 = vmul.f32 %v1302, %v139
    %v1311 = vmul.f32 %v1298, %v143
    %v1312 = vmul.f32 %v1294, %v147
    %v1313 = vmul.f32 %v1306, %v151
    %v1314 = vmul.f32 %v1303, %v139
    %v1315 = vmul.f32 %v1299, %v143
    %v1316 = vmul.f32 %v1295, %v147
    %v1317 = vmul.f32 %v1307, %v151
    %v1318 = vmul.f32 %v1304, %v139
    %v1319 = vmul.f32 %v1300, %v143
    %v1320 = vmul.f32 %v1296, %v147
    %v1321 = vmul.f32 %v1308, %v151
    %v1322 = vmul.f32 %v1305, %v139
    %v1323 = vmul.f32 %v1301, %v143
    %v1324 = vmul.f32 %v1297, %v147
    %v1325 = vmul.f32 %v1309, %v151
    %v1326 = vpack.c.bf16 %v1314, %v1310
    %v1327 = vpack.c.bf16 %v1315, %v1311
    %v1328 = vpack.c.bf16 %v1316, %v1312
    %v1329 = vpack.c.bf16 %v1317, %v1313
    %v1330 = vpack.c.bf16 %v1322, %v1318
    %v1331 = vpack.c.bf16 %v1323, %v1319
    %v1332 = vpack.c.bf16 %v1324, %v1320
    %v1333 = vpack.c.bf16 %v1325, %v1321
    %1334 = vrot.lane.b32.xlu0 %v933, 113
    %v1335 = vpop.permute.xlu0 %1334
    %1336 = vrot.lane.b32.xlu0 %v937, 113
    %v1337 = vpop.permute.xlu0 %1336
    %1338 = vrot.lane.b32.xlu0 %v941, 113
    %v1339 = vpop.permute.xlu0 %1338
    %1340 = vrot.lane.b32.xlu0 %v945, 113
    %v1341 = vpop.permute.xlu0 %1340
    %1342 = vrot.lane.b32.xlu0 %v934, 113
    %v1343 = vpop.permute.xlu0 %1342
    %1344 = vrot.lane.b32.xlu0 %v938, 113
    %v1345 = vpop.permute.xlu0 %1344
    %1346 = vrot.lane.b32.xlu0 %v942, 113
    %v1347 = vpop.permute.xlu0 %1346
    %1348 = vrot.lane.b32.xlu0 %v946, 113
    %v1349 = vpop.permute.xlu0 %1348
    %1350 = vrot.lane.b32.xlu0 %v935, 113
    %v1351 = vpop.permute.xlu0 %1350
    %1352 = vrot.lane.b32.xlu0 %v939, 113
    %v1353 = vpop.permute.xlu0 %1352
    %1354 = vrot.lane.b32.xlu0 %v943, 113
    %v1355 = vpop.permute.xlu0 %1354
    %1356 = vrot.lane.b32.xlu0 %v947, 113
    %v1357 = vpop.permute.xlu0 %1356
    %1358 = vrot.lane.b32.xlu0 %v936, 113
    %v1359 = vpop.permute.xlu0 %1358
    %1360 = vrot.lane.b32.xlu0 %v940, 113
    %v1361 = vpop.permute.xlu0 %1360
    %1362 = vrot.lane.b32.xlu0 %v944, 113
    %v1363 = vpop.permute.xlu0 %1362
    %1364 = vrot.lane.b32.xlu0 %v948, 113
    %v1365 = vpop.permute.xlu0 %1364
    %v1366 = vsel %vm708, %v1351, %v1359
    %v1367 = vsel %vm708, %v1353, %v1361
    %v1368 = vsel %vm708, %v1355, %v1363
    %v1369 = vsel %vm708, %v1357, %v1365
    %v1370 = vsel %vm708, %v1343, %v1351
    %v1371 = vsel %vm708, %v1345, %v1353
    %v1372 = vsel %vm708, %v1347, %v1355
    %v1373 = vsel %vm708, %v1349, %v1357
    %v1374 = vsel %vm708, %v1335, %v1343
    %v1375 = vsel %vm708, %v1337, %v1345
    %v1376 = vsel %vm708, %v1339, %v1347
    %v1377 = vsel %vm708, %v1341, %v1349
    %v1378 = vsel %vm708, %v1359, %v1335
    %v1379 = vsel %vm708, %v1361, %v1337
    %v1380 = vsel %vm708, %v1363, %v1339
    %v1381 = vsel %vm708, %v1365, %v1341
    %v1382 = vmul.f32 %v1374, %v162
    %v1383 = vmul.f32 %v1370, %v166
    %v1384 = vmul.f32 %v1366, %v170
    %v1385 = vmul.f32 %v1378, %v174
    %v1386 = vmul.f32 %v1375, %v162
    %v1387 = vmul.f32 %v1371, %v166
    %v1388 = vmul.f32 %v1367, %v170
    %v1389 = vmul.f32 %v1379, %v174
    %v1390 = vmul.f32 %v1376, %v162
    %v1391 = vmul.f32 %v1372, %v166
    %v1392 = vmul.f32 %v1368, %v170
    %v1393 = vmul.f32 %v1380, %v174
    %v1394 = vmul.f32 %v1377, %v162
    %v1395 = vmul.f32 %v1373, %v166
    %v1396 = vmul.f32 %v1369, %v170
    %v1397 = vmul.f32 %v1381, %v174
    %v1398 = vpack.c.bf16 %v1386, %v1382
    %v1399 = vpack.c.bf16 %v1387, %v1383
    %v1400 = vpack.c.bf16 %v1388, %v1384
    %v1401 = vpack.c.bf16 %v1389, %v1385
    %v1402 = vpack.c.bf16 %v1394, %v1390
    %v1403 = vpack.c.bf16 %v1395, %v1391
    %v1404 = vpack.c.bf16 %v1396, %v1392
    %v1405 = vpack.c.bf16 %v1397, %v1393
    %1406 = vrot.lane.b32.xlu0 %v933, 112
    %v1407 = vpop.permute.xlu0 %1406
    %1408 = vrot.lane.b32.xlu0 %v937, 112
    %v1409 = vpop.permute.xlu0 %1408
    %1410 = vrot.lane.b32.xlu0 %v941, 112
    %v1411 = vpop.permute.xlu0 %1410
    %1412 = vrot.lane.b32.xlu0 %v945, 112
    %v1413 = vpop.permute.xlu0 %1412
    %1414 = vrot.lane.b32.xlu0 %v934, 112
    %v1415 = vpop.permute.xlu0 %1414
    %1416 = vrot.lane.b32.xlu0 %v938, 112
    %v1417 = vpop.permute.xlu0 %1416
    %1418 = vrot.lane.b32.xlu0 %v942, 112
    %v1419 = vpop.permute.xlu0 %1418
    %1420 = vrot.lane.b32.xlu0 %v946, 112
    %v1421 = vpop.permute.xlu0 %1420
    %1422 = vrot.lane.b32.xlu0 %v935, 112
    %v1423 = vpop.permute.xlu0 %1422
    %1424 = vrot.lane.b32.xlu0 %v939, 112
    %v1425 = vpop.permute.xlu0 %1424
    %1426 = vrot.lane.b32.xlu0 %v943, 112
    %v1427 = vpop.permute.xlu0 %1426
    %1428 = vrot.lane.b32.xlu0 %v947, 112
    %v1429 = vpop.permute.xlu0 %1428
    %1430 = vrot.lane.b32.xlu0 %v936, 112
    %v1431 = vpop.permute.xlu0 %1430
    %1432 = vrot.lane.b32.xlu0 %v940, 112
    %v1433 = vpop.permute.xlu0 %1432
    %1434 = vrot.lane.b32.xlu0 %v944, 112
    %v1435 = vpop.permute.xlu0 %1434
    %1436 = vrot.lane.b32.xlu0 %v948, 112
    %v1437 = vpop.permute.xlu0 %1436
    %v1438 = vsel %vm745, %v1423, %v1431
    %v1439 = vsel %vm745, %v1425, %v1433
    %v1440 = vsel %vm745, %v1427, %v1435
    %v1441 = vsel %vm745, %v1429, %v1437
    %v1442 = vsel %vm745, %v1415, %v1423
    %v1443 = vsel %vm745, %v1417, %v1425
    %v1444 = vsel %vm745, %v1419, %v1427
    %v1445 = vsel %vm745, %v1421, %v1429
    %v1446 = vsel %vm745, %v1407, %v1415
    %v1447 = vsel %vm745, %v1409, %v1417
    %v1448 = vsel %vm745, %v1411, %v1419
    %v1449 = vsel %vm745, %v1413, %v1421
    %v1450 = vsel %vm745, %v1431, %v1407
    %v1451 = vsel %vm745, %v1433, %v1409
    %v1452 = vsel %vm745, %v1435, %v1411
    %v1453 = vsel %vm745, %v1437, %v1413
    %v1454 = vmul.f32 %v1446, %v185
    %v1455 = vmul.f32 %v1442, %v189
    %v1456 = vmul.f32 %v1438, %v193
    %v1457 = vmul.f32 %v1450, %v197
    %v1458 = vmul.f32 %v1447, %v185
    %v1459 = vmul.f32 %v1443, %v189
    %v1460 = vmul.f32 %v1439, %v193
    %v1461 = vmul.f32 %v1451, %v197
    %v1462 = vmul.f32 %v1448, %v185
    %v1463 = vmul.f32 %v1444, %v189
    %v1464 = vmul.f32 %v1440, %v193
    %v1465 = vmul.f32 %v1452, %v197
    %v1466 = vmul.f32 %v1449, %v185
    %v1467 = vmul.f32 %v1445, %v189
    %v1468 = vmul.f32 %v1441, %v193
    %v1469 = vmul.f32 %v1453, %v197
    %v1470 = vpack.c.bf16 %v1458, %v1454
    %v1471 = vpack.c.bf16 %v1459, %v1455
    %v1472 = vpack.c.bf16 %v1460, %v1456
    %v1473 = vpack.c.bf16 %v1461, %v1457
    %v1474 = vpack.c.bf16 %v1466, %v1462
    %v1475 = vpack.c.bf16 %v1467, %v1463
    %v1476 = vpack.c.bf16 %v1468, %v1464
    %v1477 = vpack.c.bf16 %v1469, %v1465
    %1478 = vrot.lane.b32.xlu0 %v933, 111
    %v1479 = vpop.permute.xlu0 %1478
    %1480 = vrot.lane.b32.xlu0 %v937, 111
    %v1481 = vpop.permute.xlu0 %1480
    %1482 = vrot.lane.b32.xlu0 %v941, 111
    %v1483 = vpop.permute.xlu0 %1482
    %1484 = vrot.lane.b32.xlu0 %v945, 111
    %v1485 = vpop.permute.xlu0 %1484
    %1486 = vrot.lane.b32.xlu0 %v934, 111
    %v1487 = vpop.permute.xlu0 %1486
    %1488 = vrot.lane.b32.xlu0 %v938, 111
    %v1489 = vpop.permute.xlu0 %1488
    %1490 = vrot.lane.b32.xlu0 %v942, 111
    %v1491 = vpop.permute.xlu0 %1490
    %1492 = vrot.lane.b32.xlu0 %v946, 111
    %v1493 = vpop.permute.xlu0 %1492
    %1494 = vrot.lane.b32.xlu0 %v935, 111
    %v1495 = vpop.permute.xlu0 %1494
    %1496 = vrot.lane.b32.xlu0 %v939, 111
    %v1497 = vpop.permute.xlu0 %1496
    %1498 = vrot.lane.b32.xlu0 %v943, 111
    %v1499 = vpop.permute.xlu0 %1498
    %1500 = vrot.lane.b32.xlu0 %v947, 111
    %v1501 = vpop.permute.xlu0 %1500
    %1502 = vrot.lane.b32.xlu0 %v936, 111
    %v1503 = vpop.permute.xlu0 %1502
    %1504 = vrot.lane.b32.xlu0 %v940, 111
    %v1505 = vpop.permute.xlu0 %1504
    %1506 = vrot.lane.b32.xlu0 %v944, 111
    %v1507 = vpop.permute.xlu0 %1506
    %1508 = vrot.lane.b32.xlu0 %v948, 111
    %v1509 = vpop.permute.xlu0 %1508
    %v1510 = vsel %vm782, %v1495, %v1503
    %v1511 = vsel %vm782, %v1497, %v1505
    %v1512 = vsel %vm782, %v1499, %v1507
    %v1513 = vsel %vm782, %v1501, %v1509
    %v1514 = vsel %vm782, %v1487, %v1495
    %v1515 = vsel %vm782, %v1489, %v1497
    %v1516 = vsel %vm782, %v1491, %v1499
    %v1517 = vsel %vm782, %v1493, %v1501
    %v1518 = vsel %vm782, %v1479, %v1487
    %v1519 = vsel %vm782, %v1481, %v1489
    %v1520 = vsel %vm782, %v1483, %v1491
    %v1521 = vsel %vm782, %v1485, %v1493
    %v1522 = vsel %vm782, %v1503, %v1479
    %v1523 = vsel %vm782, %v1505, %v1481
    %v1524 = vsel %vm782, %v1507, %v1483
    %v1525 = vsel %vm782, %v1509, %v1485
    %v1526 = vmul.f32 %v1518, %v208
    %v1527 = vmul.f32 %v1514, %v212
    %v1528 = vmul.f32 %v1510, %v216
    %v1529 = vmul.f32 %v1522, %v220
    %v1530 = vmul.f32 %v1519, %v208
    %v1531 = vmul.f32 %v1515, %v212
    %v1532 = vmul.f32 %v1511, %v216
    %v1533 = vmul.f32 %v1523, %v220
    %v1534 = vmul.f32 %v1520, %v208
    %v1535 = vmul.f32 %v1516, %v212
    %v1536 = vmul.f32 %v1512, %v216
    %v1537 = vmul.f32 %v1524, %v220
    %v1538 = vmul.f32 %v1521, %v208
    %v1539 = vmul.f32 %v1517, %v212
    %v1540 = vmul.f32 %v1513, %v216
    %v1541 = vmul.f32 %v1525, %v220
    %v1542 = vpack.c.bf16 %v1530, %v1526
    %v1543 = vpack.c.bf16 %v1531, %v1527
    %v1544 = vpack.c.bf16 %v1532, %v1528
    %v1545 = vpack.c.bf16 %v1533, %v1529
    %v1546 = vpack.c.bf16 %v1538, %v1534
    %v1547 = vpack.c.bf16 %v1539, %v1535
    %v1548 = vpack.c.bf16 %v1540, %v1536
    %v1549 = vpack.c.bf16 %v1541, %v1537
    %v1558 = vunpack.c.l.b16 %v950
    %v1559 = vunpack.c.h.b16 %v950
    %v1560 = vunpack.c.l.b16 %v951
    %v1561 = vunpack.c.l.b16 %v952
    %v1562 = vunpack.c.h.b16 %v952
    %v1563 = vunpack.c.l.b16 %v953
    %v1564 = vunpack.c.l.b16 %v954
    %v1565 = vunpack.c.h.b16 %v954
    %v1566 = vunpack.c.l.b16 %v955
    %v1567 = vunpack.c.l.b16 %v956
    %v1568 = vunpack.c.h.b16 %v956
    %v1569 = vunpack.c.l.b16 %v957
    %v1570 = vpack.c.b16 %v1561, %v1558
    %v1571 = vpack.c.b16 %v1562, %v1559
    %v1572 = vpack.c.b16 %v1563, %v1560
    %v1573 = vpack.c.b16 %v1567, %v1564
    %v1574 = vpack.c.b16 %v1568, %v1565
    %v1575 = vpack.c.b16 %v1569, %v1566
    %vm1580 = vcmask 261120
    %v1582 = vsel %vm1580, %v1572, 0
    %v1585 = vsel %vm1580, %v1575, 0
    %1587 = vmatprep.subr.bf16.mxu0 %v1251
    %1588 = vmatpush1.bf16.msra.mxu0 %v1250
    %1589 = vmatprep.subr.bf16.mxu0 %v1247
    %1590 = vmatpush1.bf16.msra.mxu0 %v1246
    %1591 = vmatprep.subr.bf16.mxu0 %v1179
    %1592 = vmatpush1.bf16.msra.mxu0 %v1178
    %1593 = vmatprep.subr.bf16.mxu0 %v1175
    %1594 = vmatpush1.bf16.msra.mxu0 %v1174
    %1595 = vmatprep.subr.bf16.mxu0 %v1107
    %1596 = vmatpush1.bf16.msra.mxu0 %v1106
    %1597 = vmatprep.subr.bf16.mxu0 %v1103
    %1598 = vmatpush1.bf16.msra.mxu0 %v1102
    %1599 = vmatprep.subr.bf16.mxu0 %v1035
    %1600 = vmatpush1.bf16.msra.mxu0 %v1034
    %1601 = vmatprep.subr.bf16.mxu0 %v1031
    %1602 = vmatpush1.bf16.msra.mxu0 %v1030
    %1603 = vmatprep.subr.bf16.mxu0 %v1475
    %1604 = vmatpush2.bf16.msra.mxu0 %v1474
    %1605 = vmatprep.subr.bf16.mxu0 %v1471
    %1606 = vmatpush2.bf16.msra.mxu0 %v1470
    %1607 = vmatprep.subr.bf16.mxu0 %v1403
    %1608 = vmatpush2.bf16.msra.mxu0 %v1402
    %1609 = vmatprep.subr.bf16.mxu0 %v1399
    %1610 = vmatpush2.bf16.msra.mxu0 %v1398
    %1611 = vmatprep.subr.bf16.mxu0 %v1331
    %1612 = vmatpush2.bf16.msra.mxu0 %v1330
    %1613 = vmatprep.subr.bf16.mxu0 %v1327
    %1614 = vmatpush2.bf16.msra.mxu0 %v1326
    %1615 = vmatprep.subr.bf16.mxu0 %v1259
    %1616 = vmatpush2.bf16.msra.mxu0 %v1258
    %1617 = vmatprep.subr.bf16.mxu0 %v1255
    %1618 = vmatpush2.bf16.msra.mxu0 %v1254
    %1619 = vmatprep.mubr.bf16.mxu0 %v1571
    %1620 = vmatmul.mubr.bf16.gmra.mxu0 %v1570
    %v1621 = vpop.f32.mrf.mxu0
    %v1622 = vadd.f32 0.0, %v1621
    %v1623 = vpop.f32.mrf.mxu0
    %v1624 = vadd.f32 0.0, %v1623
    %v1625 = vpop.f32.mrf.mxu0
    %v1626 = vadd.f32 0.0, %v1625
    %v1627 = vpop.f32.mrf.mxu0
    %v1628 = vadd.f32 0.0, %v1627
    %1629 = vmatprep.mubr.bf16.mxu0 %v1574
    %1630 = vmatmul.mubr.bf16.gmra.mxu0 %v1573
    %v1631 = vpop.f32.mrf.mxu0
    %v1632 = vadd.f32 0.0, %v1631
    %v1633 = vpop.f32.mrf.mxu0
    %v1634 = vadd.f32 0.0, %v1633
    %v1635 = vpop.f32.mrf.mxu0
    %v1636 = vadd.f32 0.0, %v1635
    %v1637 = vpop.f32.mrf.mxu0
    %v1638 = vadd.f32 0.0, %v1637
    %1639 = vdwg.mxu0
    %1640 = vmatprep.subr.bf16.mxu0 0
    %1641 = vmatpush1.bf16.msra.mxu0 0
    %1642 = vmatprep.subr.bf16.mxu0 0
    %1643 = vmatpush1.bf16.msra.mxu0 0
    %1644 = vmatprep.subr.bf16.mxu0 0
    %1645 = vmatpush1.bf16.msra.mxu0 0
    %1646 = vmatprep.subr.bf16.mxu0 0
    %1647 = vmatpush1.bf16.msra.mxu0 0
    %1648 = vmatprep.subr.bf16.mxu0 0
    %1649 = vmatpush1.bf16.msra.mxu0 0
    %1650 = vmatprep.subr.bf16.mxu0 0
    %1651 = vmatpush1.bf16.msra.mxu0 0
    %1652 = vmatprep.subr.bf16.mxu0 %v1547
    %1653 = vmatpush1.bf16.msra.mxu0 %v1546
    %1654 = vmatprep.subr.bf16.mxu0 %v1543
    %1655 = vmatpush1.bf16.msra.mxu0 %v1542
    %1656 = vmatprep.subr.bf16.mxu0 0
    %1657 = vmatpush2.bf16.msra.mxu0 0
    %1658 = vmatprep.subr.bf16.mxu0 0
    %1659 = vmatpush2.bf16.msra.mxu0 0
    %1660 = vmatprep.subr.bf16.mxu0 0
    %1661 = vmatpush2.bf16.msra.mxu0 0
    %1662 = vmatprep.subr.bf16.mxu0 0
    %1663 = vmatpush2.bf16.msra.mxu0 0
    %1664 = vmatprep.subr.bf16.mxu0 0
    %1665 = vmatpush2.bf16.msra.mxu0 0
    %1666 = vmatprep.subr.bf16.mxu0 0
    %1667 = vmatpush2.bf16.msra.mxu0 0
    %1668 = vmatprep.subr.bf16.mxu0 0
    %1669 = vmatpush2.bf16.msra.mxu0 0
    %1670 = vmatprep.subr.bf16.mxu0 0
    %1671 = vmatpush2.bf16.msra.mxu0 0
    %1672 = vmatprep.mubr.bf16.mxu0 0
    %1673 = vmatmul.mubr.bf16.gmra.mxu0 %v1582
    %v1674 = vpop.f32.mrf.mxu0
    %v1675 = vadd.f32 %v1622, %v1674
    %v1676 = vpop.f32.mrf.mxu0
    %v1677 = vadd.f32 %v1624, %v1676
    %v1678 = vpop.f32.mrf.mxu0
    %v1679 = vadd.f32 %v1626, %v1678
    %v1680 = vpop.f32.mrf.mxu0
    %v1681 = vadd.f32 %v1628, %v1680
    %1682 = vmatprep.mubr.bf16.mxu0 0
    %1683 = vmatmul.mubr.bf16.gmra.mxu0 %v1585
    %v1684 = vpop.f32.mrf.mxu0
    %v1685 = vadd.f32 %v1632, %v1684
    %v1686 = vpop.f32.mrf.mxu0
    %v1687 = vadd.f32 %v1634, %v1686
    %v1688 = vpop.f32.mrf.mxu0
    %v1689 = vadd.f32 %v1636, %v1688
    %v1690 = vpop.f32.mrf.mxu0
    %v1691 = vadd.f32 %v1638, %v1690
    %1692 = vdwg.mxu0
    %1693 = vmatprep.subr.bf16.mxu0 %v1253
    %1694 = vmatpush1.bf16.msra.mxu0 %v1252
    %1695 = vmatprep.subr.bf16.mxu0 %v1249
    %1696 = vmatpush1.bf16.msra.mxu0 %v1248
    %1697 = vmatprep.subr.bf16.mxu0 %v1181
    %1698 = vmatpush1.bf16.msra.mxu0 %v1180
    %1699 = vmatprep.subr.bf16.mxu0 %v1177
    %1700 = vmatpush1.bf16.msra.mxu0 %v1176
    %1701 = vmatprep.subr.bf16.mxu0 %v1109
    %1702 = vmatpush1.bf16.msra.mxu0 %v1108
    %1703 = vmatprep.subr.bf16.mxu0 %v1105
    %1704 = vmatpush1.bf16.msra.mxu0 %v1104
    %1705 = vmatprep.subr.bf16.mxu0 %v1037
    %1706 = vmatpush1.bf16.msra.mxu0 %v1036
    %1707 = vmatprep.subr.bf16.mxu0 %v1033
    %1708 = vmatpush1.bf16.msra.mxu0 %v1032
    %1709 = vmatprep.subr.bf16.mxu0 %v1477
    %1710 = vmatpush2.bf16.msra.mxu0 %v1476
    %1711 = vmatprep.subr.bf16.mxu0 %v1473
    %1712 = vmatpush2.bf16.msra.mxu0 %v1472
    %1713 = vmatprep.subr.bf16.mxu0 %v1405
    %1714 = vmatpush2.bf16.msra.mxu0 %v1404
    %1715 = vmatprep.subr.bf16.mxu0 %v1401
    %1716 = vmatpush2.bf16.msra.mxu0 %v1400
    %1717 = vmatprep.subr.bf16.mxu0 %v1333
    %1718 = vmatpush2.bf16.msra.mxu0 %v1332
    %1719 = vmatprep.subr.bf16.mxu0 %v1329
    %1720 = vmatpush2.bf16.msra.mxu0 %v1328
    %1721 = vmatprep.subr.bf16.mxu0 %v1261
    %1722 = vmatpush2.bf16.msra.mxu0 %v1260
    %1723 = vmatprep.subr.bf16.mxu0 %v1257
    %1724 = vmatpush2.bf16.msra.mxu0 %v1256
    %1725 = vmatprep.mubr.bf16.mxu0 %v1571
    %1726 = vmatmul.mubr.bf16.gmra.mxu0 %v1570
    %v1727 = vpop.f32.mrf.mxu0
    %v1728 = vadd.f32 0.0, %v1727
    %v1729 = vpop.f32.mrf.mxu0
    %v1730 = vadd.f32 0.0, %v1729
    %v1731 = vpop.f32.mrf.mxu0
    %v1732 = vadd.f32 0.0, %v1731
    %v1733 = vpop.f32.mrf.mxu0
    %v1734 = vadd.f32 0.0, %v1733
    %1735 = vmatprep.mubr.bf16.mxu0 %v1574
    %1736 = vmatmul.mubr.bf16.gmra.mxu0 %v1573
    %v1737 = vpop.f32.mrf.mxu0
    %v1738 = vadd.f32 0.0, %v1737
    %v1739 = vpop.f32.mrf.mxu0
    %v1740 = vadd.f32 0.0, %v1739
    %v1741 = vpop.f32.mrf.mxu0
    %v1742 = vadd.f32 0.0, %v1741
    %v1743 = vpop.f32.mrf.mxu0
    %v1744 = vadd.f32 0.0, %v1743
    %1745 = vdwg.mxu0
    %1746 = vmatprep.subr.bf16.mxu0 0
    %1747 = vmatpush1.bf16.msra.mxu0 0
    %1748 = vmatprep.subr.bf16.mxu0 0
    %1749 = vmatpush1.bf16.msra.mxu0 0
    %1750 = vmatprep.subr.bf16.mxu0 0
    %1751 = vmatpush1.bf16.msra.mxu0 0
    %1752 = vmatprep.subr.bf16.mxu0 0
    %1753 = vmatpush1.bf16.msra.mxu0 0
    %1754 = vmatprep.subr.bf16.mxu0 0
    %1755 = vmatpush1.bf16.msra.mxu0 0
    %1756 = vmatprep.subr.bf16.mxu0 0
    %1757 = vmatpush1.bf16.msra.mxu0 0
    %1758 = vmatprep.subr.bf16.mxu0 %v1549
    %1759 = vmatpush1.bf16.msra.mxu0 %v1548
    %1760 = vmatprep.subr.bf16.mxu0 %v1545
    %1761 = vmatpush1.bf16.msra.mxu0 %v1544
    %1762 = vmatprep.subr.bf16.mxu0 0
    %1763 = vmatpush2.bf16.msra.mxu0 0
    %1764 = vmatprep.subr.bf16.mxu0 0
    %1765 = vmatpush2.bf16.msra.mxu0 0
    %1766 = vmatprep.subr.bf16.mxu0 0
    %1767 = vmatpush2.bf16.msra.mxu0 0
    %1768 = vmatprep.subr.bf16.mxu0 0
    %1769 = vmatpush2.bf16.msra.mxu0 0
    %1770 = vmatprep.subr.bf16.mxu0 0
    %1771 = vmatpush2.bf16.msra.mxu0 0
    %1772 = vmatprep.subr.bf16.mxu0 0
    %1773 = vmatpush2.bf16.msra.mxu0 0
    %1774 = vmatprep.subr.bf16.mxu0 0
    %1775 = vmatpush2.bf16.msra.mxu0 0
    %1776 = vmatprep.subr.bf16.mxu0 0
    %1777 = vmatpush2.bf16.msra.mxu0 0
    %1778 = vmatprep.mubr.bf16.mxu0 0
    %1779 = vmatmul.mubr.bf16.gmra.mxu0 %v1582
    %v1780 = vpop.f32.mrf.mxu0
    %v1781 = vadd.f32 %v1728, %v1780
    %v1782 = vpop.f32.mrf.mxu0
    %v1783 = vadd.f32 %v1730, %v1782
    %v1784 = vpop.f32.mrf.mxu0
    %v1785 = vadd.f32 %v1732, %v1784
    %v1786 = vpop.f32.mrf.mxu0
    %v1787 = vadd.f32 %v1734, %v1786
    %1788 = vmatprep.mubr.bf16.mxu0 0
    %1789 = vmatmul.mubr.bf16.gmra.mxu0 %v1585
    %v1790 = vpop.f32.mrf.mxu0
    %v1791 = vadd.f32 %v1738, %v1790
    %v1792 = vpop.f32.mrf.mxu0
    %v1793 = vadd.f32 %v1740, %v1792
    %v1794 = vpop.f32.mrf.mxu0
    %v1795 = vadd.f32 %v1742, %v1794
    %v1796 = vpop.f32.mrf.mxu0
    %v1797 = vadd.f32 %v1744, %v1796
    %1798 = vdwg.mxu0
    %1800 = vset.pattern.permute.xlu0 0
    %1801 = vperm.xlu0 %1800, %v958
    %v1802 = vpop.permute.xlu0 %1801
    %1805 = vset.pattern.permute.xlu0 0
    %1806 = vperm.xlu0 %1805, %v959
    %v1807 = vpop.permute.xlu0 %1806
    %1810 = vset.pattern.permute.xlu0 0
    %1811 = vperm.xlu0 %1810, %v960
    %v1812 = vpop.permute.xlu0 %1811
    %1815 = vset.pattern.permute.xlu0 0
    %1816 = vperm.xlu0 %1815, %v961
    %v1817 = vpop.permute.xlu0 %1816
    %v1819 = vmul.f32 %v1675, %v1802
    %v1820 = vmul.f32 %v1677, %v1802
    %v1821 = vmul.f32 %v1781, %v1802
    %v1822 = vmul.f32 %v1783, %v1802
    %v1823 = vmul.f32 %v1679, %v1807
    %v1824 = vmul.f32 %v1681, %v1807
    %v1825 = vmul.f32 %v1785, %v1807
    %v1826 = vmul.f32 %v1787, %v1807
    %v1827 = vmul.f32 %v1685, %v1812
    %v1828 = vmul.f32 %v1687, %v1812
    %v1829 = vmul.f32 %v1791, %v1812
    %v1830 = vmul.f32 %v1793, %v1812
    %v1831 = vmul.f32 %v1689, %v1817
    %v1832 = vmul.f32 %v1691, %v1817
    %v1833 = vmul.f32 %v1795, %v1817
    %v1834 = vmul.f32 %v1797, %v1817
    %1836 = vset.pattern.permute.xlu0 0
    %1837 = vperm.xlu0 %1836, %v962
    %v1838 = vpop.permute.xlu0 %1837
    %1841 = vset.pattern.permute.xlu0 0
    %1842 = vperm.xlu0 %1841, %v963
    %v1843 = vpop.permute.xlu0 %1842
    %1846 = vset.pattern.permute.xlu0 0
    %1847 = vperm.xlu0 %1846, %v964
    %v1848 = vpop.permute.xlu0 %1847
    %1851 = vset.pattern.permute.xlu0 0
    %1852 = vperm.xlu0 %1851, %v965
    %v1853 = vpop.permute.xlu0 %1852
    %v1855 = vadd.f32 %v1819, %v1838
    %v1856 = vadd.f32 %v1820, %v1838
    %v1857 = vadd.f32 %v1821, %v1838
    %v1858 = vadd.f32 %v1822, %v1838
    %v1859 = vadd.f32 %v1823, %v1843
    %v1860 = vadd.f32 %v1824, %v1843
    %v1861 = vadd.f32 %v1825, %v1843
    %v1862 = vadd.f32 %v1826, %v1843
    %v1863 = vadd.f32 %v1827, %v1848
    %v1864 = vadd.f32 %v1828, %v1848
    %v1865 = vadd.f32 %v1829, %v1848
    %v1866 = vadd.f32 %v1830, %v1848
    %v1867 = vadd.f32 %v1831, %v1853
    %v1868 = vadd.f32 %v1832, %v1853
    %v1869 = vadd.f32 %v1833, %v1853
    %v1870 = vadd.f32 %v1834, %v1853
    %v1871 = vmax.f32 %v1855, 0.0
    %v1872 = vmax.f32 %v1856, 0.0
    %v1873 = vmax.f32 %v1857, 0.0
    %v1874 = vmax.f32 %v1858, 0.0
    %v1875 = vmax.f32 %v1859, 0.0
    %v1876 = vmax.f32 %v1860, 0.0
    %v1877 = vmax.f32 %v1861, 0.0
    %v1878 = vmax.f32 %v1862, 0.0
    %v1879 = vmax.f32 %v1863, 0.0
    %v1880 = vmax.f32 %v1864, 0.0
    %v1881 = vmax.f32 %v1865, 0.0
    %v1882 = vmax.f32 %v1866, 0.0
    %v1883 = vmax.f32 %v1867, 0.0
    %v1884 = vmax.f32 %v1868, 0.0
    %v1885 = vmax.f32 %v1869, 0.0
    %v1886 = vmax.f32 %v1870, 0.0
    %s1887 = scalar_lea.vmem [#allocation2], 96
    %v1888 = vld [vmem:[%s1887] sm:$0xff]
    %v1889 = vld [vmem:[%s1887 + $0x8] sm:$0xf]
    %v1890 = vld [vmem:[%s1887 + $0xc] sm:$0xff]
    %v1891 = vld [vmem:[%s1887 + $0x14] sm:$0xf]
    %v1892 = vld [vmem:[%s1887 + $0x18] sm:$0xff]
    %v1893 = vld [vmem:[%s1887 + $0x20] sm:$0xf]
    %v1894 = vld [vmem:[%s1887 + $0x24] sm:$0xff]
    %v1895 = vld [vmem:[%s1887 + $0x2c] sm:$0xf]
    %s1896 = scalar_lea.vmem %s5, 32
    %v1897 = vld [vmem:[%s1896] sm:$0xff]
    %v1898 = vld [vmem:[%s1896 + $0x8] sm:$0xff]
    %v1899 = vld [vmem:[%s1896 + $0x10] sm:$0xff]
    %v1900 = vld [vmem:[%s1896 + $0x18] sm:$0xff]
    %s1901 = scalar_lea.vmem %s6, 32
    %v1902 = vld [vmem:[%s1901] sm:$0xff]
    %v1903 = vld [vmem:[%s1901 + $0x8] sm:$0xff]
    %v1904 = vld [vmem:[%s1901 + $0x10] sm:$0xff]
    %v1905 = vld [vmem:[%s1901 + $0x18] sm:$0xff]
    %1906 = vrot.lane.b32.xlu0 %v1871, 17
    %v1907 = vpop.permute.xlu0 %1906
    %1908 = vrot.lane.b32.xlu0 %v1875, 17
    %v1909 = vpop.permute.xlu0 %1908
    %1910 = vrot.lane.b32.xlu0 %v1879, 17
    %v1911 = vpop.permute.xlu0 %1910
    %1912 = vrot.lane.b32.xlu0 %v1883, 17
    %v1913 = vpop.permute.xlu0 %1912
    %1914 = vrot.lane.b32.xlu0 %v1872, 17
    %v1915 = vpop.permute.xlu0 %1914
    %1916 = vrot.lane.b32.xlu0 %v1876, 17
    %v1917 = vpop.permute.xlu0 %1916
    %1918 = vrot.lane.b32.xlu0 %v1880, 17
    %v1919 = vpop.permute.xlu0 %1918
    %1920 = vrot.lane.b32.xlu0 %v1884, 17
    %v1921 = vpop.permute.xlu0 %1920
    %1922 = vrot.lane.b32.xlu0 %v1873, 17
    %v1923 = vpop.permute.xlu0 %1922
    %1924 = vrot.lane.b32.xlu0 %v1877, 17
    %v1925 = vpop.permute.xlu0 %1924
    %1926 = vrot.lane.b32.xlu0 %v1881, 17
    %v1927 = vpop.permute.xlu0 %1926
    %1928 = vrot.lane.b32.xlu0 %v1885, 17
    %v1929 = vpop.permute.xlu0 %1928
    %1930 = vrot.lane.b32.xlu0 %v1874, 17
    %v1931 = vpop.permute.xlu0 %1930
    %1932 = vrot.lane.b32.xlu0 %v1878, 17
    %v1933 = vpop.permute.xlu0 %1932
    %1934 = vrot.lane.b32.xlu0 %v1882, 17
    %v1935 = vpop.permute.xlu0 %1934
    %1936 = vrot.lane.b32.xlu0 %v1886, 17
    %v1937 = vpop.permute.xlu0 %1936
    %v1938 = vsel %vm519, %v1923, %v1931
    %v1939 = vsel %vm519, %v1925, %v1933
    %v1940 = vsel %vm519, %v1927, %v1935
    %v1941 = vsel %vm519, %v1929, %v1937
    %v1942 = vsel %vm519, %v1915, %v1923
    %v1943 = vsel %vm519, %v1917, %v1925
    %v1944 = vsel %vm519, %v1919, %v1927
    %v1945 = vsel %vm519, %v1921, %v1929
    %v1946 = vsel %vm519, %v1907, %v1915
    %v1947 = vsel %vm519, %v1909, %v1917
    %v1948 = vsel %vm519, %v1911, %v1919
    %v1949 = vsel %vm519, %v1913, %v1921
    %v1950 = vsel %vm519, %v1931, %v1907
    %v1951 = vsel %vm519, %v1933, %v1909
    %v1952 = vsel %vm519, %v1935, %v1911
    %v1953 = vsel %vm519, %v1937, %v1913
    %v1954 = vmul.f32 %v1950, %v47
    %v1955 = vmul.f32 %v1946, %v51
    %v1956 = vmul.f32 %v1942, %v55
    %v1957 = vmul.f32 %v1938, %v59
    %v1958 = vmul.f32 %v1951, %v47
    %v1959 = vmul.f32 %v1947, %v51
    %v1960 = vmul.f32 %v1943, %v55
    %v1961 = vmul.f32 %v1939, %v59
    %v1962 = vmul.f32 %v1952, %v47
    %v1963 = vmul.f32 %v1948, %v51
    %v1964 = vmul.f32 %v1944, %v55
    %v1965 = vmul.f32 %v1940, %v59
    %v1966 = vmul.f32 %v1953, %v47
    %v1967 = vmul.f32 %v1949, %v51
    %v1968 = vmul.f32 %v1945, %v55
    %v1969 = vmul.f32 %v1941, %v59
    %v1970 = vpack.c.bf16 %v1958, %v1954
    %v1971 = vpack.c.bf16 %v1959, %v1955
    %v1972 = vpack.c.bf16 %v1960, %v1956
    %v1973 = vpack.c.bf16 %v1961, %v1957
    %v1974 = vpack.c.bf16 %v1966, %v1962
    %v1975 = vpack.c.bf16 %v1967, %v1963
    %v1976 = vpack.c.bf16 %v1968, %v1964
    %v1977 = vpack.c.bf16 %v1969, %v1965
    %1978 = vrot.lane.b32.xlu0 %v1871, 16
    %v1979 = vpop.permute.xlu0 %1978
    %1980 = vrot.lane.b32.xlu0 %v1875, 16
    %v1981 = vpop.permute.xlu0 %1980
    %1982 = vrot.lane.b32.xlu0 %v1879, 16
    %v1983 = vpop.permute.xlu0 %1982
    %1984 = vrot.lane.b32.xlu0 %v1883, 16
    %v1985 = vpop.permute.xlu0 %1984
    %1986 = vrot.lane.b32.xlu0 %v1872, 16
    %v1987 = vpop.permute.xlu0 %1986
    %1988 = vrot.lane.b32.xlu0 %v1876, 16
    %v1989 = vpop.permute.xlu0 %1988
    %1990 = vrot.lane.b32.xlu0 %v1880, 16
    %v1991 = vpop.permute.xlu0 %1990
    %1992 = vrot.lane.b32.xlu0 %v1884, 16
    %v1993 = vpop.permute.xlu0 %1992
    %1994 = vrot.lane.b32.xlu0 %v1873, 16
    %v1995 = vpop.permute.xlu0 %1994
    %1996 = vrot.lane.b32.xlu0 %v1877, 16
    %v1997 = vpop.permute.xlu0 %1996
    %1998 = vrot.lane.b32.xlu0 %v1881, 16
    %v1999 = vpop.permute.xlu0 %1998
    %2000 = vrot.lane.b32.xlu0 %v1885, 16
    %v2001 = vpop.permute.xlu0 %2000
    %2002 = vrot.lane.b32.xlu0 %v1874, 16
    %v2003 = vpop.permute.xlu0 %2002
    %2004 = vrot.lane.b32.xlu0 %v1878, 16
    %v2005 = vpop.permute.xlu0 %2004
    %2006 = vrot.lane.b32.xlu0 %v1882, 16
    %v2007 = vpop.permute.xlu0 %2006
    %2008 = vrot.lane.b32.xlu0 %v1886, 16
    %v2009 = vpop.permute.xlu0 %2008
    %v2010 = vsel %vm556, %v1995, %v2003
    %v2011 = vsel %vm556, %v1997, %v2005
    %v2012 = vsel %vm556, %v1999, %v2007
    %v2013 = vsel %vm556, %v2001, %v2009
    %v2014 = vsel %vm556, %v1987, %v1995
    %v2015 = vsel %vm556, %v1989, %v1997
    %v2016 = vsel %vm556, %v1991, %v1999
    %v2017 = vsel %vm556, %v1993, %v2001
    %v2018 = vsel %vm556, %v1979, %v1987
    %v2019 = vsel %vm556, %v1981, %v1989
    %v2020 = vsel %vm556, %v1983, %v1991
    %v2021 = vsel %vm556, %v1985, %v1993
    %v2022 = vsel %vm556, %v2003, %v1979
    %v2023 = vsel %vm556, %v2005, %v1981
    %v2024 = vsel %vm556, %v2007, %v1983
    %v2025 = vsel %vm556, %v2009, %v1985
    %v2026 = vmul.f32 %v2022, %v70
    %v2027 = vmul.f32 %v2018, %v74
    %v2028 = vmul.f32 %v2014, %v78
    %v2029 = vmul.f32 %v2010, %v82
    %v2030 = vmul.f32 %v2023, %v70
    %v2031 = vmul.f32 %v2019, %v74
    %v2032 = vmul.f32 %v2015, %v78
    %v2033 = vmul.f32 %v2011, %v82
    %v2034 = vmul.f32 %v2024, %v70
    %v2035 = vmul.f32 %v2020, %v74
    %v2036 = vmul.f32 %v2016, %v78
    %v2037 = vmul.f32 %v2012, %v82
    %v2038 = vmul.f32 %v2025, %v70
    %v2039 = vmul.f32 %v2021, %v74
    %v2040 = vmul.f32 %v2017, %v78
    %v2041 = vmul.f32 %v2013, %v82
    %v2042 = vpack.c.bf16 %v2030, %v2026
    %v2043 = vpack.c.bf16 %v2031, %v2027
    %v2044 = vpack.c.bf16 %v2032, %v2028
    %v2045 = vpack.c.bf16 %v2033, %v2029
    %v2046 = vpack.c.bf16 %v2038, %v2034
    %v2047 = vpack.c.bf16 %v2039, %v2035
    %v2048 = vpack.c.bf16 %v2040, %v2036
    %v2049 = vpack.c.bf16 %v2041, %v2037
    %2050 = vrot.lane.b32.xlu0 %v1871, 15
    %v2051 = vpop.permute.xlu0 %2050
    %2052 = vrot.lane.b32.xlu0 %v1875, 15
    %v2053 = vpop.permute.xlu0 %2052
    %2054 = vrot.lane.b32.xlu0 %v1879, 15
    %v2055 = vpop.permute.xlu0 %2054
    %2056 = vrot.lane.b32.xlu0 %v1883, 15
    %v2057 = vpop.permute.xlu0 %2056
    %2058 = vrot.lane.b32.xlu0 %v1872, 15
    %v2059 = vpop.permute.xlu0 %2058
    %2060 = vrot.lane.b32.xlu0 %v1876, 15
    %v2061 = vpop.permute.xlu0 %2060
    %2062 = vrot.lane.b32.xlu0 %v1880, 15
    %v2063 = vpop.permute.xlu0 %2062
    %2064 = vrot.lane.b32.xlu0 %v1884, 15
    %v2065 = vpop.permute.xlu0 %2064
    %2066 = vrot.lane.b32.xlu0 %v1873, 15
    %v2067 = vpop.permute.xlu0 %2066
    %2068 = vrot.lane.b32.xlu0 %v1877, 15
    %v2069 = vpop.permute.xlu0 %2068
    %2070 = vrot.lane.b32.xlu0 %v1881, 15
    %v2071 = vpop.permute.xlu0 %2070
    %2072 = vrot.lane.b32.xlu0 %v1885, 15
    %v2073 = vpop.permute.xlu0 %2072
    %2074 = vrot.lane.b32.xlu0 %v1874, 15
    %v2075 = vpop.permute.xlu0 %2074
    %2076 = vrot.lane.b32.xlu0 %v1878, 15
    %v2077 = vpop.permute.xlu0 %2076
    %2078 = vrot.lane.b32.xlu0 %v1882, 15
    %v2079 = vpop.permute.xlu0 %2078
    %2080 = vrot.lane.b32.xlu0 %v1886, 15
    %v2081 = vpop.permute.xlu0 %2080
    %v2082 = vsel %vm593, %v2067, %v2075
    %v2083 = vsel %vm593, %v2069, %v2077
    %v2084 = vsel %vm593, %v2071, %v2079
    %v2085 = vsel %vm593, %v2073, %v2081
    %v2086 = vsel %vm593, %v2059, %v2067
    %v2087 = vsel %vm593, %v2061, %v2069
    %v2088 = vsel %vm593, %v2063, %v2071
    %v2089 = vsel %vm593, %v2065, %v2073
    %v2090 = vsel %vm593, %v2051, %v2059
    %v2091 = vsel %vm593, %v2053, %v2061
    %v2092 = vsel %vm593, %v2055, %v2063
    %v2093 = vsel %vm593, %v2057, %v2065
    %v2094 = vsel %vm593, %v2075, %v2051
    %v2095 = vsel %vm593, %v2077, %v2053
    %v2096 = vsel %vm593, %v2079, %v2055
    %v2097 = vsel %vm593, %v2081, %v2057
    %v2098 = vmul.f32 %v2094, %v93
    %v2099 = vmul.f32 %v2090, %v97
    %v2100 = vmul.f32 %v2086, %v101
    %v2101 = vmul.f32 %v2082, %v105
    %v2102 = vmul.f32 %v2095, %v93
    %v2103 = vmul.f32 %v2091, %v97
    %v2104 = vmul.f32 %v2087, %v101
    %v2105 = vmul.f32 %v2083, %v105
    %v2106 = vmul.f32 %v2096, %v93
    %v2107 = vmul.f32 %v2092, %v97
    %v2108 = vmul.f32 %v2088, %v101
    %v2109 = vmul.f32 %v2084, %v105
    %v2110 = vmul.f32 %v2097, %v93
    %v2111 = vmul.f32 %v2093, %v97
    %v2112 = vmul.f32 %v2089, %v101
    %v2113 = vmul.f32 %v2085, %v105
    %v2114 = vpack.c.bf16 %v2102, %v2098
    %v2115 = vpack.c.bf16 %v2103, %v2099
    %v2116 = vpack.c.bf16 %v2104, %v2100
    %v2117 = vpack.c.bf16 %v2105, %v2101
    %v2118 = vpack.c.bf16 %v2110, %v2106
    %v2119 = vpack.c.bf16 %v2111, %v2107
    %v2120 = vpack.c.bf16 %v2112, %v2108
    %v2121 = vpack.c.bf16 %v2113, %v2109
    %2122 = vrot.lane.b32.xlu0 %v1871, 1
    %v2123 = vpop.permute.xlu0 %2122
    %2124 = vrot.lane.b32.xlu0 %v1875, 1
    %v2125 = vpop.permute.xlu0 %2124
    %2126 = vrot.lane.b32.xlu0 %v1879, 1
    %v2127 = vpop.permute.xlu0 %2126
    %2128 = vrot.lane.b32.xlu0 %v1883, 1
    %v2129 = vpop.permute.xlu0 %2128
    %2130 = vrot.lane.b32.xlu0 %v1872, 1
    %v2131 = vpop.permute.xlu0 %2130
    %2132 = vrot.lane.b32.xlu0 %v1876, 1
    %v2133 = vpop.permute.xlu0 %2132
    %2134 = vrot.lane.b32.xlu0 %v1880, 1
    %v2135 = vpop.permute.xlu0 %2134
    %2136 = vrot.lane.b32.xlu0 %v1884, 1
    %v2137 = vpop.permute.xlu0 %2136
    %2138 = vrot.lane.b32.xlu0 %v1873, 1
    %v2139 = vpop.permute.xlu0 %2138
    %2140 = vrot.lane.b32.xlu0 %v1877, 1
    %v2141 = vpop.permute.xlu0 %2140
    %2142 = vrot.lane.b32.xlu0 %v1881, 1
    %v2143 = vpop.permute.xlu0 %2142
    %2144 = vrot.lane.b32.xlu0 %v1885, 1
    %v2145 = vpop.permute.xlu0 %2144
    %2146 = vrot.lane.b32.xlu0 %v1874, 1
    %v2147 = vpop.permute.xlu0 %2146
    %2148 = vrot.lane.b32.xlu0 %v1878, 1
    %v2149 = vpop.permute.xlu0 %2148
    %2150 = vrot.lane.b32.xlu0 %v1882, 1
    %v2151 = vpop.permute.xlu0 %2150
    %2152 = vrot.lane.b32.xlu0 %v1886, 1
    %v2153 = vpop.permute.xlu0 %2152
    %v2154 = vsel %vm630, %v2139, %v2147
    %v2155 = vsel %vm630, %v2141, %v2149
    %v2156 = vsel %vm630, %v2143, %v2151
    %v2157 = vsel %vm630, %v2145, %v2153
    %v2158 = vsel %vm630, %v2131, %v2139
    %v2159 = vsel %vm630, %v2133, %v2141
    %v2160 = vsel %vm630, %v2135, %v2143
    %v2161 = vsel %vm630, %v2137, %v2145
    %v2162 = vsel %vm630, %v2123, %v2131
    %v2163 = vsel %vm630, %v2125, %v2133
    %v2164 = vsel %vm630, %v2127, %v2135
    %v2165 = vsel %vm630, %v2129, %v2137
    %v2166 = vsel %vm630, %v2147, %v2123
    %v2167 = vsel %vm630, %v2149, %v2125
    %v2168 = vsel %vm630, %v2151, %v2127
    %v2169 = vsel %vm630, %v2153, %v2129
    %v2170 = vmul.f32 %v2166, %v116
    %v2171 = vmul.f32 %v2162, %v120
    %v2172 = vmul.f32 %v2158, %v124
    %v2173 = vmul.f32 %v2154, %v128
    %v2174 = vmul.f32 %v2167, %v116
    %v2175 = vmul.f32 %v2163, %v120
    %v2176 = vmul.f32 %v2159, %v124
    %v2177 = vmul.f32 %v2155, %v128
    %v2178 = vmul.f32 %v2168, %v116
    %v2179 = vmul.f32 %v2164, %v120
    %v2180 = vmul.f32 %v2160, %v124
    %v2181 = vmul.f32 %v2156, %v128
    %v2182 = vmul.f32 %v2169, %v116
    %v2183 = vmul.f32 %v2165, %v120
    %v2184 = vmul.f32 %v2161, %v124
    %v2185 = vmul.f32 %v2157, %v128
    %v2186 = vpack.c.bf16 %v2174, %v2170
    %v2187 = vpack.c.bf16 %v2175, %v2171
    %v2188 = vpack.c.bf16 %v2176, %v2172
    %v2189 = vpack.c.bf16 %v2177, %v2173
    %v2190 = vpack.c.bf16 %v2182, %v2178
    %v2191 = vpack.c.bf16 %v2183, %v2179
    %v2192 = vpack.c.bf16 %v2184, %v2180
    %v2193 = vpack.c.bf16 %v2185, %v2181
    %v2194 = vpack.c.bf16 %v1875, %v1871
    %v2195 = vpack.c.bf16 %v1876, %v1872
    %v2196 = vpack.c.bf16 %v1877, %v1873
    %v2197 = vpack.c.bf16 %v1878, %v1874
    %v2198 = vpack.c.bf16 %v1883, %v1879
    %v2199 = vpack.c.bf16 %v1884, %v1880
    %v2200 = vpack.c.bf16 %v1885, %v1881
    %v2201 = vpack.c.bf16 %v1886, %v1882
    %2202 = vrot.lane.b32.xlu0 %v1871, 127
    %v2203 = vpop.permute.xlu0 %2202
    %2204 = vrot.lane.b32.xlu0 %v1875, 127
    %v2205 = vpop.permute.xlu0 %2204
    %2206 = vrot.lane.b32.xlu0 %v1879, 127
    %v2207 = vpop.permute.xlu0 %2206
    %2208 = vrot.lane.b32.xlu0 %v1883, 127
    %v2209 = vpop.permute.xlu0 %2208
    %2210 = vrot.lane.b32.xlu0 %v1872, 127
    %v2211 = vpop.permute.xlu0 %2210
    %2212 = vrot.lane.b32.xlu0 %v1876, 127
    %v2213 = vpop.permute.xlu0 %2212
    %2214 = vrot.lane.b32.xlu0 %v1880, 127
    %v2215 = vpop.permute.xlu0 %2214
    %2216 = vrot.lane.b32.xlu0 %v1884, 127
    %v2217 = vpop.permute.xlu0 %2216
    %2218 = vrot.lane.b32.xlu0 %v1873, 127
    %v2219 = vpop.permute.xlu0 %2218
    %2220 = vrot.lane.b32.xlu0 %v1877, 127
    %v2221 = vpop.permute.xlu0 %2220
    %2222 = vrot.lane.b32.xlu0 %v1881, 127
    %v2223 = vpop.permute.xlu0 %2222
    %2224 = vrot.lane.b32.xlu0 %v1885, 127
    %v2225 = vpop.permute.xlu0 %2224
    %2226 = vrot.lane.b32.xlu0 %v1874, 127
    %v2227 = vpop.permute.xlu0 %2226
    %2228 = vrot.lane.b32.xlu0 %v1878, 127
    %v2229 = vpop.permute.xlu0 %2228
    %2230 = vrot.lane.b32.xlu0 %v1882, 127
    %v2231 = vpop.permute.xlu0 %2230
    %2232 = vrot.lane.b32.xlu0 %v1886, 127
    %v2233 = vpop.permute.xlu0 %2232
    %v2234 = vsel %vm671, %v2219, %v2227
    %v2235 = vsel %vm671, %v2221, %v2229
    %v2236 = vsel %vm671, %v2223, %v2231
    %v2237 = vsel %vm671, %v2225, %v2233
    %v2238 = vsel %vm671, %v2211, %v2219
    %v2239 = vsel %vm671, %v2213, %v2221
    %v2240 = vsel %vm671, %v2215, %v2223
    %v2241 = vsel %vm671, %v2217, %v2225
    %v2242 = vsel %vm671, %v2203, %v2211
    %v2243 = vsel %vm671, %v2205, %v2213
    %v2244 = vsel %vm671, %v2207, %v2215
    %v2245 = vsel %vm671, %v2209, %v2217
    %v2246 = vsel %vm671, %v2227, %v2203
    %v2247 = vsel %vm671, %v2229, %v2205
    %v2248 = vsel %vm671, %v2231, %v2207
    %v2249 = vsel %vm671, %v2233, %v2209
    %v2250 = vmul.f32 %v2242, %v139
    %v2251 = vmul.f32 %v2238, %v143
    %v2252 = vmul.f32 %v2234, %v147
    %v2253 = vmul.f32 %v2246, %v151
    %v2254 = vmul.f32 %v2243, %v139
    %v2255 = vmul.f32 %v2239, %v143
    %v2256 = vmul.f32 %v2235, %v147
    %v2257 = vmul.f32 %v2247, %v151
    %v2258 = vmul.f32 %v2244, %v139
    %v2259 = vmul.f32 %v2240, %v143
    %v2260 = vmul.f32 %v2236, %v147
    %v2261 = vmul.f32 %v2248, %v151
    %v2262 = vmul.f32 %v2245, %v139
    %v2263 = vmul.f32 %v2241, %v143
    %v2264 = vmul.f32 %v2237, %v147
    %v2265 = vmul.f32 %v2249, %v151
    %v2266 = vpack.c.bf16 %v2254, %v2250
    %v2267 = vpack.c.bf16 %v2255, %v2251
    %v2268 = vpack.c.bf16 %v2256, %v2252
    %v2269 = vpack.c.bf16 %v2257, %v2253
    %v2270 = vpack.c.bf16 %v2262, %v2258
    %v2271 = vpack.c.bf16 %v2263, %v2259
    %v2272 = vpack.c.bf16 %v2264, %v2260
    %v2273 = vpack.c.bf16 %v2265, %v2261
    %2274 = vrot.lane.b32.xlu0 %v1871, 113
    %v2275 = vpop.permute.xlu0 %2274
    %2276 = vrot.lane.b32.xlu0 %v1875, 113
    %v2277 = vpop.permute.xlu0 %2276
    %2278 = vrot.lane.b32.xlu0 %v1879, 113
    %v2279 = vpop.permute.xlu0 %2278
    %2280 = vrot.lane.b32.xlu0 %v1883, 113
    %v2281 = vpop.permute.xlu0 %2280
    %2282 = vrot.lane.b32.xlu0 %v1872, 113
    %v2283 = vpop.permute.xlu0 %2282
    %2284 = vrot.lane.b32.xlu0 %v1876, 113
    %v2285 = vpop.permute.xlu0 %2284
    %2286 = vrot.lane.b32.xlu0 %v1880, 113
    %v2287 = vpop.permute.xlu0 %2286
    %2288 = vrot.lane.b32.xlu0 %v1884, 113
    %v2289 = vpop.permute.xlu0 %2288
    %2290 = vrot.lane.b32.xlu0 %v1873, 113
    %v2291 = vpop.permute.xlu0 %2290
    %2292 = vrot.lane.b32.xlu0 %v1877, 113
    %v2293 = vpop.permute.xlu0 %2292
    %2294 = vrot.lane.b32.xlu0 %v1881, 113
    %v2295 = vpop.permute.xlu0 %2294
    %2296 = vrot.lane.b32.xlu0 %v1885, 113
    %v2297 = vpop.permute.xlu0 %2296
    %2298 = vrot.lane.b32.xlu0 %v1874, 113
    %v2299 = vpop.permute.xlu0 %2298
    %2300 = vrot.lane.b32.xlu0 %v1878, 113
    %v2301 = vpop.permute.xlu0 %2300
    %2302 = vrot.lane.b32.xlu0 %v1882, 113
    %v2303 = vpop.permute.xlu0 %2302
    %2304 = vrot.lane.b32.xlu0 %v1886, 113
    %v2305 = vpop.permute.xlu0 %2304
    %v2306 = vsel %vm708, %v2291, %v2299
    %v2307 = vsel %vm708, %v2293, %v2301
    %v2308 = vsel %vm708, %v2295, %v2303
    %v2309 = vsel %vm708, %v2297, %v2305
    %v2310 = vsel %vm708, %v2283, %v2291
    %v2311 = vsel %vm708, %v2285, %v2293
    %v2312 = vsel %vm708, %v2287, %v2295
    %v2313 = vsel %vm708, %v2289, %v2297
    %v2314 = vsel %vm708, %v2275, %v2283
    %v2315 = vsel %vm708, %v2277, %v2285
    %v2316 = vsel %vm708, %v2279, %v2287
    %v2317 = vsel %vm708, %v2281, %v2289
    %v2318 = vsel %vm708, %v2299, %v2275
    %v2319 = vsel %vm708, %v2301, %v2277
    %v2320 = vsel %vm708, %v2303, %v2279
    %v2321 = vsel %vm708, %v2305, %v2281
    %v2322 = vmul.f32 %v2314, %v162
    %v2323 = vmul.f32 %v2310, %v166
    %v2324 = vmul.f32 %v2306, %v170
    %v2325 = vmul.f32 %v2318, %v174
    %v2326 = vmul.f32 %v2315, %v162
    %v2327 = vmul.f32 %v2311, %v166
    %v2328 = vmul.f32 %v2307, %v170
    %v2329 = vmul.f32 %v2319, %v174
    %v2330 = vmul.f32 %v2316, %v162
    %v2331 = vmul.f32 %v2312, %v166
    %v2332 = vmul.f32 %v2308, %v170
    %v2333 = vmul.f32 %v2320, %v174
    %v2334 = vmul.f32 %v2317, %v162
    %v2335 = vmul.f32 %v2313, %v166
    %v2336 = vmul.f32 %v2309, %v170
    %v2337 = vmul.f32 %v2321, %v174
    %v2338 = vpack.c.bf16 %v2326, %v2322
    %v2339 = vpack.c.bf16 %v2327, %v2323
    %v2340 = vpack.c.bf16 %v2328, %v2324
    %v2341 = vpack.c.bf16 %v2329, %v2325
    %v2342 = vpack.c.bf16 %v2334, %v2330
    %v2343 = vpack.c.bf16 %v2335, %v2331
    %v2344 = vpack.c.bf16 %v2336, %v2332
    %v2345 = vpack.c.bf16 %v2337, %v2333
    %2346 = vrot.lane.b32.xlu0 %v1871, 112
    %v2347 = vpop.permute.xlu0 %2346
    %2348 = vrot.lane.b32.xlu0 %v1875, 112
    %v2349 = vpop.permute.xlu0 %2348
    %2350 = vrot.lane.b32.xlu0 %v1879, 112
    %v2351 = vpop.permute.xlu0 %2350
    %2352 = vrot.lane.b32.xlu0 %v1883, 112
    %v2353 = vpop.permute.xlu0 %2352
    %2354 = vrot.lane.b32.xlu0 %v1872, 112
    %v2355 = vpop.permute.xlu0 %2354
    %2356 = vrot.lane.b32.xlu0 %v1876, 112
    %v2357 = vpop.permute.xlu0 %2356
    %2358 = vrot.lane.b32.xlu0 %v1880, 112
    %v2359 = vpop.permute.xlu0 %2358
    %2360 = vrot.lane.b32.xlu0 %v1884, 112
    %v2361 = vpop.permute.xlu0 %2360
    %2362 = vrot.lane.b32.xlu0 %v1873, 112
    %v2363 = vpop.permute.xlu0 %2362
    %2364 = vrot.lane.b32.xlu0 %v1877, 112
    %v2365 = vpop.permute.xlu0 %2364
    %2366 = vrot.lane.b32.xlu0 %v1881, 112
    %v2367 = vpop.permute.xlu0 %2366
    %2368 = vrot.lane.b32.xlu0 %v1885, 112
    %v2369 = vpop.permute.xlu0 %2368
    %2370 = vrot.lane.b32.xlu0 %v1874, 112
    %v2371 = vpop.permute.xlu0 %2370
    %2372 = vrot.lane.b32.xlu0 %v1878, 112
    %v2373 = vpop.permute.xlu0 %2372
    %2374 = vrot.lane.b32.xlu0 %v1882, 112
    %v2375 = vpop.permute.xlu0 %2374
    %2376 = vrot.lane.b32.xlu0 %v1886, 112
    %v2377 = vpop.permute.xlu0 %2376
    %v2378 = vsel %vm745, %v2363, %v2371
    %v2379 = vsel %vm745, %v2365, %v2373
    %v2380 = vsel %vm745, %v2367, %v2375
    %v2381 = vsel %vm745, %v2369, %v2377
    %v2382 = vsel %vm745, %v2355, %v2363
    %v2383 = vsel %vm745, %v2357, %v2365
    %v2384 = vsel %vm745, %v2359, %v2367
    %v2385 = vsel %vm745, %v2361, %v2369
    %v2386 = vsel %vm745, %v2347, %v2355
    %v2387 = vsel %vm745, %v2349, %v2357
    %v2388 = vsel %vm745, %v2351, %v2359
    %v2389 = vsel %vm745, %v2353, %v2361
    %v2390 = vsel %vm745, %v2371, %v2347
    %v2391 = vsel %vm745, %v2373, %v2349
    %v2392 = vsel %vm745, %v2375, %v2351
    %v2393 = vsel %vm745, %v2377, %v2353
    %v2394 = vmul.f32 %v2386, %v185
    %v2395 = vmul.f32 %v2382, %v189
    %v2396 = vmul.f32 %v2378, %v193
    %v2397 = vmul.f32 %v2390, %v197
    %v2398 = vmul.f32 %v2387, %v185
    %v2399 = vmul.f32 %v2383, %v189
    %v2400 = vmul.f32 %v2379, %v193
    %v2401 = vmul.f32 %v2391, %v197
    %v2402 = vmul.f32 %v2388, %v185
    %v2403 = vmul.f32 %v2384, %v189
    %v2404 = vmul.f32 %v2380, %v193
    %v2405 = vmul.f32 %v2392, %v197
    %v2406 = vmul.f32 %v2389, %v185
    %v2407 = vmul.f32 %v2385, %v189
    %v2408 = vmul.f32 %v2381, %v193
    %v2409 = vmul.f32 %v2393, %v197
    %v2410 = vpack.c.bf16 %v2398, %v2394
    %v2411 = vpack.c.bf16 %v2399, %v2395
    %v2412 = vpack.c.bf16 %v2400, %v2396
    %v2413 = vpack.c.bf16 %v2401, %v2397
    %v2414 = vpack.c.bf16 %v2406, %v2402
    %v2415 = vpack.c.bf16 %v2407, %v2403
    %v2416 = vpack.c.bf16 %v2408, %v2404
    %v2417 = vpack.c.bf16 %v2409, %v2405
    %2418 = vrot.lane.b32.xlu0 %v1871, 111
    %v2419 = vpop.permute.xlu0 %2418
    %2420 = vrot.lane.b32.xlu0 %v1875, 111
    %v2421 = vpop.permute.xlu0 %2420
    %2422 = vrot.lane.b32.xlu0 %v1879, 111
    %v2423 = vpop.permute.xlu0 %2422
    %2424 = vrot.lane.b32.xlu0 %v1883, 111
    %v2425 = vpop.permute.xlu0 %2424
    %2426 = vrot.lane.b32.xlu0 %v1872, 111
    %v2427 = vpop.permute.xlu0 %2426
    %2428 = vrot.lane.b32.xlu0 %v1876, 111
    %v2429 = vpop.permute.xlu0 %2428
    %2430 = vrot.lane.b32.xlu0 %v1880, 111
    %v2431 = vpop.permute.xlu0 %2430
    %2432 = vrot.lane.b32.xlu0 %v1884, 111
    %v2433 = vpop.permute.xlu0 %2432
    %2434 = vrot.lane.b32.xlu0 %v1873, 111
    %v2435 = vpop.permute.xlu0 %2434
    %2436 = vrot.lane.b32.xlu0 %v1877, 111
    %v2437 = vpop.permute.xlu0 %2436
    %2438 = vrot.lane.b32.xlu0 %v1881, 111
    %v2439 = vpop.permute.xlu0 %2438
    %2440 = vrot.lane.b32.xlu0 %v1885, 111
    %v2441 = vpop.permute.xlu0 %2440
    %2442 = vrot.lane.b32.xlu0 %v1874, 111
    %v2443 = vpop.permute.xlu0 %2442
    %2444 = vrot.lane.b32.xlu0 %v1878, 111
    %v2445 = vpop.permute.xlu0 %2444
    %2446 = vrot.lane.b32.xlu0 %v1882, 111
    %v2447 = vpop.permute.xlu0 %2446
    %2448 = vrot.lane.b32.xlu0 %v1886, 111
    %v2449 = vpop.permute.xlu0 %2448
    %v2450 = vsel %vm782, %v2435, %v2443
    %v2451 = vsel %vm782, %v2437, %v2445
    %v2452 = vsel %vm782, %v2439, %v2447
    %v2453 = vsel %vm782, %v2441, %v2449
    %v2454 = vsel %vm782, %v2427, %v2435
    %v2455 = vsel %vm782, %v2429, %v2437
    %v2456 = vsel %vm782, %v2431, %v2439
    %v2457 = vsel %vm782, %v2433, %v2441
    %v2458 = vsel %vm782, %v2419, %v2427
    %v2459 = vsel %vm782, %v2421, %v2429
    %v2460 = vsel %vm782, %v2423, %v2431
    %v2461 = vsel %vm782, %v2425, %v2433
    %v2462 = vsel %vm782, %v2443, %v2419
    %v2463 = vsel %vm782, %v2445, %v2421
    %v2464 = vsel %vm782, %v2447, %v2423
    %v2465 = vsel %vm782, %v2449, %v2425
    %v2466 = vmul.f32 %v2458, %v208
    %v2467 = vmul.f32 %v2454, %v212
    %v2468 = vmul.f32 %v2450, %v216
    %v2469 = vmul.f32 %v2462, %v220
    %v2470 = vmul.f32 %v2459, %v208
    %v2471 = vmul.f32 %v2455, %v212
    %v2472 = vmul.f32 %v2451, %v216
    %v2473 = vmul.f32 %v2463, %v220
    %v2474 = vmul.f32 %v2460, %v208
    %v2475 = vmul.f32 %v2456, %v212
    %v2476 = vmul.f32 %v2452, %v216
    %v2477 = vmul.f32 %v2464, %v220
    %v2478 = vmul.f32 %v2461, %v208
    %v2479 = vmul.f32 %v2457, %v212
    %v2480 = vmul.f32 %v2453, %v216
    %v2481 = vmul.f32 %v2465, %v220
    %v2482 = vpack.c.bf16 %v2470, %v2466
    %v2483 = vpack.c.bf16 %v2471, %v2467
    %v2484 = vpack.c.bf16 %v2472, %v2468
    %v2485 = vpack.c.bf16 %v2473, %v2469
    %v2486 = vpack.c.bf16 %v2478, %v2474
    %v2487 = vpack.c.bf16 %v2479, %v2475
    %v2488 = vpack.c.bf16 %v2480, %v2476
    %v2489 = vpack.c.bf16 %v2481, %v2477
    %v2498 = vunpack.c.l.b16 %v1888
    %v2499 = vunpack.c.h.b16 %v1888
    %v2500 = vunpack.c.l.b16 %v1889
    %v2501 = vunpack.c.l.b16 %v1890
    %v2502 = vunpack.c.h.b16 %v1890
    %v2503 = vunpack.c.l.b16 %v1891
    %v2504 = vunpack.c.l.b16 %v1892
    %v2505 = vunpack.c.h.b16 %v1892
    %v2506 = vunpack.c.l.b16 %v1893
    %v2507 = vunpack.c.l.b16 %v1894
    %v2508 = vunpack.c.h.b16 %v1894
    %v2509 = vunpack.c.l.b16 %v1895
    %v2510 = vpack.c.b16 %v2501, %v2498
    %v2511 = vpack.c.b16 %v2502, %v2499
    %v2512 = vpack.c.b16 %v2503, %v2500
    %v2513 = vpack.c.b16 %v2507, %v2504
    %v2514 = vpack.c.b16 %v2508, %v2505
    %v2515 = vpack.c.b16 %v2509, %v2506
    %v2521 = vsel %vm1580, %v2512, 0
    %v2524 = vsel %vm1580, %v2515, 0
    %2526 = vmatprep.subr.bf16.mxu0 %v2191
    %2527 = vmatpush1.bf16.msra.mxu0 %v2190
    %2528 = vmatprep.subr.bf16.mxu0 %v2187
    %2529 = vmatpush1.bf16.msra.mxu0 %v2186
    %2530 = vmatprep.subr.bf16.mxu0 %v2119
    %2531 = vmatpush1.bf16.msra.mxu0 %v2118
    %2532 = vmatprep.subr.bf16.mxu0 %v2115
    %2533 = vmatpush1.bf16.msra.mxu0 %v2114
    %2534 = vmatprep.subr.bf16.mxu0 %v2047
    %2535 = vmatpush1.bf16.msra.mxu0 %v2046
    %2536 = vmatprep.subr.bf16.mxu0 %v2043
    %2537 = vmatpush1.bf16.msra.mxu0 %v2042
    %2538 = vmatprep.subr.bf16.mxu0 %v1975
    %2539 = vmatpush1.bf16.msra.mxu0 %v1974
    %2540 = vmatprep.subr.bf16.mxu0 %v1971
    %2541 = vmatpush1.bf16.msra.mxu0 %v1970
    %2542 = vmatprep.subr.bf16.mxu0 %v2415
    %2543 = vmatpush2.bf16.msra.mxu0 %v2414
    %2544 = vmatprep.subr.bf16.mxu0 %v2411
    %2545 = vmatpush2.bf16.msra.mxu0 %v2410
    %2546 = vmatprep.subr.bf16.mxu0 %v2343
    %2547 = vmatpush2.bf16.msra.mxu0 %v2342
    %2548 = vmatprep.subr.bf16.mxu0 %v2339
    %2549 = vmatpush2.bf16.msra.mxu0 %v2338
    %2550 = vmatprep.subr.bf16.mxu0 %v2271
    %2551 = vmatpush2.bf16.msra.mxu0 %v2270
    %2552 = vmatprep.subr.bf16.mxu0 %v2267
    %2553 = vmatpush2.bf16.msra.mxu0 %v2266
    %2554 = vmatprep.subr.bf16.mxu0 %v2199
    %2555 = vmatpush2.bf16.msra.mxu0 %v2198
    %2556 = vmatprep.subr.bf16.mxu0 %v2195
    %2557 = vmatpush2.bf16.msra.mxu0 %v2194
    %2558 = vmatprep.mubr.bf16.mxu0 %v2511
    %2559 = vmatmul.mubr.bf16.gmra.mxu0 %v2510
    %v2560 = vpop.f32.mrf.mxu0
    %v2561 = vadd.f32 0.0, %v2560
    %v2562 = vpop.f32.mrf.mxu0
    %v2563 = vadd.f32 0.0, %v2562
    %v2564 = vpop.f32.mrf.mxu0
    %v2565 = vadd.f32 0.0, %v2564
    %v2566 = vpop.f32.mrf.mxu0
    %v2567 = vadd.f32 0.0, %v2566
    %2568 = vmatprep.mubr.bf16.mxu0 %v2514
    %2569 = vmatmul.mubr.bf16.gmra.mxu0 %v2513
    %v2570 = vpop.f32.mrf.mxu0
    %v2571 = vadd.f32 0.0, %v2570
    %v2572 = vpop.f32.mrf.mxu0
    %v2573 = vadd.f32 0.0, %v2572
    %v2574 = vpop.f32.mrf.mxu0
    %v2575 = vadd.f32 0.0, %v2574
    %v2576 = vpop.f32.mrf.mxu0
    %v2577 = vadd.f32 0.0, %v2576
    %2578 = vdwg.mxu0
    %2579 = vmatprep.subr.bf16.mxu0 0
    %2580 = vmatpush1.bf16.msra.mxu0 0
    %2581 = vmatprep.subr.bf16.mxu0 0
    %2582 = vmatpush1.bf16.msra.mxu0 0
    %2583 = vmatprep.subr.bf16.mxu0 0
    %2584 = vmatpush1.bf16.msra.mxu0 0
    %2585 = vmatprep.subr.bf16.mxu0 0
    %2586 = vmatpush1.bf16.msra.mxu0 0
    %2587 = vmatprep.subr.bf16.mxu0 0
    %2588 = vmatpush1.bf16.msra.mxu0 0
    %2589 = vmatprep.subr.bf16.mxu0 0
    %2590 = vmatpush1.bf16.msra.mxu0 0
    %2591 = vmatprep.subr.bf16.mxu0 %v2487
    %2592 = vmatpush1.bf16.msra.mxu0 %v2486
    %2593 = vmatprep.subr.bf16.mxu0 %v2483
    %2594 = vmatpush1.bf16.msra.mxu0 %v2482
    %2595 = vmatprep.subr.bf16.mxu0 0
    %2596 = vmatpush2.bf16.msra.mxu0 0
    %2597 = vmatprep.subr.bf16.mxu0 0
    %2598 = vmatpush2.bf16.msra.mxu0 0
    %2599 = vmatprep.subr.bf16.mxu0 0
    %2600 = vmatpush2.bf16.msra.mxu0 0
    %2601 = vmatprep.subr.bf16.mxu0 0
    %2602 = vmatpush2.bf16.msra.mxu0 0
    %2603 = vmatprep.subr.bf16.mxu0 0
    %2604 = vmatpush2.bf16.msra.mxu0 0
    %2605 = vmatprep.subr.bf16.mxu0 0
    %2606 = vmatpush2.bf16.msra.mxu0 0
    %2607 = vmatprep.subr.bf16.mxu0 0
    %2608 = vmatpush2.bf16.msra.mxu0 0
    %2609 = vmatprep.subr.bf16.mxu0 0
    %2610 = vmatpush2.bf16.msra.mxu0 0
    %2611 = vmatprep.mubr.bf16.mxu0 0
    %2612 = vmatmul.mubr.bf16.gmra.mxu0 %v2521
    %v2613 = vpop.f32.mrf.mxu0
    %v2614 = vadd.f32 %v2561, %v2613
    %v2615 = vpop.f32.mrf.mxu0
    %v2616 = vadd.f32 %v2563, %v2615
    %v2617 = vpop.f32.mrf.mxu0
    %v2618 = vadd.f32 %v2565, %v2617
    %v2619 = vpop.f32.mrf.mxu0
    %v2620 = vadd.f32 %v2567, %v2619
    %2621 = vmatprep.mubr.bf16.mxu0 0
    %2622 = vmatmul.mubr.bf16.gmra.mxu0 %v2524
    %v2623 = vpop.f32.mrf.mxu0
    %v2624 = vadd.f32 %v2571, %v2623
    %v2625 = vpop.f32.mrf.mxu0
    %v2626 = vadd.f32 %v2573, %v2625
    %v2627 = vpop.f32.mrf.mxu0
    %v2628 = vadd.f32 %v2575, %v2627
    %v2629 = vpop.f32.mrf.mxu0
    %v2630 = vadd.f32 %v2577, %v2629
    %2631 = vdwg.mxu0
    %2632 = vmatprep.subr.bf16.mxu0 %v2193
    %2633 = vmatpush1.bf16.msra.mxu0 %v2192
    %2634 = vmatprep.subr.bf16.mxu0 %v2189
    %2635 = vmatpush1.bf16.msra.mxu0 %v2188
    %2636 = vmatprep.subr.bf16.mxu0 %v2121
    %2637 = vmatpush1.bf16.msra.mxu0 %v2120
    %2638 = vmatprep.subr.bf16.mxu0 %v2117
    %2639 = vmatpush1.bf16.msra.mxu0 %v2116
    %2640 = vmatprep.subr.bf16.mxu0 %v2049
    %2641 = vmatpush1.bf16.msra.mxu0 %v2048
    %2642 = vmatprep.subr.bf16.mxu0 %v2045
    %2643 = vmatpush1.bf16.msra.mxu0 %v2044
    %2644 = vmatprep.subr.bf16.mxu0 %v1977
    %2645 = vmatpush1.bf16.msra.mxu0 %v1976
    %2646 = vmatprep.subr.bf16.mxu0 %v1973
    %2647 = vmatpush1.bf16.msra.mxu0 %v1972
    %2648 = vmatprep.subr.bf16.mxu0 %v2417
    %2649 = vmatpush2.bf16.msra.mxu0 %v2416
    %2650 = vmatprep.subr.bf16.mxu0 %v2413
    %2651 = vmatpush2.bf16.msra.mxu0 %v2412
    %2652 = vmatprep.subr.bf16.mxu0 %v2345
    %2653 = vmatpush2.bf16.msra.mxu0 %v2344
    %2654 = vmatprep.subr.bf16.mxu0 %v2341
    %2655 = vmatpush2.bf16.msra.mxu0 %v2340
    %2656 = vmatprep.subr.bf16.mxu0 %v2273
    %2657 = vmatpush2.bf16.msra.mxu0 %v2272
    %2658 = vmatprep.subr.bf16.mxu0 %v2269
    %2659 = vmatpush2.bf16.msra.mxu0 %v2268
    %2660 = vmatprep.subr.bf16.mxu0 %v2201
    %2661 = vmatpush2.bf16.msra.mxu0 %v2200
    %2662 = vmatprep.subr.bf16.mxu0 %v2197
    %2663 = vmatpush2.bf16.msra.mxu0 %v2196
    %2664 = vmatprep.mubr.bf16.mxu0 %v2511
    %2665 = vmatmul.mubr.bf16.gmra.mxu0 %v2510
    %v2666 = vpop.f32.mrf.mxu0
    %v2667 = vadd.f32 0.0, %v2666
    %v2668 = vpop.f32.mrf.mxu0
    %v2669 = vadd.f32 0.0, %v2668
    %v2670 = vpop.f32.mrf.mxu0
    %v2671 = vadd.f32 0.0, %v2670
    %v2672 = vpop.f32.mrf.mxu0
    %v2673 = vadd.f32 0.0, %v2672
    %2674 = vmatprep.mubr.bf16.mxu0 %v2514
    %2675 = vmatmul.mubr.bf16.gmra.mxu0 %v2513
    %v2676 = vpop.f32.mrf.mxu0
    %v2677 = vadd.f32 0.0, %v2676
    %v2678 = vpop.f32.mrf.mxu0
    %v2679 = vadd.f32 0.0, %v2678
    %v2680 = vpop.f32.mrf.mxu0
    %v2681 = vadd.f32 0.0, %v2680
    %v2682 = vpop.f32.mrf.mxu0
    %v2683 = vadd.f32 0.0, %v2682
    %2684 = vdwg.mxu0
    %2685 = vmatprep.subr.bf16.mxu0 0
    %2686 = vmatpush1.bf16.msra.mxu0 0
    %2687 = vmatprep.subr.bf16.mxu0 0
    %2688 = vmatpush1.bf16.msra.mxu0 0
    %2689 = vmatprep.subr.bf16.mxu0 0
    %2690 = vmatpush1.bf16.msra.mxu0 0
    %2691 = vmatprep.subr.bf16.mxu0 0
    %2692 = vmatpush1.bf16.msra.mxu0 0
    %2693 = vmatprep.subr.bf16.mxu0 0
    %2694 = vmatpush1.bf16.msra.mxu0 0
    %2695 = vmatprep.subr.bf16.mxu0 0
    %2696 = vmatpush1.bf16.msra.mxu0 0
    %2697 = vmatprep.subr.bf16.mxu0 %v2489
    %2698 = vmatpush1.bf16.msra.mxu0 %v2488
    %2699 = vmatprep.subr.bf16.mxu0 %v2485
    %2700 = vmatpush1.bf16.msra.mxu0 %v2484
    %2701 = vmatprep.subr.bf16.mxu0 0
    %2702 = vmatpush2.bf16.msra.mxu0 0
    %2703 = vmatprep.subr.bf16.mxu0 0
    %2704 = vmatpush2.bf16.msra.mxu0 0
    %2705 = vmatprep.subr.bf16.mxu0 0
    %2706 = vmatpush2.bf16.msra.mxu0 0
    %2707 = vmatprep.subr.bf16.mxu0 0
    %2708 = vmatpush2.bf16.msra.mxu0 0
    %2709 = vmatprep.subr.bf16.mxu0 0
    %2710 = vmatpush2.bf16.msra.mxu0 0
    %2711 = vmatprep.subr.bf16.mxu0 0
    %2712 = vmatpush2.bf16.msra.mxu0 0
    %2713 = vmatprep.subr.bf16.mxu0 0
    %2714 = vmatpush2.bf16.msra.mxu0 0
    %2715 = vmatprep.subr.bf16.mxu0 0
    %2716 = vmatpush2.bf16.msra.mxu0 0
    %2717 = vmatprep.mubr.bf16.mxu0 0
    %2718 = vmatmul.mubr.bf16.gmra.mxu0 %v2521
    %v2719 = vpop.f32.mrf.mxu0
    %v2720 = vadd.f32 %v2667, %v2719
    %v2721 = vpop.f32.mrf.mxu0
    %v2722 = vadd.f32 %v2669, %v2721
    %v2723 = vpop.f32.mrf.mxu0
    %v2724 = vadd.f32 %v2671, %v2723
    %v2725 = vpop.f32.mrf.mxu0
    %v2726 = vadd.f32 %v2673, %v2725
    %2727 = vmatprep.mubr.bf16.mxu0 0
    %2728 = vmatmul.mubr.bf16.gmra.mxu0 %v2524
    %v2729 = vpop.f32.mrf.mxu0
    %v2730 = vadd.f32 %v2677, %v2729
    %v2731 = vpop.f32.mrf.mxu0
    %v2732 = vadd.f32 %v2679, %v2731
    %v2733 = vpop.f32.mrf.mxu0
    %v2734 = vadd.f32 %v2681, %v2733
    %v2735 = vpop.f32.mrf.mxu0
    %v2736 = vadd.f32 %v2683, %v2735
    %2737 = vdwg.mxu0
    %2739 = vset.pattern.permute.xlu0 0
    %2740 = vperm.xlu0 %2739, %v1897
    %v2741 = vpop.permute.xlu0 %2740
    %2744 = vset.pattern.permute.xlu0 0
    %2745 = vperm.xlu0 %2744, %v1898
    %v2746 = vpop.permute.xlu0 %2745
    %2749 = vset.pattern.permute.xlu0 0
    %2750 = vperm.xlu0 %2749, %v1899
    %v2751 = vpop.permute.xlu0 %2750
    %2754 = vset.pattern.permute.xlu0 0
    %2755 = vperm.xlu0 %2754, %v1900
    %v2756 = vpop.permute.xlu0 %2755
    %v2758 = vmul.f32 %v2614, %v2741
    %v2759 = vmul.f32 %v2616, %v2741
    %v2760 = vmul.f32 %v2720, %v2741
    %v2761 = vmul.f32 %v2722, %v2741
    %v2762 = vmul.f32 %v2618, %v2746
    %v2763 = vmul.f32 %v2620, %v2746
    %v2764 = vmul.f32 %v2724, %v2746
    %v2765 = vmul.f32 %v2726, %v2746
    %v2766 = vmul.f32 %v2624, %v2751
    %v2767 = vmul.f32 %v2626, %v2751
    %v2768 = vmul.f32 %v2730, %v2751
    %v2769 = vmul.f32 %v2732, %v2751
    %v2770 = vmul.f32 %v2628, %v2756
    %v2771 = vmul.f32 %v2630, %v2756
    %v2772 = vmul.f32 %v2734, %v2756
    %v2773 = vmul.f32 %v2736, %v2756
    %2775 = vset.pattern.permute.xlu0 0
    %2776 = vperm.xlu0 %2775, %v1902
    %v2777 = vpop.permute.xlu0 %2776
    %2780 = vset.pattern.permute.xlu0 0
    %2781 = vperm.xlu0 %2780, %v1903
    %v2782 = vpop.permute.xlu0 %2781
    %2785 = vset.pattern.permute.xlu0 0
    %2786 = vperm.xlu0 %2785, %v1904
    %v2787 = vpop.permute.xlu0 %2786
    %2790 = vset.pattern.permute.xlu0 0
    %2791 = vperm.xlu0 %2790, %v1905
    %v2792 = vpop.permute.xlu0 %2791
    %v2794 = vadd.f32 %v2758, %v2777
    %v2795 = vadd.f32 %v2759, %v2777
    %v2796 = vadd.f32 %v2760, %v2777
    %v2797 = vadd.f32 %v2761, %v2777
    %v2798 = vadd.f32 %v2762, %v2782
    %v2799 = vadd.f32 %v2763, %v2782
    %v2800 = vadd.f32 %v2764, %v2782
    %v2801 = vadd.f32 %v2765, %v2782
    %v2802 = vadd.f32 %v2766, %v2787
    %v2803 = vadd.f32 %v2767, %v2787
    %v2804 = vadd.f32 %v2768, %v2787
    %v2805 = vadd.f32 %v2769, %v2787
    %v2806 = vadd.f32 %v2770, %v2792
    %v2807 = vadd.f32 %v2771, %v2792
    %v2808 = vadd.f32 %v2772, %v2792
    %v2809 = vadd.f32 %v2773, %v2792
    %v2810 = vmax.f32 %v2794, 0.0
    %v2811 = vmax.f32 %v2795, 0.0
    %v2812 = vmax.f32 %v2796, 0.0
    %v2813 = vmax.f32 %v2797, 0.0
    %v2814 = vmax.f32 %v2798, 0.0
    %v2815 = vmax.f32 %v2799, 0.0
    %v2816 = vmax.f32 %v2800, 0.0
    %v2817 = vmax.f32 %v2801, 0.0
    %v2818 = vmax.f32 %v2802, 0.0
    %v2819 = vmax.f32 %v2803, 0.0
    %v2820 = vmax.f32 %v2804, 0.0
    %v2821 = vmax.f32 %v2805, 0.0
    %v2822 = vmax.f32 %v2806, 0.0
    %v2823 = vmax.f32 %v2807, 0.0
    %v2824 = vmax.f32 %v2808, 0.0
    %v2825 = vmax.f32 %v2809, 0.0
    %s2826 = scalar_lea.vmem [#allocation2], 144
    %v2827 = vld [vmem:[%s2826] sm:$0x33]
    %v2828 = vld [vmem:[%s2826 + $0x8] sm:$0x3]
    %2829 = vrot.lane.b32.xlu0 %v2810, 17
    %v2830 = vpop.permute.xlu0 %2829
    %2831 = vrot.lane.b32.xlu0 %v2814, 17
    %v2832 = vpop.permute.xlu0 %2831
    %2833 = vrot.lane.b32.xlu0 %v2818, 17
    %v2834 = vpop.permute.xlu0 %2833
    %2835 = vrot.lane.b32.xlu0 %v2822, 17
    %v2836 = vpop.permute.xlu0 %2835
    %2837 = vrot.lane.b32.xlu0 %v2811, 17
    %v2838 = vpop.permute.xlu0 %2837
    %2839 = vrot.lane.b32.xlu0 %v2815, 17
    %v2840 = vpop.permute.xlu0 %2839
    %2841 = vrot.lane.b32.xlu0 %v2819, 17
    %v2842 = vpop.permute.xlu0 %2841
    %2843 = vrot.lane.b32.xlu0 %v2823, 17
    %v2844 = vpop.permute.xlu0 %2843
    %2845 = vrot.lane.b32.xlu0 %v2812, 17
    %v2846 = vpop.permute.xlu0 %2845
    %2847 = vrot.lane.b32.xlu0 %v2816, 17
    %v2848 = vpop.permute.xlu0 %2847
    %2849 = vrot.lane.b32.xlu0 %v2820, 17
    %v2850 = vpop.permute.xlu0 %2849
    %2851 = vrot.lane.b32.xlu0 %v2824, 17
    %v2852 = vpop.permute.xlu0 %2851
    %2853 = vrot.lane.b32.xlu0 %v2813, 17
    %v2854 = vpop.permute.xlu0 %2853
    %2855 = vrot.lane.b32.xlu0 %v2817, 17
    %v2856 = vpop.permute.xlu0 %2855
    %2857 = vrot.lane.b32.xlu0 %v2821, 17
    %v2858 = vpop.permute.xlu0 %2857
    %2859 = vrot.lane.b32.xlu0 %v2825, 17
    %v2860 = vpop.permute.xlu0 %2859
    %v2861 = vsel %vm519, %v2846, %v2854
    %v2862 = vsel %vm519, %v2848, %v2856
    %v2863 = vsel %vm519, %v2850, %v2858
    %v2864 = vsel %vm519, %v2852, %v2860
    %v2865 = vsel %vm519, %v2838, %v2846
    %v2866 = vsel %vm519, %v2840, %v2848
    %v2867 = vsel %vm519, %v2842, %v2850
    %v2868 = vsel %vm519, %v2844, %v2852
    %v2869 = vsel %vm519, %v2830, %v2838
    %v2870 = vsel %vm519, %v2832, %v2840
    %v2871 = vsel %vm519, %v2834, %v2842
    %v2872 = vsel %vm519, %v2836, %v2844
    %v2873 = vsel %vm519, %v2854, %v2830
    %v2874 = vsel %vm519, %v2856, %v2832
    %v2875 = vsel %vm519, %v2858, %v2834
    %v2876 = vsel %vm519, %v2860, %v2836
    %v2877 = vmul.f32 %v2873, %v47
    %v2878 = vmul.f32 %v2869, %v51
    %v2879 = vmul.f32 %v2865, %v55
    %v2880 = vmul.f32 %v2861, %v59
    %v2881 = vmul.f32 %v2874, %v47
    %v2882 = vmul.f32 %v2870, %v51
    %v2883 = vmul.f32 %v2866, %v55
    %v2884 = vmul.f32 %v2862, %v59
    %v2885 = vmul.f32 %v2875, %v47
    %v2886 = vmul.f32 %v2871, %v51
    %v2887 = vmul.f32 %v2867, %v55
    %v2888 = vmul.f32 %v2863, %v59
    %v2889 = vmul.f32 %v2876, %v47
    %v2890 = vmul.f32 %v2872, %v51
    %v2891 = vmul.f32 %v2868, %v55
    %v2892 = vmul.f32 %v2864, %v59
    %v2893 = vpack.c.bf16 %v2881, %v2877
    %v2894 = vpack.c.bf16 %v2882, %v2878
    %v2895 = vpack.c.bf16 %v2883, %v2879
    %v2896 = vpack.c.bf16 %v2884, %v2880
    %v2897 = vpack.c.bf16 %v2889, %v2885
    %v2898 = vpack.c.bf16 %v2890, %v2886
    %v2899 = vpack.c.bf16 %v2891, %v2887
    %v2900 = vpack.c.bf16 %v2892, %v2888
    %2901 = vrot.lane.b32.xlu0 %v2810, 16
    %v2902 = vpop.permute.xlu0 %2901
    %2903 = vrot.lane.b32.xlu0 %v2814, 16
    %v2904 = vpop.permute.xlu0 %2903
    %2905 = vrot.lane.b32.xlu0 %v2818, 16
    %v2906 = vpop.permute.xlu0 %2905
    %2907 = vrot.lane.b32.xlu0 %v2822, 16
    %v2908 = vpop.permute.xlu0 %2907
    %2909 = vrot.lane.b32.xlu0 %v2811, 16
    %v2910 = vpop.permute.xlu0 %2909
    %2911 = vrot.lane.b32.xlu0 %v2815, 16
    %v2912 = vpop.permute.xlu0 %2911
    %2913 = vrot.lane.b32.xlu0 %v2819, 16
    %v2914 = vpop.permute.xlu0 %2913
    %2915 = vrot.lane.b32.xlu0 %v2823, 16
    %v2916 = vpop.permute.xlu0 %2915
    %2917 = vrot.lane.b32.xlu0 %v2812, 16
    %v2918 = vpop.permute.xlu0 %2917
    %2919 = vrot.lane.b32.xlu0 %v2816, 16
    %v2920 = vpop.permute.xlu0 %2919
    %2921 = vrot.lane.b32.xlu0 %v2820, 16
    %v2922 = vpop.permute.xlu0 %2921
    %2923 = vrot.lane.b32.xlu0 %v2824, 16
    %v2924 = vpop.permute.xlu0 %2923
    %2925 = vrot.lane.b32.xlu0 %v2813, 16
    %v2926 = vpop.permute.xlu0 %2925
    %2927 = vrot.lane.b32.xlu0 %v2817, 16
    %v2928 = vpop.permute.xlu0 %2927
    %2929 = vrot.lane.b32.xlu0 %v2821, 16
    %v2930 = vpop.permute.xlu0 %2929
    %2931 = vrot.lane.b32.xlu0 %v2825, 16
    %v2932 = vpop.permute.xlu0 %2931
    %v2933 = vsel %vm556, %v2918, %v2926
    %v2934 = vsel %vm556, %v2920, %v2928
    %v2935 = vsel %vm556, %v2922, %v2930
    %v2936 = vsel %vm556, %v2924, %v2932
    %v2937 = vsel %vm556, %v2910, %v2918
    %v2938 = vsel %vm556, %v2912, %v2920
    %v2939 = vsel %vm556, %v2914, %v2922
    %v2940 = vsel %vm556, %v2916, %v2924
    %v2941 = vsel %vm556, %v2902, %v2910
    %v2942 = vsel %vm556, %v2904, %v2912
    %v2943 = vsel %vm556, %v2906, %v2914
    %v2944 = vsel %vm556, %v2908, %v2916
    %v2945 = vsel %vm556, %v2926, %v2902
    %v2946 = vsel %vm556, %v2928, %v2904
    %v2947 = vsel %vm556, %v2930, %v2906
    %v2948 = vsel %vm556, %v2932, %v2908
    %v2949 = vmul.f32 %v2945, %v70
    %v2950 = vmul.f32 %v2941, %v74
    %v2951 = vmul.f32 %v2937, %v78
    %v2952 = vmul.f32 %v2933, %v82
    %v2953 = vmul.f32 %v2946, %v70
    %v2954 = vmul.f32 %v2942, %v74
    %v2955 = vmul.f32 %v2938, %v78
    %v2956 = vmul.f32 %v2934, %v82
    %v2957 = vmul.f32 %v2947, %v70
    %v2958 = vmul.f32 %v2943, %v74
    %v2959 = vmul.f32 %v2939, %v78
    %v2960 = vmul.f32 %v2935, %v82
    %v2961 = vmul.f32 %v2948, %v70
    %v2962 = vmul.f32 %v2944, %v74
    %v2963 = vmul.f32 %v2940, %v78
    %v2964 = vmul.f32 %v2936, %v82
    %v2965 = vpack.c.bf16 %v2953, %v2949
    %v2966 = vpack.c.bf16 %v2954, %v2950
    %v2967 = vpack.c.bf16 %v2955, %v2951
    %v2968 = vpack.c.bf16 %v2956, %v2952
    %v2969 = vpack.c.bf16 %v2961, %v2957
    %v2970 = vpack.c.bf16 %v2962, %v2958
    %v2971 = vpack.c.bf16 %v2963, %v2959
    %v2972 = vpack.c.bf16 %v2964, %v2960
    %2973 = vrot.lane.b32.xlu0 %v2810, 15
    %v2974 = vpop.permute.xlu0 %2973
    %2975 = vrot.lane.b32.xlu0 %v2814, 15
    %v2976 = vpop.permute.xlu0 %2975
    %2977 = vrot.lane.b32.xlu0 %v2818, 15
    %v2978 = vpop.permute.xlu0 %2977
    %2979 = vrot.lane.b32.xlu0 %v2822, 15
    %v2980 = vpop.permute.xlu0 %2979
    %2981 = vrot.lane.b32.xlu0 %v2811, 15
    %v2982 = vpop.permute.xlu0 %2981
    %2983 = vrot.lane.b32.xlu0 %v2815, 15
    %v2984 = vpop.permute.xlu0 %2983
    %2985 = vrot.lane.b32.xlu0 %v2819, 15
    %v2986 = vpop.permute.xlu0 %2985
    %2987 = vrot.lane.b32.xlu0 %v2823, 15
    %v2988 = vpop.permute.xlu0 %2987
    %2989 = vrot.lane.b32.xlu0 %v2812, 15
    %v2990 = vpop.permute.xlu0 %2989
    %2991 = vrot.lane.b32.xlu0 %v2816, 15
    %v2992 = vpop.permute.xlu0 %2991
    %2993 = vrot.lane.b32.xlu0 %v2820, 15
    %v2994 = vpop.permute.xlu0 %2993
    %2995 = vrot.lane.b32.xlu0 %v2824, 15
    %v2996 = vpop.permute.xlu0 %2995
    %2997 = vrot.lane.b32.xlu0 %v2813, 15
    %v2998 = vpop.permute.xlu0 %2997
    %2999 = vrot.lane.b32.xlu0 %v2817, 15
    %v3000 = vpop.permute.xlu0 %2999
    %3001 = vrot.lane.b32.xlu0 %v2821, 15
    %v3002 = vpop.permute.xlu0 %3001
    %3003 = vrot.lane.b32.xlu0 %v2825, 15
    %v3004 = vpop.permute.xlu0 %3003
    %v3005 = vsel %vm593, %v2990, %v2998
    %v3006 = vsel %vm593, %v2992, %v3000
    %v3007 = vsel %vm593, %v2994, %v3002
    %v3008 = vsel %vm593, %v2996, %v3004
    %v3009 = vsel %vm593, %v2982, %v2990
    %v3010 = vsel %vm593, %v2984, %v2992
    %v3011 = vsel %vm593, %v2986, %v2994
    %v3012 = vsel %vm593, %v2988, %v2996
    %v3013 = vsel %vm593, %v2974, %v2982
    %v3014 = vsel %vm593, %v2976, %v2984
    %v3015 = vsel %vm593, %v2978, %v2986
    %v3016 = vsel %vm593, %v2980, %v2988
    %v3017 = vsel %vm593, %v2998, %v2974
    %v3018 = vsel %vm593, %v3000, %v2976
    %v3019 = vsel %vm593, %v3002, %v2978
    %v3020 = vsel %vm593, %v3004, %v2980
    %v3021 = vmul.f32 %v3017, %v93
    %v3022 = vmul.f32 %v3013, %v97
    %v3023 = vmul.f32 %v3009, %v101
    %v3024 = vmul.f32 %v3005, %v105
    %v3025 = vmul.f32 %v3018, %v93
    %v3026 = vmul.f32 %v3014, %v97
    %v3027 = vmul.f32 %v3010, %v101
    %v3028 = vmul.f32 %v3006, %v105
    %v3029 = vmul.f32 %v3019, %v93
    %v3030 = vmul.f32 %v3015, %v97
    %v3031 = vmul.f32 %v3011, %v101
    %v3032 = vmul.f32 %v3007, %v105
    %v3033 = vmul.f32 %v3020, %v93
    %v3034 = vmul.f32 %v3016, %v97
    %v3035 = vmul.f32 %v3012, %v101
    %v3036 = vmul.f32 %v3008, %v105
    %v3037 = vpack.c.bf16 %v3025, %v3021
    %v3038 = vpack.c.bf16 %v3026, %v3022
    %v3039 = vpack.c.bf16 %v3027, %v3023
    %v3040 = vpack.c.bf16 %v3028, %v3024
    %v3041 = vpack.c.bf16 %v3033, %v3029
    %v3042 = vpack.c.bf16 %v3034, %v3030
    %v3043 = vpack.c.bf16 %v3035, %v3031
    %v3044 = vpack.c.bf16 %v3036, %v3032
    %3045 = vrot.lane.b32.xlu0 %v2810, 1
    %v3046 = vpop.permute.xlu0 %3045
    %3047 = vrot.lane.b32.xlu0 %v2814, 1
    %v3048 = vpop.permute.xlu0 %3047
    %3049 = vrot.lane.b32.xlu0 %v2818, 1
    %v3050 = vpop.permute.xlu0 %3049
    %3051 = vrot.lane.b32.xlu0 %v2822, 1
    %v3052 = vpop.permute.xlu0 %3051
    %3053 = vrot.lane.b32.xlu0 %v2811, 1
    %v3054 = vpop.permute.xlu0 %3053
    %3055 = vrot.lane.b32.xlu0 %v2815, 1
    %v3056 = vpop.permute.xlu0 %3055
    %3057 = vrot.lane.b32.xlu0 %v2819, 1
    %v3058 = vpop.permute.xlu0 %3057
    %3059 = vrot.lane.b32.xlu0 %v2823, 1
    %v3060 = vpop.permute.xlu0 %3059
    %3061 = vrot.lane.b32.xlu0 %v2812, 1
    %v3062 = vpop.permute.xlu0 %3061
    %3063 = vrot.lane.b32.xlu0 %v2816, 1
    %v3064 = vpop.permute.xlu0 %3063
    %3065 = vrot.lane.b32.xlu0 %v2820, 1
    %v3066 = vpop.permute.xlu0 %3065
    %3067 = vrot.lane.b32.xlu0 %v2824, 1
    %v3068 = vpop.permute.xlu0 %3067
    %3069 = vrot.lane.b32.xlu0 %v2813, 1
    %v3070 = vpop.permute.xlu0 %3069
    %3071 = vrot.lane.b32.xlu0 %v2817, 1
    %v3072 = vpop.permute.xlu0 %3071
    %3073 = vrot.lane.b32.xlu0 %v2821, 1
    %v3074 = vpop.permute.xlu0 %3073
    %3075 = vrot.lane.b32.xlu0 %v2825, 1
    %v3076 = vpop.permute.xlu0 %3075
    %v3077 = vsel %vm630, %v3062, %v3070
    %v3078 = vsel %vm630, %v3064, %v3072
    %v3079 = vsel %vm630, %v3066, %v3074
    %v3080 = vsel %vm630, %v3068, %v3076
    %v3081 = vsel %vm630, %v3054, %v3062
    %v3082 = vsel %vm630, %v3056, %v3064
    %v3083 = vsel %vm630, %v3058, %v3066
    %v3084 = vsel %vm630, %v3060, %v3068
    %v3085 = vsel %vm630, %v3046, %v3054
    %v3086 = vsel %vm630, %v3048, %v3056
    %v3087 = vsel %vm630, %v3050, %v3058
    %v3088 = vsel %vm630, %v3052, %v3060
    %v3089 = vsel %vm630, %v3070, %v3046
    %v3090 = vsel %vm630, %v3072, %v3048
    %v3091 = vsel %vm630, %v3074, %v3050
    %v3092 = vsel %vm630, %v3076, %v3052
    %v3093 = vmul.f32 %v3089, %v116
    %v3094 = vmul.f32 %v3085, %v120
    %v3095 = vmul.f32 %v3081, %v124
    %v3096 = vmul.f32 %v3077, %v128
    %v3097 = vmul.f32 %v3090, %v116
    %v3098 = vmul.f32 %v3086, %v120
    %v3099 = vmul.f32 %v3082, %v124
    %v3100 = vmul.f32 %v3078, %v128
    %v3101 = vmul.f32 %v3091, %v116
    %v3102 = vmul.f32 %v3087, %v120
    %v3103 = vmul.f32 %v3083, %v124
    %v3104 = vmul.f32 %v3079, %v128
    %v3105 = vmul.f32 %v3092, %v116
    %v3106 = vmul.f32 %v3088, %v120
    %v3107 = vmul.f32 %v3084, %v124
    %v3108 = vmul.f32 %v3080, %v128
    %v3109 = vpack.c.bf16 %v3097, %v3093
    %v3110 = vpack.c.bf16 %v3098, %v3094
    %v3111 = vpack.c.bf16 %v3099, %v3095
    %v3112 = vpack.c.bf16 %v3100, %v3096
    %v3113 = vpack.c.bf16 %v3105, %v3101
    %v3114 = vpack.c.bf16 %v3106, %v3102
    %v3115 = vpack.c.bf16 %v3107, %v3103
    %v3116 = vpack.c.bf16 %v3108, %v3104
    %v3117 = vpack.c.bf16 %v2814, %v2810
    %v3118 = vpack.c.bf16 %v2815, %v2811
    %v3119 = vpack.c.bf16 %v2816, %v2812
    %v3120 = vpack.c.bf16 %v2817, %v2813
    %v3121 = vpack.c.bf16 %v2822, %v2818
    %v3122 = vpack.c.bf16 %v2823, %v2819
    %v3123 = vpack.c.bf16 %v2824, %v2820
    %v3124 = vpack.c.bf16 %v2825, %v2821
    %3125 = vrot.lane.b32.xlu0 %v2810, 127
    %v3126 = vpop.permute.xlu0 %3125
    %3127 = vrot.lane.b32.xlu0 %v2814, 127
    %v3128 = vpop.permute.xlu0 %3127
    %3129 = vrot.lane.b32.xlu0 %v2818, 127
    %v3130 = vpop.permute.xlu0 %3129
    %3131 = vrot.lane.b32.xlu0 %v2822, 127
    %v3132 = vpop.permute.xlu0 %3131
    %3133 = vrot.lane.b32.xlu0 %v2811, 127
    %v3134 = vpop.permute.xlu0 %3133
    %3135 = vrot.lane.b32.xlu0 %v2815, 127
    %v3136 = vpop.permute.xlu0 %3135
    %3137 = vrot.lane.b32.xlu0 %v2819, 127
    %v3138 = vpop.permute.xlu0 %3137
    %3139 = vrot.lane.b32.xlu0 %v2823, 127
    %v3140 = vpop.permute.xlu0 %3139
    %3141 = vrot.lane.b32.xlu0 %v2812, 127
    %v3142 = vpop.permute.xlu0 %3141
    %3143 = vrot.lane.b32.xlu0 %v2816, 127
    %v3144 = vpop.permute.xlu0 %3143
    %3145 = vrot.lane.b32.xlu0 %v2820, 127
    %v3146 = vpop.permute.xlu0 %3145
    %3147 = vrot.lane.b32.xlu0 %v2824, 127
    %v3148 = vpop.permute.xlu0 %3147
    %3149 = vrot.lane.b32.xlu0 %v2813, 127
    %v3150 = vpop.permute.xlu0 %3149
    %3151 = vrot.lane.b32.xlu0 %v2817, 127
    %v3152 = vpop.permute.xlu0 %3151
    %3153 = vrot.lane.b32.xlu0 %v2821, 127
    %v3154 = vpop.permute.xlu0 %3153
    %3155 = vrot.lane.b32.xlu0 %v2825, 127
    %v3156 = vpop.permute.xlu0 %3155
    %v3157 = vsel %vm671, %v3142, %v3150
    %v3158 = vsel %vm671, %v3144, %v3152
    %v3159 = vsel %vm671, %v3146, %v3154
    %v3160 = vsel %vm671, %v3148, %v3156
    %v3161 = vsel %vm671, %v3134, %v3142
    %v3162 = vsel %vm671, %v3136, %v3144
    %v3163 = vsel %vm671, %v3138, %v3146
    %v3164 = vsel %vm671, %v3140, %v3148
    %v3165 = vsel %vm671, %v3126, %v3134
    %v3166 = vsel %vm671, %v3128, %v3136
    %v3167 = vsel %vm671, %v3130, %v3138
    %v3168 = vsel %vm671, %v3132, %v3140
    %v3169 = vsel %vm671, %v3150, %v3126
    %v3170 = vsel %vm671, %v3152, %v3128
    %v3171 = vsel %vm671, %v3154, %v3130
    %v3172 = vsel %vm671, %v3156, %v3132
    %v3173 = vmul.f32 %v3165, %v139
    %v3174 = vmul.f32 %v3161, %v143
    %v3175 = vmul.f32 %v3157, %v147
    %v3176 = vmul.f32 %v3169, %v151
    %v3177 = vmul.f32 %v3166, %v139
    %v3178 = vmul.f32 %v3162, %v143
    %v3179 = vmul.f32 %v3158, %v147
    %v3180 = vmul.f32 %v3170, %v151
    %v3181 = vmul.f32 %v3167, %v139
    %v3182 = vmul.f32 %v3163, %v143
    %v3183 = vmul.f32 %v3159, %v147
    %v3184 = vmul.f32 %v3171, %v151
    %v3185 = vmul.f32 %v3168, %v139
    %v3186 = vmul.f32 %v3164, %v143
    %v3187 = vmul.f32 %v3160, %v147
    %v3188 = vmul.f32 %v3172, %v151
    %v3189 = vpack.c.bf16 %v3177, %v3173
    %v3190 = vpack.c.bf16 %v3178, %v3174
    %v3191 = vpack.c.bf16 %v3179, %v3175
    %v3192 = vpack.c.bf16 %v3180, %v3176
    %v3193 = vpack.c.bf16 %v3185, %v3181
    %v3194 = vpack.c.bf16 %v3186, %v3182
    %v3195 = vpack.c.bf16 %v3187, %v3183
    %v3196 = vpack.c.bf16 %v3188, %v3184
    %3197 = vrot.lane.b32.xlu0 %v2810, 113
    %v3198 = vpop.permute.xlu0 %3197
    %3199 = vrot.lane.b32.xlu0 %v2814, 113
    %v3200 = vpop.permute.xlu0 %3199
    %3201 = vrot.lane.b32.xlu0 %v2818, 113
    %v3202 = vpop.permute.xlu0 %3201
    %3203 = vrot.lane.b32.xlu0 %v2822, 113
    %v3204 = vpop.permute.xlu0 %3203
    %3205 = vrot.lane.b32.xlu0 %v2811, 113
    %v3206 = vpop.permute.xlu0 %3205
    %3207 = vrot.lane.b32.xlu0 %v2815, 113
    %v3208 = vpop.permute.xlu0 %3207
    %3209 = vrot.lane.b32.xlu0 %v2819, 113
    %v3210 = vpop.permute.xlu0 %3209
    %3211 = vrot.lane.b32.xlu0 %v2823, 113
    %v3212 = vpop.permute.xlu0 %3211
    %3213 = vrot.lane.b32.xlu0 %v2812, 113
    %v3214 = vpop.permute.xlu0 %3213
    %3215 = vrot.lane.b32.xlu0 %v2816, 113
    %v3216 = vpop.permute.xlu0 %3215
    %3217 = vrot.lane.b32.xlu0 %v2820, 113
    %v3218 = vpop.permute.xlu0 %3217
    %3219 = vrot.lane.b32.xlu0 %v2824, 113
    %v3220 = vpop.permute.xlu0 %3219
    %3221 = vrot.lane.b32.xlu0 %v2813, 113
    %v3222 = vpop.permute.xlu0 %3221
    %3223 = vrot.lane.b32.xlu0 %v2817, 113
    %v3224 = vpop.permute.xlu0 %3223
    %3225 = vrot.lane.b32.xlu0 %v2821, 113
    %v3226 = vpop.permute.xlu0 %3225
    %3227 = vrot.lane.b32.xlu0 %v2825, 113
    %v3228 = vpop.permute.xlu0 %3227
    %v3229 = vsel %vm708, %v3214, %v3222
    %v3230 = vsel %vm708, %v3216, %v3224
    %v3231 = vsel %vm708, %v3218, %v3226
    %v3232 = vsel %vm708, %v3220, %v3228
    %v3233 = vsel %vm708, %v3206, %v3214
    %v3234 = vsel %vm708, %v3208, %v3216
    %v3235 = vsel %vm708, %v3210, %v3218
    %v3236 = vsel %vm708, %v3212, %v3220
    %v3237 = vsel %vm708, %v3198, %v3206
    %v3238 = vsel %vm708, %v3200, %v3208
    %v3239 = vsel %vm708, %v3202, %v3210
    %v3240 = vsel %vm708, %v3204, %v3212
    %v3241 = vsel %vm708, %v3222, %v3198
    %v3242 = vsel %vm708, %v3224, %v3200
    %v3243 = vsel %vm708, %v3226, %v3202
    %v3244 = vsel %vm708, %v3228, %v3204
    %v3245 = vmul.f32 %v3237, %v162
    %v3246 = vmul.f32 %v3233, %v166
    %v3247 = vmul.f32 %v3229, %v170
    %v3248 = vmul.f32 %v3241, %v174
    %v3249 = vmul.f32 %v3238, %v162
    %v3250 = vmul.f32 %v3234, %v166
    %v3251 = vmul.f32 %v3230, %v170
    %v3252 = vmul.f32 %v3242, %v174
    %v3253 = vmul.f32 %v3239, %v162
    %v3254 = vmul.f32 %v3235, %v166
    %v3255 = vmul.f32 %v3231, %v170
    %v3256 = vmul.f32 %v3243, %v174
    %v3257 = vmul.f32 %v3240, %v162
    %v3258 = vmul.f32 %v3236, %v166
    %v3259 = vmul.f32 %v3232, %v170
    %v3260 = vmul.f32 %v3244, %v174
    %v3261 = vpack.c.bf16 %v3249, %v3245
    %v3262 = vpack.c.bf16 %v3250, %v3246
    %v3263 = vpack.c.bf16 %v3251, %v3247
    %v3264 = vpack.c.bf16 %v3252, %v3248
    %v3265 = vpack.c.bf16 %v3257, %v3253
    %v3266 = vpack.c.bf16 %v3258, %v3254
    %v3267 = vpack.c.bf16 %v3259, %v3255
    %v3268 = vpack.c.bf16 %v3260, %v3256
    %3269 = vrot.lane.b32.xlu0 %v2810, 112
    %v3270 = vpop.permute.xlu0 %3269
    %3271 = vrot.lane.b32.xlu0 %v2814, 112
    %v3272 = vpop.permute.xlu0 %3271
    %3273 = vrot.lane.b32.xlu0 %v2818, 112
    %v3274 = vpop.permute.xlu0 %3273
    %3275 = vrot.lane.b32.xlu0 %v2822, 112
    %v3276 = vpop.permute.xlu0 %3275
    %3277 = vrot.lane.b32.xlu0 %v2811, 112
    %v3278 = vpop.permute.xlu0 %3277
    %3279 = vrot.lane.b32.xlu0 %v2815, 112
    %v3280 = vpop.permute.xlu0 %3279
    %3281 = vrot.lane.b32.xlu0 %v2819, 112
    %v3282 = vpop.permute.xlu0 %3281
    %3283 = vrot.lane.b32.xlu0 %v2823, 112
    %v3284 = vpop.permute.xlu0 %3283
    %3285 = vrot.lane.b32.xlu0 %v2812, 112
    %v3286 = vpop.permute.xlu0 %3285
    %3287 = vrot.lane.b32.xlu0 %v2816, 112
    %v3288 = vpop.permute.xlu0 %3287
    %3289 = vrot.lane.b32.xlu0 %v2820, 112
    %v3290 = vpop.permute.xlu0 %3289
    %3291 = vrot.lane.b32.xlu0 %v2824, 112
    %v3292 = vpop.permute.xlu0 %3291
    %3293 = vrot.lane.b32.xlu0 %v2813, 112
    %v3294 = vpop.permute.xlu0 %3293
    %3295 = vrot.lane.b32.xlu0 %v2817, 112
    %v3296 = vpop.permute.xlu0 %3295
    %3297 = vrot.lane.b32.xlu0 %v2821, 112
    %v3298 = vpop.permute.xlu0 %3297
    %3299 = vrot.lane.b32.xlu0 %v2825, 112
    %v3300 = vpop.permute.xlu0 %3299
    %v3301 = vsel %vm745, %v3286, %v3294
    %v3302 = vsel %vm745, %v3288, %v3296
    %v3303 = vsel %vm745, %v3290, %v3298
    %v3304 = vsel %vm745, %v3292, %v3300
    %v3305 = vsel %vm745, %v3278, %v3286
    %v3306 = vsel %vm745, %v3280, %v3288
    %v3307 = vsel %vm745, %v3282, %v3290
    %v3308 = vsel %vm745, %v3284, %v3292
    %v3309 = vsel %vm745, %v3270, %v3278
    %v3310 = vsel %vm745, %v3272, %v3280
    %v3311 = vsel %vm745, %v3274, %v3282
    %v3312 = vsel %vm745, %v3276, %v3284
    %v3313 = vsel %vm745, %v3294, %v3270
    %v3314 = vsel %vm745, %v3296, %v3272
    %v3315 = vsel %vm745, %v3298, %v3274
    %v3316 = vsel %vm745, %v3300, %v3276
    %v3317 = vmul.f32 %v3309, %v185
    %v3318 = vmul.f32 %v3305, %v189
    %v3319 = vmul.f32 %v3301, %v193
    %v3320 = vmul.f32 %v3313, %v197
    %v3321 = vmul.f32 %v3310, %v185
    %v3322 = vmul.f32 %v3306, %v189
    %v3323 = vmul.f32 %v3302, %v193
    %v3324 = vmul.f32 %v3314, %v197
    %v3325 = vmul.f32 %v3311, %v185
    %v3326 = vmul.f32 %v3307, %v189
    %v3327 = vmul.f32 %v3303, %v193
    %v3328 = vmul.f32 %v3315, %v197
    %v3329 = vmul.f32 %v3312, %v185
    %v3330 = vmul.f32 %v3308, %v189
    %v3331 = vmul.f32 %v3304, %v193
    %v3332 = vmul.f32 %v3316, %v197
    %v3333 = vpack.c.bf16 %v3321, %v3317
    %v3334 = vpack.c.bf16 %v3322, %v3318
    %v3335 = vpack.c.bf16 %v3323, %v3319
    %v3336 = vpack.c.bf16 %v3324, %v3320
    %v3337 = vpack.c.bf16 %v3329, %v3325
    %v3338 = vpack.c.bf16 %v3330, %v3326
    %v3339 = vpack.c.bf16 %v3331, %v3327
    %v3340 = vpack.c.bf16 %v3332, %v3328
    %3341 = vrot.lane.b32.xlu0 %v2810, 111
    %v3342 = vpop.permute.xlu0 %3341
    %3343 = vrot.lane.b32.xlu0 %v2814, 111
    %v3344 = vpop.permute.xlu0 %3343
    %3345 = vrot.lane.b32.xlu0 %v2818, 111
    %v3346 = vpop.permute.xlu0 %3345
    %3347 = vrot.lane.b32.xlu0 %v2822, 111
    %v3348 = vpop.permute.xlu0 %3347
    %3349 = vrot.lane.b32.xlu0 %v2811, 111
    %v3350 = vpop.permute.xlu0 %3349
    %3351 = vrot.lane.b32.xlu0 %v2815, 111
    %v3352 = vpop.permute.xlu0 %3351
    %3353 = vrot.lane.b32.xlu0 %v2819, 111
    %v3354 = vpop.permute.xlu0 %3353
    %3355 = vrot.lane.b32.xlu0 %v2823, 111
    %v3356 = vpop.permute.xlu0 %3355
    %3357 = vrot.lane.b32.xlu0 %v2812, 111
    %v3358 = vpop.permute.xlu0 %3357
    %3359 = vrot.lane.b32.xlu0 %v2816, 111
    %v3360 = vpop.permute.xlu0 %3359
    %3361 = vrot.lane.b32.xlu0 %v2820, 111
    %v3362 = vpop.permute.xlu0 %3361
    %3363 = vrot.lane.b32.xlu0 %v2824, 111
    %v3364 = vpop.permute.xlu0 %3363
    %3365 = vrot.lane.b32.xlu0 %v2813, 111
    %v3366 = vpop.permute.xlu0 %3365
    %3367 = vrot.lane.b32.xlu0 %v2817, 111
    %v3368 = vpop.permute.xlu0 %3367
    %3369 = vrot.lane.b32.xlu0 %v2821, 111
    %v3370 = vpop.permute.xlu0 %3369
    %3371 = vrot.lane.b32.xlu0 %v2825, 111
    %v3372 = vpop.permute.xlu0 %3371
    %v3373 = vsel %vm782, %v3358, %v3366
    %v3374 = vsel %vm782, %v3360, %v3368
    %v3375 = vsel %vm782, %v3362, %v3370
    %v3376 = vsel %vm782, %v3364, %v3372
    %v3377 = vsel %vm782, %v3350, %v3358
    %v3378 = vsel %vm782, %v3352, %v3360
    %v3379 = vsel %vm782, %v3354, %v3362
    %v3380 = vsel %vm782, %v3356, %v3364
    %v3381 = vsel %vm782, %v3342, %v3350
    %v3382 = vsel %vm782, %v3344, %v3352
    %v3383 = vsel %vm782, %v3346, %v3354
    %v3384 = vsel %vm782, %v3348, %v3356
    %v3385 = vsel %vm782, %v3366, %v3342
    %v3386 = vsel %vm782, %v3368, %v3344
    %v3387 = vsel %vm782, %v3370, %v3346
    %v3388 = vsel %vm782, %v3372, %v3348
    %v3389 = vmul.f32 %v3381, %v208
    %v3390 = vmul.f32 %v3377, %v212
    %v3391 = vmul.f32 %v3373, %v216
    %v3392 = vmul.f32 %v3385, %v220
    %v3393 = vmul.f32 %v3382, %v208
    %v3394 = vmul.f32 %v3378, %v212
    %v3395 = vmul.f32 %v3374, %v216
    %v3396 = vmul.f32 %v3386, %v220
    %v3397 = vmul.f32 %v3383, %v208
    %v3398 = vmul.f32 %v3379, %v212
    %v3399 = vmul.f32 %v3375, %v216
    %v3400 = vmul.f32 %v3387, %v220
    %v3401 = vmul.f32 %v3384, %v208
    %v3402 = vmul.f32 %v3380, %v212
    %v3403 = vmul.f32 %v3376, %v216
    %v3404 = vmul.f32 %v3388, %v220
    %v3405 = vpack.c.bf16 %v3393, %v3389
    %v3406 = vpack.c.bf16 %v3394, %v3390
    %v3407 = vpack.c.bf16 %v3395, %v3391
    %v3408 = vpack.c.bf16 %v3396, %v3392
    %v3409 = vpack.c.bf16 %v3401, %v3397
    %v3410 = vpack.c.bf16 %v3402, %v3398
    %v3411 = vpack.c.bf16 %v3403, %v3399
    %v3412 = vpack.c.bf16 %v3404, %v3400
    %v3415 = vunpack.c.l.b16 %v2827
    %v3416 = vunpack.c.h.b16 %v2827
    %v3417 = vunpack.c.l.b16 %v2828
    %v3418 = vpack.c.b16 %v3415, %v3415
    %v3419 = vpack.c.b16 %v3416, %v3416
    %v3420 = vpack.c.b16 %v3417, %v3417
    %v3424 = vsel %vm1580, %v3420, 0
    %3426 = vmatprep.subr.bf16.mxu0 %v3114
    %3427 = vmatpush1.bf16.msra.mxu0 %v3113
    %3428 = vmatprep.subr.bf16.mxu0 %v3110
    %3429 = vmatpush1.bf16.msra.mxu0 %v3109
    %3430 = vmatprep.subr.bf16.mxu0 %v3042
    %3431 = vmatpush1.bf16.msra.mxu0 %v3041
    %3432 = vmatprep.subr.bf16.mxu0 %v3038
    %3433 = vmatpush1.bf16.msra.mxu0 %v3037
    %3434 = vmatprep.subr.bf16.mxu0 %v2970
    %3435 = vmatpush1.bf16.msra.mxu0 %v2969
    %3436 = vmatprep.subr.bf16.mxu0 %v2966
    %3437 = vmatpush1.bf16.msra.mxu0 %v2965
    %3438 = vmatprep.subr.bf16.mxu0 %v2898
    %3439 = vmatpush1.bf16.msra.mxu0 %v2897
    %3440 = vmatprep.subr.bf16.mxu0 %v2894
    %3441 = vmatpush1.bf16.msra.mxu0 %v2893
    %3442 = vmatprep.subr.bf16.mxu0 %v3338
    %3443 = vmatpush2.bf16.msra.mxu0 %v3337
    %3444 = vmatprep.subr.bf16.mxu0 %v3334
    %3445 = vmatpush2.bf16.msra.mxu0 %v3333
    %3446 = vmatprep.subr.bf16.mxu0 %v3266
    %3447 = vmatpush2.bf16.msra.mxu0 %v3265
    %3448 = vmatprep.subr.bf16.mxu0 %v3262
    %3449 = vmatpush2.bf16.msra.mxu0 %v3261
    %3450 = vmatprep.subr.bf16.mxu0 %v3194
    %3451 = vmatpush2.bf16.msra.mxu0 %v3193
    %3452 = vmatprep.subr.bf16.mxu0 %v3190
    %3453 = vmatpush2.bf16.msra.mxu0 %v3189
    %3454 = vmatprep.subr.bf16.mxu0 %v3122
    %3455 = vmatpush2.bf16.msra.mxu0 %v3121
    %3456 = vmatprep.subr.bf16.mxu0 %v3118
    %3457 = vmatpush2.bf16.msra.mxu0 %v3117
    %3458 = vmatprep.mubr.bf16.mxu0 %v3419
    %3459 = vmatmul.mubr.bf16.gmra.mxu0 %v3418
    %v3460 = vpop.f32.mrf.mxu0
    %v3461 = vadd.f32 0.0, %v3460
    %v3462 = vpop.f32.mrf.mxu0
    %v3463 = vadd.f32 0.0, %v3462
    %v3464 = vpop.f32.mrf.mxu0
    %v3465 = vpop.f32.mrf.mxu0
    %3466 = vdwg.mxu0
    %3467 = vmatprep.subr.bf16.mxu0 0
    %3468 = vmatpush1.bf16.msra.mxu0 0
    %3469 = vmatprep.subr.bf16.mxu0 0
    %3470 = vmatpush1.bf16.msra.mxu0 0
    %3471 = vmatprep.subr.bf16.mxu0 0
    %3472 = vmatpush1.bf16.msra.mxu0 0
    %3473 = vmatprep.subr.bf16.mxu0 0
    %3474 = vmatpush1.bf16.msra.mxu0 0
    %3475 = vmatprep.subr.bf16.mxu0 0
    %3476 = vmatpush1.bf16.msra.mxu0 0
    %3477 = vmatprep.subr.bf16.mxu0 0
    %3478 = vmatpush1.bf16.msra.mxu0 0
    %3479 = vmatprep.subr.bf16.mxu0 %v3410
    %3480 = vmatpush1.bf16.msra.mxu0 %v3409
    %3481 = vmatprep.subr.bf16.mxu0 %v3406
    %3482 = vmatpush1.bf16.msra.mxu0 %v3405
    %3483 = vmatprep.subr.bf16.mxu0 0
    %3484 = vmatpush2.bf16.msra.mxu0 0
    %3485 = vmatprep.subr.bf16.mxu0 0
    %3486 = vmatpush2.bf16.msra.mxu0 0
    %3487 = vmatprep.subr.bf16.mxu0 0
    %3488 = vmatpush2.bf16.msra.mxu0 0
    %3489 = vmatprep.subr.bf16.mxu0 0
    %3490 = vmatpush2.bf16.msra.mxu0 0
    %3491 = vmatprep.subr.bf16.mxu0 0
    %3492 = vmatpush2.bf16.msra.mxu0 0
    %3493 = vmatprep.subr.bf16.mxu0 0
    %3494 = vmatpush2.bf16.msra.mxu0 0
    %3495 = vmatprep.subr.bf16.mxu0 0
    %3496 = vmatpush2.bf16.msra.mxu0 0
    %3497 = vmatprep.subr.bf16.mxu0 0
    %3498 = vmatpush2.bf16.msra.mxu0 0
    %3499 = vmatprep.mubr.bf16.mxu0 0
    %3500 = vmatmul.mubr.bf16.gmra.mxu0 %v3424
    %v3501 = vpop.f32.mrf.mxu0
    %v3502 = vadd.f32 %v3461, %v3501
    %v3503 = vpop.f32.mrf.mxu0
    %v3504 = vadd.f32 %v3463, %v3503
    %v3505 = vpop.f32.mrf.mxu0
    %v3506 = vpop.f32.mrf.mxu0
    %3507 = vdwg.mxu0
    %3508 = vmatprep.subr.bf16.mxu0 %v3116
    %3509 = vmatpush1.bf16.msra.mxu0 %v3115
    %3510 = vmatprep.subr.bf16.mxu0 %v3112
    %3511 = vmatpush1.bf16.msra.mxu0 %v3111
    %3512 = vmatprep.subr.bf16.mxu0 %v3044
    %3513 = vmatpush1.bf16.msra.mxu0 %v3043
    %3514 = vmatprep.subr.bf16.mxu0 %v3040
    %3515 = vmatpush1.bf16.msra.mxu0 %v3039
    %3516 = vmatprep.subr.bf16.mxu0 %v2972
    %3517 = vmatpush1.bf16.msra.mxu0 %v2971
    %3518 = vmatprep.subr.bf16.mxu0 %v2968
    %3519 = vmatpush1.bf16.msra.mxu0 %v2967
    %3520 = vmatprep.subr.bf16.mxu0 %v2900
    %3521 = vmatpush1.bf16.msra.mxu0 %v2899
    %3522 = vmatprep.subr.bf16.mxu0 %v2896
    %3523 = vmatpush1.bf16.msra.mxu0 %v2895
    %3524 = vmatprep.subr.bf16.mxu0 %v3340
    %3525 = vmatpush2.bf16.msra.mxu0 %v3339
    %3526 = vmatprep.subr.bf16.mxu0 %v3336
    %3527 = vmatpush2.bf16.msra.mxu0 %v3335
    %3528 = vmatprep.subr.bf16.mxu0 %v3268
    %3529 = vmatpush2.bf16.msra.mxu0 %v3267
    %3530 = vmatprep.subr.bf16.mxu0 %v3264
    %3531 = vmatpush2.bf16.msra.mxu0 %v3263
    %3532 = vmatprep.subr.bf16.mxu0 %v3196
    %3533 = vmatpush2.bf16.msra.mxu0 %v3195
    %3534 = vmatprep.subr.bf16.mxu0 %v3192
    %3535 = vmatpush2.bf16.msra.mxu0 %v3191
    %3536 = vmatprep.subr.bf16.mxu0 %v3124
    %3537 = vmatpush2.bf16.msra.mxu0 %v3123
    %3538 = vmatprep.subr.bf16.mxu0 %v3120
    %3539 = vmatpush2.bf16.msra.mxu0 %v3119
    %3540 = vmatprep.mubr.bf16.mxu0 %v3419
    %3541 = vmatmul.mubr.bf16.gmra.mxu0 %v3418
    %v3542 = vpop.f32.mrf.mxu0
    %v3543 = vadd.f32 0.0, %v3542
    %v3544 = vpop.f32.mrf.mxu0
    %v3545 = vadd.f32 0.0, %v3544
    %v3546 = vpop.f32.mrf.mxu0
    %v3547 = vpop.f32.mrf.mxu0
    %3548 = vdwg.mxu0
    %3549 = vmatprep.subr.bf16.mxu0 0
    %3550 = vmatpush1.bf16.msra.mxu0 0
    %3551 = vmatprep.subr.bf16.mxu0 0
    %3552 = vmatpush1.bf16.msra.mxu0 0
    %3553 = vmatprep.subr.bf16.mxu0 0
    %3554 = vmatpush1.bf16.msra.mxu0 0
    %3555 = vmatprep.subr.bf16.mxu0 0
    %3556 = vmatpush1.bf16.msra.mxu0 0
    %3557 = vmatprep.subr.bf16.mxu0 0
    %3558 = vmatpush1.bf16.msra.mxu0 0
    %3559 = vmatprep.subr.bf16.mxu0 0
    %3560 = vmatpush1.bf16.msra.mxu0 0
    %3561 = vmatprep.subr.bf16.mxu0 %v3412
    %3562 = vmatpush1.bf16.msra.mxu0 %v3411
    %3563 = vmatprep.subr.bf16.mxu0 %v3408
    %3564 = vmatpush1.bf16.msra.mxu0 %v3407
    %3565 = vmatprep.subr.bf16.mxu0 0
    %3566 = vmatpush2.bf16.msra.mxu0 0
    %3567 = vmatprep.subr.bf16.mxu0 0
    %3568 = vmatpush2.bf16.msra.mxu0 0
    %3569 = vmatprep.subr.bf16.mxu0 0
    %3570 = vmatpush2.bf16.msra.mxu0 0
    %3571 = vmatprep.subr.bf16.mxu0 0
    %3572 = vmatpush2.bf16.msra.mxu0 0
    %3573 = vmatprep.subr.bf16.mxu0 0
    %3574 = vmatpush2.bf16.msra.mxu0 0
    %3575 = vmatprep.subr.bf16.mxu0 0
    %3576 = vmatpush2.bf16.msra.mxu0 0
    %3577 = vmatprep.subr.bf16.mxu0 0
    %3578 = vmatpush2.bf16.msra.mxu0 0
    %3579 = vmatprep.subr.bf16.mxu0 0
    %3580 = vmatpush2.bf16.msra.mxu0 0
    %3581 = vmatprep.mubr.bf16.mxu0 0
    %3582 = vmatmul.mubr.bf16.gmra.mxu0 %v3424
    %v3583 = vpop.f32.mrf.mxu0
    %v3584 = vadd.f32 %v3543, %v3583
    %v3585 = vpop.f32.mrf.mxu0
    %v3586 = vadd.f32 %v3545, %v3585
    %v3587 = vpop.f32.mrf.mxu0
    %v3588 = vpop.f32.mrf.mxu0
    %3589 = vdwg.mxu0
    %v3590 = vpack.c.bf16 %v3502, %v3502
    %v3591 = vpack.c.bf16 %v3504, %v3504
    %v3592 = vpack.c.bf16 %v3584, %v3584
    %v3593 = vpack.c.bf16 %v3586, %v3586
    %v3598 = vcombine.low %v3590, %v3591
    %v3599 = vcombine.low %v3592, %v3593
    %v3601 = vunpack.c.l.s4 1983009808
    %v3602 = vunpack.c.0.s8 %v3601
    %v3603 = vlaneseq
    %v3604 = vshrl.u32 %v3603, 7
    %v3605 = vsub.s32 %v3602, %v3604
    %v3606 = vrot.slane %v3598, %v3605
    %v3608 = vunpack.c.l.s4 1983009808
    %v3609 = vunpack.c.0.s8 %v3608
    %v3610 = vlaneseq
    %v3611 = vshrl.u32 %v3610, 7
    %v3612 = vsub.s32 %v3609, %v3611
    %v3613 = vrot.slane %v3599, %v3612
    %v3614 = vcombine.low %v3606, %v3613
    %3616 = vst [vmem:[#allocation5] sm:$0xff] %v3614
    // Predicated region
    $region34: #{tpu_custom_call.1} parent=1 // pred_check
      _
    $region35: #{tpu_custom_call.1} parent=1 // pred_check_branch
      %3618 = sbr.rel (0) target = $region37
    $region36: #{tpu_custom_call.1} parent=1 // pred_region
      %s3620 = ssub.s32 128, 128
      %3621 = vsyncadd [#allocation4], %s3620
      %s3623 = sshll.u32 [#allocation5], 4
      %s3624 = int_to_ptr.vmem [resolvable:$true] %s3623
      %3626 = dma.vmem_to_hbm [thread:$0]  %s3624, 128, %s7, [#allocation4]
    $region37: #{tpu_custom_call.1} parent=1 // pred_fallthru
      _
    // Predicated region
    $region38: #{tpu_custom_call.1} parent=1 // pred_check
      _
    $region39: #{tpu_custom_call.1} parent=1 // pred_check_branch
      %3628 = sbr.rel (0) target = $region41
    $region40: #{tpu_custom_call.1} parent=1 // pred_region
      %3629 = dma.done [#allocation4], 128
    $region41: #{tpu_custom_call.1} parent=1 // pred_fallthru
      _
    %3630 = vsyncpa [#allocation3], 1
    %3631 = vsyncpa [#allocation4], 1

</llo_original>
